<compile_context>
chip_gen: v5e
topology: v5e:2x2
jax: 0.10.0
libtpu: 0.0.40
codegen_flags: <defaults>
</compile_context>

<pallas_src>
import functools

import jax
import jax.numpy as jnp
from jax.experimental import pallas as pl
from jax.experimental.pallas import tpu as pltpu


# ---------------------------------------------------------------------------
# Fused forward kernel (bt samples per grid step)
# ---------------------------------------------------------------------------
def _endgame_kernel(x_ref, w1_ref, b1_ref, w2_ref, b2_ref, w3_ref, b3_ref,
                    wfc1_ref, bfc1_ref, wfc2_ref, bfc2_ref,
                    o_ref, xp2_ref, xp3_ref, *, bt):
    f32, bf16 = jnp.float32, jnp.bfloat16

    # ---- stage 1: conv1 as one im2col dot (K=128), bias + ReLU -------------
    # x_ref rows are ordered (sample, phase=hi*2+wi, ho, wo); columns = 108
    # real features (kh,kw,cin) padded to 128 lanes.
    a1 = jnp.dot(x_ref[...], w1_ref[...], preferred_element_type=f32)
    a1 = jnp.maximum(a1 + b1_ref[...], 0.0)                 # (bt*64, 64)

    # ---- pool1 (2x2/2) + build each sample's padded 6x6 stage-2 slab -------
    # Phase-grouped row order => pool = max over four contiguous 16-row blocks.
    # The full (36, 64) padded slab (halo zeros included) is assembled as a
    # value and written with a single store per sample.
    C1 = 64
    z7 = jnp.zeros((7, C1), f32)
    z2 = jnp.zeros((2, C1), f32)
    for b in range(bt):
        s0 = b * 64
        p = jnp.maximum(
            jnp.maximum(a1[s0 + 0:s0 + 16], a1[s0 + 16:s0 + 32]),
            jnp.maximum(a1[s0 + 32:s0 + 48], a1[s0 + 48:s0 + 64]))  # (16, 64)
        slab = jnp.concatenate(
            [z7, p[0:4], z2, p[4:8], z2, p[8:12], z2, p[12:16], z7], axis=0)
        xp2_ref[pl.ds(b * 36, 36), :] = slab                 # (36, 64) store

    # ---- stage 2: conv2 via 9 shifted-slab dots over the stacked slab ------
    L2 = (bt - 1) * 36 + 22
    acc2 = None
    for kh in range(3):
        for kw in range(3):
            lhs = xp2_ref[pl.ds(kh * 6 + kw, L2), :].astype(bf16)
            d = jnp.dot(lhs, w2_ref[kh * 3 + kw],
                        preferred_element_type=f32)
            acc2 = d if acc2 is None else acc2 + d
    a2 = jnp.maximum(acc2 + b2_ref[...], 0.0)                # (L2, 128)

    # ---- pool2 + build each sample's padded 4x4 stage-3 slab ---------------
    C2 = 128
    z5 = jnp.zeros((5, C2), f32)
    z2b = jnp.zeros((2, C2), f32)
    for b in range(bt):
        s0 = b * 36                                          # valid rows: h*6+w
        v0 = jnp.maximum(a2[s0 + 0:s0 + 4], a2[s0 + 6:s0 + 10])    # h=0,1
        v1 = jnp.maximum(a2[s0 + 12:s0 + 16], a2[s0 + 18:s0 + 22])  # h=2,3
        p00 = jnp.maximum(v0[0:1], v0[1:2])
        p01 = jnp.maximum(v0[2:3], v0[3:4])
        p10 = jnp.maximum(v1[0:1], v1[1:2])
        p11 = jnp.maximum(v1[2:3], v1[3:4])
        slab = jnp.concatenate([z5, p00, p01, z2b, p10, p11, z5], axis=0)
        xp3_ref[pl.ds(b * 16, 16), :] = slab                 # (16, 128) store

    # ---- stage 3: conv3 via 9 shifted-slab dots -----------------------------
    L3 = (bt - 1) * 16 + 6
    acc3 = None
    for kh in range(3):
        for kw in range(3):
            lhs = xp3_ref[pl.ds(kh * 4 + kw, L3), :].astype(bf16)
            d = jnp.dot(lhs, w3_ref[kh * 3 + kw],
                        preferred_element_type=f32)
            acc3 = d if acc3 is None else acc3 + d
    a3 = jnp.maximum(acc3 + b3_ref[...], 0.0)                # (L3, 256)

    # ---- pool3 (2x2 -> 1x1) => per-sample 256-d feature, stacked (bt, 256) --
    feat = jnp.concatenate(
        [jnp.maximum(
            jnp.maximum(a3[b * 16 + 0:b * 16 + 1], a3[b * 16 + 1:b * 16 + 2]),
            jnp.maximum(a3[b * 16 + 4:b * 16 + 5], a3[b * 16 + 5:b * 16 + 6]))
         for b in range(bt)], axis=0)                        # (bt, 256)

    # ---- fc1 + ReLU, fc2 (padded to 128 lanes -> dense HBM store) ----------
    z1 = jnp.maximum(
        jnp.dot(feat.astype(bf16), wfc1_ref[...], preferred_element_type=f32)
        + bfc1_ref[...], 0.0)                                # (bt, 512)
    logits = (jnp.dot(z1.astype(bf16), wfc2_ref[...],
                      preferred_element_type=f32) + bfc2_ref[...])  # (bt, 128)
    o_ref[0] = logits


# ---------------------------------------------------------------------------
# Host-side wrapper (boundary layout plumbing only)
# ---------------------------------------------------------------------------
def _prep_conv_weight(w_oihw):
    """(Cout, Cin, 3, 3) PyTorch OIHW -> (9, Cin, Cout), tap index = kh*3+kw."""
    cout, cin = w_oihw.shape[0], w_oihw.shape[1]
    return jnp.transpose(w_oihw, (2, 3, 1, 0)).reshape(9, cin, cout)


@functools.partial(jax.jit, static_argnames=("block_batch",))
def endgame_forward(x_nchw, params, block_batch=8):
    B, Cin, H, W = x_nchw.shape
    assert (Cin, H, W) == (12, 8, 8), "fc1 expects 256*1*1 -> 8x8 board, 12 ch"

    # batch tile: keep >= 2 grid steps when possible (v7x two-TC sharding)
    bt = max(1, min(block_batch, B // 2)) if B >= 2 else 1
    T = -(-B // bt)
    Bp = T * bt

    # NCHW -> NHWC (bf16), pad batch to Bp, zero-pad spatial by 1
    x = jnp.transpose(x_nchw, (0, 2, 3, 1)).astype(jnp.bfloat16)
    if Bp != B:
        x = jnp.pad(x, ((0, Bp - B), (0, 0), (0, 0), (0, 0)))
    xpad = jnp.pad(x, ((0, 0), (1, 1), (1, 1), (0, 0)))      # (Bp, 10, 10, 12)

    # stage-1 im2col: rows ordered (b, phase=hi*2+wi, ho, wo); K 108 -> 128
    cols = [xpad[:, kh:kh + 8, kw:kw + 8, :]
            for kh in range(3) for kw in range(3)]
    pat = jnp.concatenate(cols, axis=-1)                     # (Bp, 8, 8, 108)
    pat = pat.reshape(Bp, 4, 2, 4, 2, 108)                   # b,ho,hi,wo,wi,f
    pat = pat.transpose(0, 2, 4, 1, 3, 5)                    # b,hi,wi,ho,wo,f
    pat = pat.reshape(Bp, 64, 108)
    pat = jnp.pad(pat, ((0, 0), (0, 0), (0, 20)))            # (Bp, 64, 128)
    pat = pat.reshape(Bp * 64, 128)

    # weights (bf16 operands; biases stay f32 since they add into f32 acc)
    w1 = jnp.pad(_prep_conv_weight(params["w1"]).reshape(108, 64),
                 ((0, 20), (0, 0))).astype(jnp.bfloat16)     # (128, 64)
    w2 = _prep_conv_weight(params["w2"]).astype(jnp.bfloat16)   # (9, 64, 128)
    w3 = _prep_conv_weight(params["w3"]).astype(jnp.bfloat16)   # (9, 128, 256)
    b1 = params["b1"].reshape(1, -1).astype(jnp.float32)
    b2 = params["b2"].reshape(1, -1).astype(jnp.float32)
    b3 = params["b3"].reshape(1, -1).astype(jnp.float32)
    # NOTE: fc weights here are stored (in, out); a real PyTorch Linear
    # state_dict is (out, in) and must be transposed when loading checkpoints.
    wfc1 = params["wfc1"].astype(jnp.bfloat16)               # (256, 512)
    bfc1 = params["bfc1"].reshape(1, -1).astype(jnp.float32)
    wfc2 = jnp.zeros((512, 128), jnp.bfloat16).at[:, :5].set(
        params["wfc2"].astype(jnp.bfloat16))
    bfc2 = jnp.zeros((1, 128), jnp.float32).at[0, :5].set(
        params["bfc2"].astype(jnp.float32))

    full2 = lambda t: (0, 0)
    full3 = lambda t: (0, 0, 0)
    kernel = functools.partial(_endgame_kernel, bt=bt)

    out = pl.pallas_call(
        kernel,
        out_shape=jax.ShapeDtypeStruct((T, bt, 128), jnp.float32),
        grid=(T,),
        in_specs=[
            pl.BlockSpec((bt * 64, 128), lambda t: (t, 0)),          # patches
            pl.BlockSpec((128, 64), full2),    pl.BlockSpec((1, 64), full2),
            pl.BlockSpec((9, 64, 128), full3), pl.BlockSpec((1, 128), full2),
            pl.BlockSpec((9, 128, 256), full3), pl.BlockSpec((1, 256), full2),
            pl.BlockSpec((256, 512), full2),   pl.BlockSpec((1, 512), full2),
            pl.BlockSpec((512, 128), full2),   pl.BlockSpec((1, 128), full2),
        ],
        out_specs=pl.BlockSpec((1, bt, 128), lambda t: (t, 0, 0)),
        scratch_shapes=[
            pltpu.VMEM((bt * 36, 64), jnp.float32),   # stage-2 padded slabs
            pltpu.VMEM((bt * 16, 128), jnp.float32),  # stage-3 padded slabs
        ],
        compiler_params=pltpu.CompilerParams(
            dimension_semantics=("parallel",)),
    )(pat, w1, b1, w2, b2, w3, b3, wfc1, bfc1, wfc2, bfc2)

    return out.reshape(T * bt, 128)[:B, :5]                  # (B, 5) logits


# ---------------------------------------------------------------------------
# Params (conv weights kept in PyTorch OIHW; fc weights stored as (in, out))
# ---------------------------------------------------------------------------
def init_params(key):
    ks = jax.random.split(key, 10)
    return {
        "w1": jax.random.normal(ks[0], (64, 12, 3, 3), jnp.float32) * 0.05,
        "b1": jax.random.normal(ks[1], (64,), jnp.float32) * 0.01,
        "w2": jax.random.normal(ks[2], (128, 64, 3, 3), jnp.float32) * 0.05,
        "b2": jax.random.normal(ks[3], (128,), jnp.float32) * 0.01,
        "w3": jax.random.normal(ks[4], (256, 128, 3, 3), jnp.float32) * 0.05,
        "b3": jax.random.normal(ks[5], (256,), jnp.float32) * 0.01,
        "wfc1": jax.random.normal(ks[6], (256, 512), jnp.float32) * 0.05,
        "bfc1": jax.random.normal(ks[7], (512,), jnp.float32) * 0.01,
        "wfc2": jax.random.normal(ks[8], (512, 5), jnp.float32) * 0.05,
        "bfc2": jax.random.normal(ks[9], (5,), jnp.float32) * 0.01,
    }


if __name__ == "__main__":
    key = jax.random.PRNGKey(0)
    k_x, k_p = jax.random.split(key)
    # 12 input channels, 8x8 board (three 2x2 pools -> 1x1, matching fc1's
    # 256*1*1 input), small batch.
    x = jax.random.normal(k_x, (2, 12, 8, 8), jnp.float32)
    params = init_params(k_p)

    out = endgame_forward(x, params)
    out = jax.block_until_ready(out)
    assert out.shape == (2, 5) and out.dtype == jnp.float32
    print("KERNEL_OK")
</pallas_src>

<mosaic_0001>
module attributes {stable_mosaic.version = 11 : i64} {
  func.func @_endgame_kernel(%arg0: i32, %arg1: memref<64x128xbf16, #tpu.memory_space<vmem>>, %arg2: memref<128x64xbf16, #tpu.memory_space<vmem>>, %arg3: memref<1x64xf32, #tpu.memory_space<vmem>>, %arg4: memref<9x64x128xbf16, #tpu.memory_space<vmem>>, %arg5: memref<1x128xf32, #tpu.memory_space<vmem>>, %arg6: memref<9x128x256xbf16, #tpu.memory_space<vmem>>, %arg7: memref<1x256xf32, #tpu.memory_space<vmem>>, %arg8: memref<256x512xbf16, #tpu.memory_space<vmem>>, %arg9: memref<1x512xf32, #tpu.memory_space<vmem>>, %arg10: memref<512x128xbf16, #tpu.memory_space<vmem>>, %arg11: memref<1x128xf32, #tpu.memory_space<vmem>>, %arg12: memref<1x1x128xf32, #tpu.memory_space<vmem>>, %arg13: memref<36x64xf32, #tpu.memory_space<vmem>>, %arg14: memref<16x128xf32, #tpu.memory_space<vmem>>) attributes {dimension_semantics = [#tpu.dimension_semantics<parallel>], iteration_bounds = array<i64: 2>, scalar_prefetch = 0 : i64, scratch_operands = 2 : i64, tpu.core_type = #tpu.core_type<tc>, window_params = [{transform_indices = @transform_0, window_bounds = array<i64: 64, 128>}, {pipeline_mode = #tpu.pipeline_mode<synchronous>, transform_indices = @transform_1, window_bounds = array<i64: 128, 64>}, {pipeline_mode = #tpu.pipeline_mode<synchronous>, transform_indices = @transform_2, window_bounds = array<i64: 1, 64>}, {pipeline_mode = #tpu.pipeline_mode<synchronous>, transform_indices = @transform_3, window_bounds = array<i64: 9, 64, 128>}, {pipeline_mode = #tpu.pipeline_mode<synchronous>, transform_indices = @transform_4, window_bounds = array<i64: 1, 128>}, {pipeline_mode = #tpu.pipeline_mode<synchronous>, transform_indices = @transform_5, window_bounds = array<i64: 9, 128, 256>}, {pipeline_mode = #tpu.pipeline_mode<synchronous>, transform_indices = @transform_6, window_bounds = array<i64: 1, 256>}, {pipeline_mode = #tpu.pipeline_mode<synchronous>, transform_indices = @transform_7, window_bounds = array<i64: 256, 512>}, {pipeline_mode = #tpu.pipeline_mode<synchronous>, transform_indices = @transform_8, window_bounds = array<i64: 1, 512>}, {pipeline_mode = #tpu.pipeline_mode<synchronous>, transform_indices = @transform_9, window_bounds = array<i64: 512, 128>}, {pipeline_mode = #tpu.pipeline_mode<synchronous>, transform_indices = @transform_10, window_bounds = array<i64: 1, 128>}, {transform_indices = @transform_11, window_bounds = array<i64: 1, 1, 128>}]} {
    %c0 = arith.constant 0 : index
    %c0_0 = arith.constant 0 : index
    %0 = vector.load %arg1[%c0, %c0_0] : memref<64x128xbf16, #tpu.memory_space<vmem>>, vector<64x128xbf16>
    %c0_1 = arith.constant 0 : index
    %c0_2 = arith.constant 0 : index
    %1 = vector.load %arg2[%c0_1, %c0_2] : memref<128x64xbf16, #tpu.memory_space<vmem>>, vector<128x64xbf16>
    %cst = arith.constant dense<0.000000e+00> : vector<64x64xf32>
    %2 = tpu.matmul %0, %1, %cst {dimension_numbers = #tpu.dot_dimension_numbers<[1], [0], [0], [1], [0, 0, 1, 1], [], []>} : vector<64x128xbf16>, vector<128x64xbf16>, vector<64x64xf32> -> vector<64x64xf32>
    %c0_3 = arith.constant 0 : index
    %c0_4 = arith.constant 0 : index
    %3 = vector.load %arg3[%c0_3, %c0_4] : memref<1x64xf32, #tpu.memory_space<vmem>>, vector<1x64xf32>
    %4 = vector.broadcast %3 : vector<1x64xf32> to vector<64x64xf32>
    %5 = arith.addf %2, %4 : vector<64x64xf32>
    %cst_5 = arith.constant 0.000000e+00 : f32
    %6 = vector.broadcast %cst_5 : f32 to vector<64x64xf32>
    %7 = arith.maximumf %5, %6 : vector<64x64xf32>
    %cst_6 = arith.constant 0.000000e+00 : f32
    %8 = vector.broadcast %cst_6 : f32 to vector<7x64xf32>
    %cst_7 = arith.constant 0.000000e+00 : f32
    %9 = vector.broadcast %cst_7 : f32 to vector<2x64xf32>
    %10 = vector.extract_strided_slice %7 {offsets = [0, 0], sizes = [16, 64], strides = [1, 1]} : vector<64x64xf32> to vector<16x64xf32>
    %11 = vector.extract_strided_slice %7 {offsets = [16, 0], sizes = [16, 64], strides = [1, 1]} : vector<64x64xf32> to vector<16x64xf32>
    %12 = arith.maximumf %10, %11 : vector<16x64xf32>
    %13 = vector.extract_strided_slice %7 {offsets = [32, 0], sizes = [16, 64], strides = [1, 1]} : vector<64x64xf32> to vector<16x64xf32>
    %14 = vector.extract_strided_slice %7 {offsets = [48, 0], sizes = [16, 64], strides = [1, 1]} : vector<64x64xf32> to vector<16x64xf32>
    %15 = arith.maximumf %13, %14 : vector<16x64xf32>
    %16 = arith.maximumf %12, %15 : vector<16x64xf32>
    %17 = vector.extract_strided_slice %16 {offsets = [0, 0], sizes = [4, 64], strides = [1, 1]} : vector<16x64xf32> to vector<4x64xf32>
    %18 = vector.extract_strided_slice %16 {offsets = [4, 0], sizes = [4, 64], strides = [1, 1]} : vector<16x64xf32> to vector<4x64xf32>
    %19 = vector.extract_strided_slice %16 {offsets = [8, 0], sizes = [4, 64], strides = [1, 1]} : vector<16x64xf32> to vector<4x64xf32>
    %20 = vector.extract_strided_slice %16 {offsets = [12, 0], sizes = [4, 64], strides = [1, 1]} : vector<16x64xf32> to vector<4x64xf32>
    %21 = tpu.concatenate %8, %17, %9, %18, %9, %19, %9, %20, %8 in 0 : vector<7x64xf32>, vector<4x64xf32>, vector<2x64xf32>, vector<4x64xf32>, vector<2x64xf32>, vector<4x64xf32>, vector<2x64xf32>, vector<4x64xf32>, vector<7x64xf32> -> vector<36x64xf32>
    %c0_8 = arith.constant 0 : index
    %c0_9 = arith.constant 0 : index
    %22 = vector.load %arg13[%c0_8, %c0_9] : memref<36x64xf32, #tpu.memory_space<vmem>>, vector<36x64xf32>
    tpu.vector_store %arg13[%c0_8, %c0_9], %21 {strides = array<i32>} : memref<36x64xf32, #tpu.memory_space<vmem>>, vector<36x64xf32>,
    %c0_10 = arith.constant 0 : index
    %c0_11 = arith.constant 0 : index
    %23 = vector.load %arg13[%c0_10, %c0_11] : memref<36x64xf32, #tpu.memory_space<vmem>>, vector<22x64xf32>
    %24 = arith.truncf %23 : vector<22x64xf32> to vector<22x64xbf16>
    %c0_12 = arith.constant 0 : index
    %c0_13 = arith.constant 0 : index
    %c0_14 = arith.constant 0 : index
    %25 = vector.load %arg4[%c0_12, %c0_13, %c0_14] : memref<9x64x128xbf16, #tpu.memory_space<vmem>>, vector<1x64x128xbf16>
    %26 = vector.shape_cast %25 : vector<1x64x128xbf16> to vector<64x128xbf16>
    %cst_15 = arith.constant dense<0.000000e+00> : vector<22x128xf32>
    %27 = tpu.matmul %24, %26, %cst_15 {dimension_numbers = #tpu.dot_dimension_numbers<[1], [0], [0], [1], [0, 0, 1, 1], [], []>} : vector<22x64xbf16>, vector<64x128xbf16>, vector<22x128xf32> -> vector<22x128xf32>
    %c1 = arith.constant 1 : index
    %c0_16 = arith.constant 0 : index
    %28 = vector.load %arg13[%c1, %c0_16] : memref<36x64xf32, #tpu.memory_space<vmem>>, vector<22x64xf32>
    %29 = arith.truncf %28 : vector<22x64xf32> to vector<22x64xbf16>
    %c1_17 = arith.constant 1 : index
    %c0_18 = arith.constant 0 : index
    %c0_19 = arith.constant 0 : index
    %30 = vector.load %arg4[%c1_17, %c0_18, %c0_19] : memref<9x64x128xbf16, #tpu.memory_space<vmem>>, vector<1x64x128xbf16>
    %31 = vector.shape_cast %30 : vector<1x64x128xbf16> to vector<64x128xbf16>
    %cst_20 = arith.constant dense<0.000000e+00> : vector<22x128xf32>
    %32 = tpu.matmul %29, %31, %cst_20 {dimension_numbers = #tpu.dot_dimension_numbers<[1], [0], [0], [1], [0, 0, 1, 1], [], []>} : vector<22x64xbf16>, vector<64x128xbf16>, vector<22x128xf32> -> vector<22x128xf32>
    %33 = arith.addf %27, %32 : vector<22x128xf32>
    %c2 = arith.constant 2 : index
    %c0_21 = arith.constant 0 : index
    %34 = vector.load %arg13[%c2, %c0_21] : memref<36x64xf32, #tpu.memory_space<vmem>>, vector<22x64xf32>
    %35 = arith.truncf %34 : vector<22x64xf32> to vector<22x64xbf16>
    %c2_22 = arith.constant 2 : index
    %c0_23 = arith.constant 0 : index
    %c0_24 = arith.constant 0 : index
    %36 = vector.load %arg4[%c2_22, %c0_23, %c0_24] : memref<9x64x128xbf16, #tpu.memory_space<vmem>>, vector<1x64x128xbf16>
    %37 = vector.shape_cast %36 : vector<1x64x128xbf16> to vector<64x128xbf16>
    %cst_25 = arith.constant dense<0.000000e+00> : vector<22x128xf32>
    %38 = tpu.matmul %35, %37, %cst_25 {dimension_numbers = #tpu.dot_dimension_numbers<[1], [0], [0], [1], [0, 0, 1, 1], [], []>} : vector<22x64xbf16>, vector<64x128xbf16>, vector<22x128xf32> -> vector<22x128xf32>
    %39 = arith.addf %33, %38 : vector<22x128xf32>
    %c6 = arith.constant 6 : index
    %c0_26 = arith.constant 0 : index
    %40 = vector.load %arg13[%c6, %c0_26] : memref<36x64xf32, #tpu.memory_space<vmem>>, vector<22x64xf32>
    %41 = arith.truncf %40 : vector<22x64xf32> to vector<22x64xbf16>
    %c3 = arith.constant 3 : index
    %c0_27 = arith.constant 0 : index
    %c0_28 = arith.constant 0 : index
    %42 = vector.load %arg4[%c3, %c0_27, %c0_28] : memref<9x64x128xbf16, #tpu.memory_space<vmem>>, vector<1x64x128xbf16>
    %43 = vector.shape_cast %42 : vector<1x64x128xbf16> to vector<64x128xbf16>
    %cst_29 = arith.constant dense<0.000000e+00> : vector<22x128xf32>
    %44 = tpu.matmul %41, %43, %cst_29 {dimension_numbers = #tpu.dot_dimension_numbers<[1], [0], [0], [1], [0, 0, 1, 1], [], []>} : vector<22x64xbf16>, vector<64x128xbf16>, vector<22x128xf32> -> vector<22x128xf32>
    %45 = arith.addf %39, %44 : vector<22x128xf32>
    %c7 = arith.constant 7 : index
    %c0_30 = arith.constant 0 : index
    %46 = vector.load %arg13[%c7, %c0_30] : memref<36x64xf32, #tpu.memory_space<vmem>>, vector<22x64xf32>
    %47 = arith.truncf %46 : vector<22x64xf32> to vector<22x64xbf16>
    %c4 = arith.constant 4 : index
    %c0_31 = arith.constant 0 : index
    %c0_32 = arith.constant 0 : index
    %48 = vector.load %arg4[%c4, %c0_31, %c0_32] : memref<9x64x128xbf16, #tpu.memory_space<vmem>>, vector<1x64x128xbf16>
    %49 = vector.shape_cast %48 : vector<1x64x128xbf16> to vector<64x128xbf16>
    %cst_33 = arith.constant dense<0.000000e+00> : vector<22x128xf32>
    %50 = tpu.matmul %47, %49, %cst_33 {dimension_numbers = #tpu.dot_dimension_numbers<[1], [0], [0], [1], [0, 0, 1, 1], [], []>} : vector<22x64xbf16>, vector<64x128xbf16>, vector<22x128xf32> -> vector<22x128xf32>
    %51 = arith.addf %45, %50 : vector<22x128xf32>
    %c8 = arith.constant 8 : index
    %c0_34 = arith.constant 0 : index
    %52 = vector.load %arg13[%c8, %c0_34] : memref<36x64xf32, #tpu.memory_space<vmem>>, vector<22x64xf32>
    %53 = arith.truncf %52 : vector<22x64xf32> to vector<22x64xbf16>
    %c5 = arith.constant 5 : index
    %c0_35 = arith.constant 0 : index
    %c0_36 = arith.constant 0 : index
    %54 = vector.load %arg4[%c5, %c0_35, %c0_36] : memref<9x64x128xbf16, #tpu.memory_space<vmem>>, vector<1x64x128xbf16>
    %55 = vector.shape_cast %54 : vector<1x64x128xbf16> to vector<64x128xbf16>
    %cst_37 = arith.constant dense<0.000000e+00> : vector<22x128xf32>
    %56 = tpu.matmul %53, %55, %cst_37 {dimension_numbers = #tpu.dot_dimension_numbers<[1], [0], [0], [1], [0, 0, 1, 1], [], []>} : vector<22x64xbf16>, vector<64x128xbf16>, vector<22x128xf32> -> vector<22x128xf32>
    %57 = arith.addf %51, %56 : vector<22x128xf32>
    %c12 = arith.constant 12 : index
    %c0_38 = arith.constant 0 : index
    %58 = vector.load %arg13[%c12, %c0_38] : memref<36x64xf32, #tpu.memory_space<vmem>>, vector<22x64xf32>
    %59 = arith.truncf %58 : vector<22x64xf32> to vector<22x64xbf16>
    %c6_39 = arith.constant 6 : index
    %c0_40 = arith.constant 0 : index
    %c0_41 = arith.constant 0 : index
    %60 = vector.load %arg4[%c6_39, %c0_40, %c0_41] : memref<9x64x128xbf16, #tpu.memory_space<vmem>>, vector<1x64x128xbf16>
    %61 = vector.shape_cast %60 : vector<1x64x128xbf16> to vector<64x128xbf16>
    %cst_42 = arith.constant dense<0.000000e+00> : vector<22x128xf32>
    %62 = tpu.matmul %59, %61, %cst_42 {dimension_numbers = #tpu.dot_dimension_numbers<[1], [0], [0], [1], [0, 0, 1, 1], [], []>} : vector<22x64xbf16>, vector<64x128xbf16>, vector<22x128xf32> -> vector<22x128xf32>
    %63 = arith.addf %57, %62 : vector<22x128xf32>
    %c13 = arith.constant 13 : index
    %c0_43 = arith.constant 0 : index
    %64 = vector.load %arg13[%c13, %c0_43] : memref<36x64xf32, #tpu.memory_space<vmem>>, vector<22x64xf32>
    %65 = arith.truncf %64 : vector<22x64xf32> to vector<22x64xbf16>
    %c7_44 = arith.constant 7 : index
    %c0_45 = arith.constant 0 : index
    %c0_46 = arith.constant 0 : index
    %66 = vector.load %arg4[%c7_44, %c0_45, %c0_46] : memref<9x64x128xbf16, #tpu.memory_space<vmem>>, vector<1x64x128xbf16>
    %67 = vector.shape_cast %66 : vector<1x64x128xbf16> to vector<64x128xbf16>
    %cst_47 = arith.constant dense<0.000000e+00> : vector<22x128xf32>
    %68 = tpu.matmul %65, %67, %cst_47 {dimension_numbers = #tpu.dot_dimension_numbers<[1], [0], [0], [1], [0, 0, 1, 1], [], []>} : vector<22x64xbf16>, vector<64x128xbf16>, vector<22x128xf32> -> vector<22x128xf32>
    %69 = arith.addf %63, %68 : vector<22x128xf32>
    %c14 = arith.constant 14 : index
    %c0_48 = arith.constant 0 : index
    %70 = vector.load %arg13[%c14, %c0_48] : memref<36x64xf32, #tpu.memory_space<vmem>>, vector<22x64xf32>
    %71 = arith.truncf %70 : vector<22x64xf32> to vector<22x64xbf16>
    %c8_49 = arith.constant 8 : index
    %c0_50 = arith.constant 0 : index
    %c0_51 = arith.constant 0 : index
    %72 = vector.load %arg4[%c8_49, %c0_50, %c0_51] : memref<9x64x128xbf16, #tpu.memory_space<vmem>>, vector<1x64x128xbf16>
    %73 = vector.shape_cast %72 : vector<1x64x128xbf16> to vector<64x128xbf16>
    %cst_52 = arith.constant dense<0.000000e+00> : vector<22x128xf32>
    %74 = tpu.matmul %71, %73, %cst_52 {dimension_numbers = #tpu.dot_dimension_numbers<[1], [0], [0], [1], [0, 0, 1, 1], [], []>} : vector<22x64xbf16>, vector<64x128xbf16>, vector<22x128xf32> -> vector<22x128xf32>
    %75 = arith.addf %69, %74 : vector<22x128xf32>
    %c0_53 = arith.constant 0 : index
    %c0_54 = arith.constant 0 : index
    %76 = vector.load %arg5[%c0_53, %c0_54] : memref<1x128xf32, #tpu.memory_space<vmem>>, vector<1x128xf32>
    %77 = vector.broadcast %76 : vector<1x128xf32> to vector<22x128xf32>
    %78 = arith.addf %75, %77 : vector<22x128xf32>
    %cst_55 = arith.constant 0.000000e+00 : f32
    %79 = vector.broadcast %cst_55 : f32 to vector<22x128xf32>
    %80 = arith.maximumf %78, %79 : vector<22x128xf32>
    %cst_56 = arith.constant 0.000000e+00 : f32
    %81 = vector.broadcast %cst_56 : f32 to vector<5x128xf32>
    %cst_57 = arith.constant 0.000000e+00 : f32
    %82 = vector.broadcast %cst_57 : f32 to vector<2x128xf32>
    %83 = vector.extract_strided_slice %80 {offsets = [0, 0], sizes = [4, 128], strides = [1, 1]} : vector<22x128xf32> to vector<4x128xf32>
    %84 = vector.extract_strided_slice %80 {offsets = [6, 0], sizes = [4, 128], strides = [1, 1]} : vector<22x128xf32> to vector<4x128xf32>
    %85 = arith.maximumf %83, %84 : vector<4x128xf32>
    %86 = vector.extract_strided_slice %80 {offsets = [12, 0], sizes = [4, 128], strides = [1, 1]} : vector<22x128xf32> to vector<4x128xf32>
    %87 = vector.extract_strided_slice %80 {offsets = [18, 0], sizes = [4, 128], strides = [1, 1]} : vector<22x128xf32> to vector<4x128xf32>
    %88 = arith.maximumf %86, %87 : vector<4x128xf32>
    %89 = vector.extract_strided_slice %85 {offsets = [0, 0], sizes = [1, 128], strides = [1, 1]} : vector<4x128xf32> to vector<1x128xf32>
    %90 = vector.extract_strided_slice %85 {offsets = [1, 0], sizes = [1, 128], strides = [1, 1]} : vector<4x128xf32> to vector<1x128xf32>
    %91 = arith.maximumf %89, %90 : vector<1x128xf32>
    %92 = vector.extract_strided_slice %85 {offsets = [2, 0], sizes = [1, 128], strides = [1, 1]} : vector<4x128xf32> to vector<1x128xf32>
    %93 = vector.extract_strided_slice %85 {offsets = [3, 0], sizes = [1, 128], strides = [1, 1]} : vector<4x128xf32> to vector<1x128xf32>
    %94 = arith.maximumf %92, %93 : vector<1x128xf32>
    %95 = vector.extract_strided_slice %88 {offsets = [0, 0], sizes = [1, 128], strides = [1, 1]} : vector<4x128xf32> to vector<1x128xf32>
    %96 = vector.extract_strided_slice %88 {offsets = [1, 0], sizes = [1, 128], strides = [1, 1]} : vector<4x128xf32> to vector<1x128xf32>
    %97 = arith.maximumf %95, %96 : vector<1x128xf32>
    %98 = vector.extract_strided_slice %88 {offsets = [2, 0], sizes = [1, 128], strides = [1, 1]} : vector<4x128xf32> to vector<1x128xf32>
    %99 = vector.extract_strided_slice %88 {offsets = [3, 0], sizes = [1, 128], strides = [1, 1]} : vector<4x128xf32> to vector<1x128xf32>
    %100 = arith.maximumf %98, %99 : vector<1x128xf32>
    %101 = tpu.concatenate %81, %91, %94, %82, %97, %100, %81 in 0 : vector<5x128xf32>, vector<1x128xf32>, vector<1x128xf32>, vector<2x128xf32>, vector<1x128xf32>, vector<1x128xf32>, vector<5x128xf32> -> vector<16x128xf32>
    %c0_58 = arith.constant 0 : index
    %c0_59 = arith.constant 0 : index
    %102 = vector.load %arg14[%c0_58, %c0_59] : memref<16x128xf32, #tpu.memory_space<vmem>>, vector<16x128xf32>
    tpu.vector_store %arg14[%c0_58, %c0_59], %101 {strides = array<i32>} : memref<16x128xf32, #tpu.memory_space<vmem>>, vector<16x128xf32>,
    %c0_60 = arith.constant 0 : index
    %c0_61 = arith.constant 0 : index
    %103 = vector.load %arg14[%c0_60, %c0_61] : memref<16x128xf32, #tpu.memory_space<vmem>>, vector<6x128xf32>
    %104 = arith.truncf %103 : vector<6x128xf32> to vector<6x128xbf16>
    %c0_62 = arith.constant 0 : index
    %c0_63 = arith.constant 0 : index
    %c0_64 = arith.constant 0 : index
    %105 = vector.load %arg6[%c0_62, %c0_63, %c0_64] : memref<9x128x256xbf16, #tpu.memory_space<vmem>>, vector<1x128x256xbf16>
    %106 = vector.shape_cast %105 : vector<1x128x256xbf16> to vector<128x256xbf16>
    %cst_65 = arith.constant dense<0.000000e+00> : vector<6x256xf32>
    %107 = tpu.matmul %104, %106, %cst_65 {dimension_numbers = #tpu.dot_dimension_numbers<[1], [0], [0], [1], [0, 0, 1, 1], [], []>} : vector<6x128xbf16>, vector<128x256xbf16>, vector<6x256xf32> -> vector<6x256xf32>
    %c1_66 = arith.constant 1 : index
    %c0_67 = arith.constant 0 : index
    %108 = vector.load %arg14[%c1_66, %c0_67] : memref<16x128xf32, #tpu.memory_space<vmem>>, vector<6x128xf32>
    %109 = arith.truncf %108 : vector<6x128xf32> to vector<6x128xbf16>
    %c1_68 = arith.constant 1 : index
    %c0_69 = arith.constant 0 : index
    %c0_70 = arith.constant 0 : index
    %110 = vector.load %arg6[%c1_68, %c0_69, %c0_70] : memref<9x128x256xbf16, #tpu.memory_space<vmem>>, vector<1x128x256xbf16>
    %111 = vector.shape_cast %110 : vector<1x128x256xbf16> to vector<128x256xbf16>
    %cst_71 = arith.constant dense<0.000000e+00> : vector<6x256xf32>
    %112 = tpu.matmul %109, %111, %cst_71 {dimension_numbers = #tpu.dot_dimension_numbers<[1], [0], [0], [1], [0, 0, 1, 1], [], []>} : vector<6x128xbf16>, vector<128x256xbf16>, vector<6x256xf32> -> vector<6x256xf32>
    %113 = arith.addf %107, %112 : vector<6x256xf32>
    %c2_72 = arith.constant 2 : index
    %c0_73 = arith.constant 0 : index
    %114 = vector.load %arg14[%c2_72, %c0_73] : memref<16x128xf32, #tpu.memory_space<vmem>>, vector<6x128xf32>
    %115 = arith.truncf %114 : vector<6x128xf32> to vector<6x128xbf16>
    %c2_74 = arith.constant 2 : index
    %c0_75 = arith.constant 0 : index
    %c0_76 = arith.constant 0 : index
    %116 = vector.load %arg6[%c2_74, %c0_75, %c0_76] : memref<9x128x256xbf16, #tpu.memory_space<vmem>>, vector<1x128x256xbf16>
    %117 = vector.shape_cast %116 : vector<1x128x256xbf16> to vector<128x256xbf16>
    %cst_77 = arith.constant dense<0.000000e+00> : vector<6x256xf32>
    %118 = tpu.matmul %115, %117, %cst_77 {dimension_numbers = #tpu.dot_dimension_numbers<[1], [0], [0], [1], [0, 0, 1, 1], [], []>} : vector<6x128xbf16>, vector<128x256xbf16>, vector<6x256xf32> -> vector<6x256xf32>
    %119 = arith.addf %113, %118 : vector<6x256xf32>
    %c4_78 = arith.constant 4 : index
    %c0_79 = arith.constant 0 : index
    %120 = vector.load %arg14[%c4_78, %c0_79] : memref<16x128xf32, #tpu.memory_space<vmem>>, vector<6x128xf32>
    %121 = arith.truncf %120 : vector<6x128xf32> to vector<6x128xbf16>
    %c3_80 = arith.constant 3 : index
    %c0_81 = arith.constant 0 : index
    %c0_82 = arith.constant 0 : index
    %122 = vector.load %arg6[%c3_80, %c0_81, %c0_82] : memref<9x128x256xbf16, #tpu.memory_space<vmem>>, vector<1x128x256xbf16>
    %123 = vector.shape_cast %122 : vector<1x128x256xbf16> to vector<128x256xbf16>
    %cst_83 = arith.constant dense<0.000000e+00> : vector<6x256xf32>
    %124 = tpu.matmul %121, %123, %cst_83 {dimension_numbers = #tpu.dot_dimension_numbers<[1], [0], [0], [1], [0, 0, 1, 1], [], []>} : vector<6x128xbf16>, vector<128x256xbf16>, vector<6x256xf32> -> vector<6x256xf32>
    %125 = arith.addf %119, %124 : vector<6x256xf32>
    %c5_84 = arith.constant 5 : index
    %c0_85 = arith.constant 0 : index
    %126 = vector.load %arg14[%c5_84, %c0_85] : memref<16x128xf32, #tpu.memory_space<vmem>>, vector<6x128xf32>
    %127 = arith.truncf %126 : vector<6x128xf32> to vector<6x128xbf16>
    %c4_86 = arith.constant 4 : index
    %c0_87 = arith.constant 0 : index
    %c0_88 = arith.constant 0 : index
    %128 = vector.load %arg6[%c4_86, %c0_87, %c0_88] : memref<9x128x256xbf16, #tpu.memory_space<vmem>>, vector<1x128x256xbf16>
    %129 = vector.shape_cast %128 : vector<1x128x256xbf16> to vector<128x256xbf16>
    %cst_89 = arith.constant dense<0.000000e+00> : vector<6x256xf32>
    %130 = tpu.matmul %127, %129, %cst_89 {dimension_numbers = #tpu.dot_dimension_numbers<[1], [0], [0], [1], [0, 0, 1, 1], [], []>} : vector<6x128xbf16>, vector<128x256xbf16>, vector<6x256xf32> -> vector<6x256xf32>
    %131 = arith.addf %125, %130 : vector<6x256xf32>
    %c6_90 = arith.constant 6 : index
    %c0_91 = arith.constant 0 : index
    %132 = vector.load %arg14[%c6_90, %c0_91] : memref<16x128xf32, #tpu.memory_space<vmem>>, vector<6x128xf32>
    %133 = arith.truncf %132 : vector<6x128xf32> to vector<6x128xbf16>
    %c5_92 = arith.constant 5 : index
    %c0_93 = arith.constant 0 : index
    %c0_94 = arith.constant 0 : index
    %134 = vector.load %arg6[%c5_92, %c0_93, %c0_94] : memref<9x128x256xbf16, #tpu.memory_space<vmem>>, vector<1x128x256xbf16>
    %135 = vector.shape_cast %134 : vector<1x128x256xbf16> to vector<128x256xbf16>
    %cst_95 = arith.constant dense<0.000000e+00> : vector<6x256xf32>
    %136 = tpu.matmul %133, %135, %cst_95 {dimension_numbers = #tpu.dot_dimension_numbers<[1], [0], [0], [1], [0, 0, 1, 1], [], []>} : vector<6x128xbf16>, vector<128x256xbf16>, vector<6x256xf32> -> vector<6x256xf32>
    %137 = arith.addf %131, %136 : vector<6x256xf32>
    %c8_96 = arith.constant 8 : index
    %c0_97 = arith.constant 0 : index
    %138 = vector.load %arg14[%c8_96, %c0_97] : memref<16x128xf32, #tpu.memory_space<vmem>>, vector<6x128xf32>
    %139 = arith.truncf %138 : vector<6x128xf32> to vector<6x128xbf16>
    %c6_98 = arith.constant 6 : index
    %c0_99 = arith.constant 0 : index
    %c0_100 = arith.constant 0 : index
    %140 = vector.load %arg6[%c6_98, %c0_99, %c0_100] : memref<9x128x256xbf16, #tpu.memory_space<vmem>>, vector<1x128x256xbf16>
    %141 = vector.shape_cast %140 : vector<1x128x256xbf16> to vector<128x256xbf16>
    %cst_101 = arith.constant dense<0.000000e+00> : vector<6x256xf32>
    %142 = tpu.matmul %139, %141, %cst_101 {dimension_numbers = #tpu.dot_dimension_numbers<[1], [0], [0], [1], [0, 0, 1, 1], [], []>} : vector<6x128xbf16>, vector<128x256xbf16>, vector<6x256xf32> -> vector<6x256xf32>
    %143 = arith.addf %137, %142 : vector<6x256xf32>
    %c9 = arith.constant 9 : index
    %c0_102 = arith.constant 0 : index
    %144 = vector.load %arg14[%c9, %c0_102] : memref<16x128xf32, #tpu.memory_space<vmem>>, vector<6x128xf32>
    %145 = arith.truncf %144 : vector<6x128xf32> to vector<6x128xbf16>
    %c7_103 = arith.constant 7 : index
    %c0_104 = arith.constant 0 : index
    %c0_105 = arith.constant 0 : index
    %146 = vector.load %arg6[%c7_103, %c0_104, %c0_105] : memref<9x128x256xbf16, #tpu.memory_space<vmem>>, vector<1x128x256xbf16>
    %147 = vector.shape_cast %146 : vector<1x128x256xbf16> to vector<128x256xbf16>
    %cst_106 = arith.constant dense<0.000000e+00> : vector<6x256xf32>
    %148 = tpu.matmul %145, %147, %cst_106 {dimension_numbers = #tpu.dot_dimension_numbers<[1], [0], [0], [1], [0, 0, 1, 1], [], []>} : vector<6x128xbf16>, vector<128x256xbf16>, vector<6x256xf32> -> vector<6x256xf32>
    %149 = arith.addf %143, %148 : vector<6x256xf32>
    %c10 = arith.constant 10 : index
    %c0_107 = arith.constant 0 : index
    %150 = vector.load %arg14[%c10, %c0_107] : memref<16x128xf32, #tpu.memory_space<vmem>>, vector<6x128xf32>
    %151 = arith.truncf %150 : vector<6x128xf32> to vector<6x128xbf16>
    %c8_108 = arith.constant 8 : index
    %c0_109 = arith.constant 0 : index
    %c0_110 = arith.constant 0 : index
    %152 = vector.load %arg6[%c8_108, %c0_109, %c0_110] : memref<9x128x256xbf16, #tpu.memory_space<vmem>>, vector<1x128x256xbf16>
    %153 = vector.shape_cast %152 : vector<1x128x256xbf16> to vector<128x256xbf16>
    %cst_111 = arith.constant dense<0.000000e+00> : vector<6x256xf32>
    %154 = tpu.matmul %151, %153, %cst_111 {dimension_numbers = #tpu.dot_dimension_numbers<[1], [0], [0], [1], [0, 0, 1, 1], [], []>} : vector<6x128xbf16>, vector<128x256xbf16>, vector<6x256xf32> -> vector<6x256xf32>
    %155 = arith.addf %149, %154 : vector<6x256xf32>
    %c0_112 = arith.constant 0 : index
    %c0_113 = arith.constant 0 : index
    %156 = vector.load %arg7[%c0_112, %c0_113] : memref<1x256xf32, #tpu.memory_space<vmem>>, vector<1x256xf32>
    %157 = vector.broadcast %156 : vector<1x256xf32> to vector<6x256xf32>
    %158 = arith.addf %155, %157 : vector<6x256xf32>
    %cst_114 = arith.constant 0.000000e+00 : f32
    %159 = vector.broadcast %cst_114 : f32 to vector<6x256xf32>
    %160 = arith.maximumf %158, %159 : vector<6x256xf32>
    %161 = vector.extract_strided_slice %160 {offsets = [0, 0], sizes = [1, 256], strides = [1, 1]} : vector<6x256xf32> to vector<1x256xf32>
    %162 = vector.extract_strided_slice %160 {offsets = [1, 0], sizes = [1, 256], strides = [1, 1]} : vector<6x256xf32> to vector<1x256xf32>
    %163 = arith.maximumf %161, %162 : vector<1x256xf32>
    %164 = vector.extract_strided_slice %160 {offsets = [4, 0], sizes = [1, 256], strides = [1, 1]} : vector<6x256xf32> to vector<1x256xf32>
    %165 = vector.extract_strided_slice %160 {offsets = [5, 0], sizes = [1, 256], strides = [1, 1]} : vector<6x256xf32> to vector<1x256xf32>
    %166 = arith.maximumf %164, %165 : vector<1x256xf32>
    %167 = arith.maximumf %163, %166 : vector<1x256xf32>
    %168 = arith.truncf %167 : vector<1x256xf32> to vector<1x256xbf16>
    %c0_115 = arith.constant 0 : index
    %c0_116 = arith.constant 0 : index
    %169 = vector.load %arg8[%c0_115, %c0_116] : memref<256x512xbf16, #tpu.memory_space<vmem>>, vector<256x512xbf16>
    %cst_117 = arith.constant dense<0.000000e+00> : vector<1x512xf32>
    %170 = tpu.matmul %168, %169, %cst_117 {dimension_numbers = #tpu.dot_dimension_numbers<[1], [0], [0], [1], [0, 0, 1, 1], [], []>} : vector<1x256xbf16>, vector<256x512xbf16>, vector<1x512xf32> -> vector<1x512xf32>
    %c0_118 = arith.constant 0 : index
    %c0_119 = arith.constant 0 : index
    %171 = vector.load %arg9[%c0_118, %c0_119] : memref<1x512xf32, #tpu.memory_space<vmem>>, vector<1x512xf32>
    %172 = arith.addf %170, %171 : vector<1x512xf32>
    %cst_120 = arith.constant 0.000000e+00 : f32
    %173 = vector.broadcast %cst_120 : f32 to vector<1x512xf32>
    %174 = arith.maximumf %172, %173 : vector<1x512xf32>
    %175 = arith.truncf %174 : vector<1x512xf32> to vector<1x512xbf16>
    %c0_121 = arith.constant 0 : index
    %c0_122 = arith.constant 0 : index
    %176 = vector.load %arg10[%c0_121, %c0_122] : memref<512x128xbf16, #tpu.memory_space<vmem>>, vector<512x128xbf16>
    %cst_123 = arith.constant dense<0.000000e+00> : vector<1x128xf32>
    %177 = tpu.matmul %175, %176, %cst_123 {dimension_numbers = #tpu.dot_dimension_numbers<[1], [0], [0], [1], [0, 0, 1, 1], [], []>} : vector<1x512xbf16>, vector<512x128xbf16>, vector<1x128xf32> -> vector<1x128xf32>
    %c0_124 = arith.constant 0 : index
    %c0_125 = arith.constant 0 : index
    %178 = vector.load %arg11[%c0_124, %c0_125] : memref<1x128xf32, #tpu.memory_space<vmem>>, vector<1x128xf32>
    %179 = arith.addf %177, %178 : vector<1x128xf32>
    %c0_126 = arith.constant 0 : index
    %c0_127 = arith.constant 0 : index
    %c0_128 = arith.constant 0 : index
    %180 = vector.load %arg12[%c0_126, %c0_127, %c0_128] : memref<1x1x128xf32, #tpu.memory_space<vmem>>, vector<1x1x128xf32>
    %181 = vector.shape_cast %180 : vector<1x1x128xf32> to vector<1x128xf32>
    %182 = vector.shape_cast %179 : vector<1x128xf32> to vector<1x1x128xf32>
    tpu.vector_store %arg12[%c0_126, %c0_127, %c0_128], %182 {strides = array<i32>} : memref<1x1x128xf32, #tpu.memory_space<vmem>>, vector<1x1x128xf32>,
    return
  }
  func.func @transform_0(%arg0: i32) -> (i32, i32) {
    %c0_i32 = arith.constant 0 : i32
    %c0_i32_0 = arith.constant 0 : i32
    return %arg0, %c0_i32 : i32, i32
  }
  func.func @transform_1(%arg0: i32) -> (i32, i32) {
    %c0_i32 = arith.constant 0 : i32
    %c0_i32_0 = arith.constant 0 : i32
    %c0_i32_1 = arith.constant 0 : i32
    return %c0_i32, %c0_i32_0 : i32, i32
  }
  func.func @transform_2(%arg0: i32) -> (i32, i32) {
    %c0_i32 = arith.constant 0 : i32
    %c0_i32_0 = arith.constant 0 : i32
    %c0_i32_1 = arith.constant 0 : i32
    return %c0_i32, %c0_i32_0 : i32, i32
  }
  func.func @transform_3(%arg0: i32) -> (i32, i32, i32) {
    %c0_i32 = arith.constant 0 : i32
    %c0_i32_0 = arith.constant 0 : i32
    %c0_i32_1 = arith.constant 0 : i32
    %c0_i32_2 = arith.constant 0 : i32
    return %c0_i32, %c0_i32_0, %c0_i32_1 : i32, i32, i32
  }
  func.func @transform_4(%arg0: i32) -> (i32, i32) {
    %c0_i32 = arith.constant 0 : i32
    %c0_i32_0 = arith.constant 0 : i32
    %c0_i32_1 = arith.constant 0 : i32
    return %c0_i32, %c0_i32_0 : i32, i32
  }
  func.func @transform_5(%arg0: i32) -> (i32, i32, i32) {
    %c0_i32 = arith.constant 0 : i32
    %c0_i32_0 = arith.constant 0 : i32
    %c0_i32_1 = arith.constant 0 : i32
    %c0_i32_2 = arith.constant 0 : i32
    return %c0_i32, %c0_i32_0, %c0_i32_1 : i32, i32, i32
  }
  func.func @transform_6(%arg0: i32) -> (i32, i32) {
    %c0_i32 = arith.constant 0 : i32
    %c0_i32_0 = arith.constant 0 : i32
    %c0_i32_1 = arith.constant 0 : i32
    return %c0_i32, %c0_i32_0 : i32, i32
  }
  func.func @transform_7(%arg0: i32) -> (i32, i32) {
    %c0_i32 = arith.constant 0 : i32
    %c0_i32_0 = arith.constant 0 : i32
    %c0_i32_1 = arith.constant 0 : i32
    return %c0_i32, %c0_i32_0 : i32, i32
  }
  func.func @transform_8(%arg0: i32) -> (i32, i32) {
    %c0_i32 = arith.constant 0 : i32
    %c0_i32_0 = arith.constant 0 : i32
    %c0_i32_1 = arith.constant 0 : i32
    return %c0_i32, %c0_i32_0 : i32, i32
  }
  func.func @transform_9(%arg0: i32) -> (i32, i32) {
    %c0_i32 = arith.constant 0 : i32
    %c0_i32_0 = arith.constant 0 : i32
    %c0_i32_1 = arith.constant 0 : i32
    return %c0_i32, %c0_i32_0 : i32, i32
  }
  func.func @transform_10(%arg0: i32) -> (i32, i32) {
    %c0_i32 = arith.constant 0 : i32
    %c0_i32_0 = arith.constant 0 : i32
    %c0_i32_1 = arith.constant 0 : i32
    return %c0_i32, %c0_i32_0 : i32, i32
  }
  func.func @transform_11(%arg0: i32) -> (i32, i32, i32) {
    %c0_i32 = arith.constant 0 : i32
    %c0_i32_0 = arith.constant 0 : i32
    %c0_i32_1 = arith.constant 0 : i32
    return %arg0, %c0_i32, %c0_i32_0 : i32, i32, i32
  }
}

</mosaic_0001>

<llo_original>
// kernel: endgame_forward.1
$region0: #{endgame_forward.1}
  #allocation0 [shape = 'u32[]', space=smem, size = 0x4, offset = 0x4, fixed_abs, tag = 'smem constant byte address 0x4 - core index']
  #allocation1 [shape = 'u32[72,128]{1,0:T(1,128)}', space=vmem, size = 0x9000, scoped, tag = 'internal scratch']
  #allocation2 [shape = 'f32[36,64]{1,0:T(8,128)}', space=vmem, size = 0x5000, scoped, tag = 'scratch operand']
  #allocation3 [shape = 'f32[16,128]{1,0:T(8,128)}', space=vmem, size = 0x2000, scoped, tag = 'scratch operand']
  %s0 = inlined_call_operand.vmem [shape: bf16[128,128], index: 0, kind: input, shape index: {}]
  %s1 = inlined_call_operand.vmem [shape: bf16[128,64], index: 1, kind: input, shape index: {}]
  %s2 = inlined_call_operand.vmem [shape: f32[1,64], index: 2, kind: input, shape index: {}]
  %s3 = inlined_call_operand.vmem [shape: bf16[9,64,128], index: 3, kind: input, shape index: {}]
  %s4 = inlined_call_operand.vmem [shape: f32[1,128], index: 4, kind: input, shape index: {}]
  %s5 = inlined_call_operand.vmem [shape: bf16[9,128,256], index: 5, kind: input, shape index: {}]
  %s6 = inlined_call_operand.vmem [shape: f32[1,256], index: 6, kind: input, shape index: {}]
  %s7 = inlined_call_operand.vmem [shape: bf16[256,512], index: 7, kind: input, shape index: {}]
  %s8 = inlined_call_operand.vmem [shape: f32[1,512], index: 8, kind: input, shape index: {}]
  %s9 = inlined_call_operand.vmem [shape: bf16[512,128], index: 9, kind: input, shape index: {}]
  %s10 = inlined_call_operand.vmem [shape: f32[1,128], index: 10, kind: input, shape index: {}]
  %s11 = inlined_call_operand.hbm [shape: f32[2,1,128], index: 11, kind: output, shape index: {}]
  %s12 = sld [smem:[#allocation0]]
  $region77: #{endgame_forward.1} parent=0
    _
  %s14 = ssub.s32 1, %s12
  %s15 = scalar_select 0, %s14, %s12
  $region1: #{endgame_forward.1} parent=0
    #allocation4 [shape = 'u8[1024]{0}', space=vmem, size = 0x400, scoped, tag = 'output window, operand 0']
    #allocation5 [shape = 's32[2]{0}', space=sflag, size = 0x8, scoped, tag = 'scoped memory for endgame_forward.1']
    %16 = vsyncpa [#allocation5], 0
    %s17 = scalar_lea.sflag [#allocation5], 1
    %18 = vsyncpa %s17, 0
    loop: start=0, step=1, limit=4
    $region2: #{endgame_forward.1} parent=1 // loop_pre_header
      _
    $region3: #{endgame_forward.1} parent=1 // loop_header
      %s20 = sphi 0, %s24
      %p21 = scmp.ge.s32.totalorder %s20, 4
      %s30 = sphi 0, %s32
      %s33 = sphi 0, %s30
      %s34 = sphi 0, %s33
      %s50 = sphi 0, %s34
      %s54 = sphi 0, %s54
      %s56 = sphi 0, %s54
      %s57 = sphi 0, %s56
      %s71 = sphi 0, %s57
      %s75 = sphi 0, %s75
      %s77 = sphi 0, %s75
      %s78 = sphi 0, %s77
      %s92 = sphi 0, %s78
      %s96 = sphi 0, %s96
      %s98 = sphi 0, %s96
      %s99 = sphi 0, %s98
      %s113 = sphi 0, %s99
      %s117 = sphi 0, %s117
      %s119 = sphi 0, %s117
      %s120 = sphi 0, %s119
      %s134 = sphi 0, %s120
      %s138 = sphi 0, %s138
      %s140 = sphi 0, %s138
      %s141 = sphi 0, %s140
      %s155 = sphi 0, %s141
      %s159 = sphi 0, %s159
      %s161 = sphi 0, %s159
      %s162 = sphi 0, %s161
      %s176 = sphi 0, %s162
      %s180 = sphi 0, %s180
      %s182 = sphi 0, %s180
      %s183 = sphi 0, %s182
      %s197 = sphi 0, %s183
      %s201 = sphi 0, %s201
      %s203 = sphi 0, %s201
      %s204 = sphi 0, %s203
      %s218 = sphi 0, %s204
      %s222 = sphi 0, %s222
      %s224 = sphi 0, %s222
      %s225 = sphi 0, %s224
      %s239 = sphi 0, %s225
      %s243 = sphi 0, %s243
      %s245 = sphi 0, %s243
      %s246 = sphi 0, %s245
      %s260 = sphi 0, %s246
      %s266 = sphi 0, %s268
      %s269 = sphi 0, %s266
      %s270 = sphi 0, %s269
      %s286 = sphi 0, %s270
    $region4: #{endgame_forward.1} parent=1 // loop_header_branch
      %23 = sbr.rel (%p21) target = $region8
    $region5: #{endgame_forward.1} parent=1 // loop_body
      %s25 = ssub.s32 %s20, 1
      %s26 = ssub.s32 %s20, 2
      %s27 = sadd.s32 %s20, 1
      %s28 = ssub.s32 %s20, %s27
      %p29 = scmp.eq.s32.totalorder %s28, 0
      %s31 = sadd.s32 %s30, 1
      %s32 = scalar_select %p29, %s30, %s31
      %p35 = pneg %p29
      %p36 = scmp.eq.s32.totalorder %s20, 1
      %p37 = por %p35, %p36
      %p38 = scmp.ne.s32.totalorder %s30, %s33
      %p39 = scmp.eq.s32.totalorder %s20, 0
      %p40 = por %p38, %p39
      %p41 = scmp.ne.s32.totalorder %s30, %s33
      %p42 = scmp.eq.s32.totalorder %s25, 1
      %p43 = por %p41, %p42
      %p44 = scmp.ne.s32.totalorder %s33, %s34
      %p45 = scmp.eq.s32.totalorder %s25, 0
      %p46 = por %p44, %p45
      %p47 = scmp.ne.s32.totalorder %s33, %s34
      %p48 = scmp.eq.s32.totalorder %s26, 1
      %p49 = por %p47, %p48
      %p51 = scmp.ne.s32.totalorder %s34, %s50
      %p52 = scmp.eq.s32.totalorder %s26, 0
      %p53 = por %p51, %p52
      %s55 = sadd.s32 %s54, 1
      %p58 = scmp.eq.s32.totalorder %s20, 1
      %p59 = scmp.ne.s32.totalorder %s54, %s56
      %p60 = scmp.eq.s32.totalorder %s20, 0
      %p61 = por %p59, %p60
      %p62 = scmp.ne.s32.totalorder %s54, %s56
      %p63 = scmp.eq.s32.totalorder %s25, 1
      %p64 = por %p62, %p63
      %p65 = scmp.ne.s32.totalorder %s56, %s57
      %p66 = scmp.eq.s32.totalorder %s25, 0
      %p67 = por %p65, %p66
      %p68 = scmp.ne.s32.totalorder %s56, %s57
      %p69 = scmp.eq.s32.totalorder %s26, 1
      %p70 = por %p68, %p69
      %p72 = scmp.ne.s32.totalorder %s57, %s71
      %p73 = scmp.eq.s32.totalorder %s26, 0
      %p74 = por %p72, %p73
      %s76 = sadd.s32 %s75, 1
      %p79 = scmp.eq.s32.totalorder %s20, 1
      %p80 = scmp.ne.s32.totalorder %s75, %s77
      %p81 = scmp.eq.s32.totalorder %s20, 0
      %p82 = por %p80, %p81
      %p83 = scmp.ne.s32.totalorder %s75, %s77
      %p84 = scmp.eq.s32.totalorder %s25, 1
      %p85 = por %p83, %p84
      %p86 = scmp.ne.s32.totalorder %s77, %s78
      %p87 = scmp.eq.s32.totalorder %s25, 0
      %p88 = por %p86, %p87
      %p89 = scmp.ne.s32.totalorder %s77, %s78
      %p90 = scmp.eq.s32.totalorder %s26, 1
      %p91 = por %p89, %p90
      %p93 = scmp.ne.s32.totalorder %s78, %s92
      %p94 = scmp.eq.s32.totalorder %s26, 0
      %p95 = por %p93, %p94
      %s97 = sadd.s32 %s96, 1
      %p100 = scmp.eq.s32.totalorder %s20, 1
      %p101 = scmp.ne.s32.totalorder %s96, %s98
      %p102 = scmp.eq.s32.totalorder %s20, 0
      %p103 = por %p101, %p102
      %p104 = scmp.ne.s32.totalorder %s96, %s98
      %p105 = scmp.eq.s32.totalorder %s25, 1
      %p106 = por %p104, %p105
      %p107 = scmp.ne.s32.totalorder %s98, %s99
      %p108 = scmp.eq.s32.totalorder %s25, 0
      %p109 = por %p107, %p108
      %p110 = scmp.ne.s32.totalorder %s98, %s99
      %p111 = scmp.eq.s32.totalorder %s26, 1
      %p112 = por %p110, %p111
      %p114 = scmp.ne.s32.totalorder %s99, %s113
      %p115 = scmp.eq.s32.totalorder %s26, 0
      %p116 = por %p114, %p115
      %s118 = sadd.s32 %s117, 1
      %p121 = scmp.eq.s32.totalorder %s20, 1
      %p122 = scmp.ne.s32.totalorder %s117, %s119
      %p123 = scmp.eq.s32.totalorder %s20, 0
      %p124 = por %p122, %p123
      %p125 = scmp.ne.s32.totalorder %s117, %s119
      %p126 = scmp.eq.s32.totalorder %s25, 1
      %p127 = por %p125, %p126
      %p128 = scmp.ne.s32.totalorder %s119, %s120
      %p129 = scmp.eq.s32.totalorder %s25, 0
      %p130 = por %p128, %p129
      %p131 = scmp.ne.s32.totalorder %s119, %s120
      %p132 = scmp.eq.s32.totalorder %s26, 1
      %p133 = por %p131, %p132
      %p135 = scmp.ne.s32.totalorder %s120, %s134
      %p136 = scmp.eq.s32.totalorder %s26, 0
      %p137 = por %p135, %p136
      %s139 = sadd.s32 %s138, 1
      %p142 = scmp.eq.s32.totalorder %s20, 1
      %p143 = scmp.ne.s32.totalorder %s138, %s140
      %p144 = scmp.eq.s32.totalorder %s20, 0
      %p145 = por %p143, %p144
      %p146 = scmp.ne.s32.totalorder %s138, %s140
      %p147 = scmp.eq.s32.totalorder %s25, 1
      %p148 = por %p146, %p147
      %p149 = scmp.ne.s32.totalorder %s140, %s141
      %p150 = scmp.eq.s32.totalorder %s25, 0
      %p151 = por %p149, %p150
      %p152 = scmp.ne.s32.totalorder %s140, %s141
      %p153 = scmp.eq.s32.totalorder %s26, 1
      %p154 = por %p152, %p153
      %p156 = scmp.ne.s32.totalorder %s141, %s155
      %p157 = scmp.eq.s32.totalorder %s26, 0
      %p158 = por %p156, %p157
      %s160 = sadd.s32 %s159, 1
      %p163 = scmp.eq.s32.totalorder %s20, 1
      %p164 = scmp.ne.s32.totalorder %s159, %s161
      %p165 = scmp.eq.s32.totalorder %s20, 0
      %p166 = por %p164, %p165
      %p167 = scmp.ne.s32.totalorder %s159, %s161
      %p168 = scmp.eq.s32.totalorder %s25, 1
      %p169 = por %p167, %p168
      %p170 = scmp.ne.s32.totalorder %s161, %s162
      %p171 = scmp.eq.s32.totalorder %s25, 0
      %p172 = por %p170, %p171
      %p173 = scmp.ne.s32.totalorder %s161, %s162
      %p174 = scmp.eq.s32.totalorder %s26, 1
      %p175 = por %p173, %p174
      %p177 = scmp.ne.s32.totalorder %s162, %s176
      %p178 = scmp.eq.s32.totalorder %s26, 0
      %p179 = por %p177, %p178
      %s181 = sadd.s32 %s180, 1
      %p184 = scmp.eq.s32.totalorder %s20, 1
      %p185 = scmp.ne.s32.totalorder %s180, %s182
      %p186 = scmp.eq.s32.totalorder %s20, 0
      %p187 = por %p185, %p186
      %p188 = scmp.ne.s32.totalorder %s180, %s182
      %p189 = scmp.eq.s32.totalorder %s25, 1
      %p190 = por %p188, %p189
      %p191 = scmp.ne.s32.totalorder %s182, %s183
      %p192 = scmp.eq.s32.totalorder %s25, 0
      %p193 = por %p191, %p192
      %p194 = scmp.ne.s32.totalorder %s182, %s183
      %p195 = scmp.eq.s32.totalorder %s26, 1
      %p196 = por %p194, %p195
      %p198 = scmp.ne.s32.totalorder %s183, %s197
      %p199 = scmp.eq.s32.totalorder %s26, 0
      %p200 = por %p198, %p199
      %s202 = sadd.s32 %s201, 1
      %p205 = scmp.eq.s32.totalorder %s20, 1
      %p206 = scmp.ne.s32.totalorder %s201, %s203
      %p207 = scmp.eq.s32.totalorder %s20, 0
      %p208 = por %p206, %p207
      %p209 = scmp.ne.s32.totalorder %s201, %s203
      %p210 = scmp.eq.s32.totalorder %s25, 1
      %p211 = por %p209, %p210
      %p212 = scmp.ne.s32.totalorder %s203, %s204
      %p213 = scmp.eq.s32.totalorder %s25, 0
      %p214 = por %p212, %p213
      %p215 = scmp.ne.s32.totalorder %s203, %s204
      %p216 = scmp.eq.s32.totalorder %s26, 1
      %p217 = por %p215, %p216
      %p219 = scmp.ne.s32.totalorder %s204, %s218
      %p220 = scmp.eq.s32.totalorder %s26, 0
      %p221 = por %p219, %p220
      %s223 = sadd.s32 %s222, 1
      %p226 = scmp.eq.s32.totalorder %s20, 1
      %p227 = scmp.ne.s32.totalorder %s222, %s224
      %p228 = scmp.eq.s32.totalorder %s20, 0
      %p229 = por %p227, %p228
      %p230 = scmp.ne.s32.totalorder %s222, %s224
      %p231 = scmp.eq.s32.totalorder %s25, 1
      %p232 = por %p230, %p231
      %p233 = scmp.ne.s32.totalorder %s224, %s225
      %p234 = scmp.eq.s32.totalorder %s25, 0
      %p235 = por %p233, %p234
      %p236 = scmp.ne.s32.totalorder %s224, %s225
      %p237 = scmp.eq.s32.totalorder %s26, 1
      %p238 = por %p236, %p237
      %p240 = scmp.ne.s32.totalorder %s225, %s239
      %p241 = scmp.eq.s32.totalorder %s26, 0
      %p242 = por %p240, %p241
      %s244 = sadd.s32 %s243, 1
      %p247 = scmp.eq.s32.totalorder %s20, 1
      %p248 = scmp.ne.s32.totalorder %s243, %s245
      %p249 = scmp.eq.s32.totalorder %s20, 0
      %p250 = por %p248, %p249
      %p251 = scmp.ne.s32.totalorder %s243, %s245
      %p252 = scmp.eq.s32.totalorder %s25, 1
      %p253 = por %p251, %p252
      %p254 = scmp.ne.s32.totalorder %s245, %s246
      %p255 = scmp.eq.s32.totalorder %s25, 0
      %p256 = por %p254, %p255
      %p257 = scmp.ne.s32.totalorder %s245, %s246
      %p258 = scmp.eq.s32.totalorder %s26, 1
      %p259 = por %p257, %p258
      %p261 = scmp.ne.s32.totalorder %s246, %s260
      %p262 = scmp.eq.s32.totalorder %s26, 0
      %p263 = por %p261, %p262
      %s264 = ssub.s32 %s20, %s27
      %p265 = scmp.eq.s32.totalorder %s264, 0
      %s267 = sadd.s32 %s266, 1
      %s268 = scalar_select %p265, %s266, %s267
      %p271 = pneg %p265
      %p272 = scmp.eq.s32.totalorder %s20, 1
      %p273 = por %p271, %p272
      %p274 = scmp.ne.s32.totalorder %s266, %s269
      %p275 = scmp.eq.s32.totalorder %s20, 0
      %p276 = por %p274, %p275
      %p277 = scmp.ne.s32.totalorder %s266, %s269
      %p278 = scmp.eq.s32.totalorder %s25, 1
      %p279 = por %p277, %p278
      %p280 = scmp.ne.s32.totalorder %s269, %s270
      %p281 = scmp.eq.s32.totalorder %s25, 0
      %p282 = por %p280, %p281
      %p283 = scmp.ne.s32.totalorder %s269, %s270
      %p284 = scmp.eq.s32.totalorder %s26, 1
      %p285 = por %p283, %p284
      %p287 = scmp.ne.s32.totalorder %s270, %s286
      %p288 = scmp.eq.s32.totalorder %s26, 0
      %p289 = por %p287, %p288
      %p290 = scmp.le.s32.totalorder 1, %s20
      %p291 = scmp.lt.s32.totalorder %s20, 3
      %p292 = pnand %p290, %p291
      %p293 = pneg %p292
      // Predicated region
      $region9: #{endgame_forward.1} parent=5 // pred_check
        _
      $region10: #{endgame_forward.1} parent=5 // pred_check_branch
        %295 = sbr.rel (%p292) target = $region12
      $region11: #{endgame_forward.1} parent=5 // pred_region
        %s296 = ssub.s32 %s20, 1
        // Predicated region
        $region13: #{endgame_forward.1} parent=11 // pred_check
          %p297 = pneg %p67
        $region14: #{endgame_forward.1} parent=11 // pred_check_branch
          %299 = sbr.rel (%p297) target = $region16
        $region15: #{endgame_forward.1} parent=11 // pred_region
          _
        $region16: #{endgame_forward.1} parent=11 // pred_fallthru
          _
        // Predicated region
        $region17: #{endgame_forward.1} parent=11 // pred_check
          %p300 = pneg %p88
        $region18: #{endgame_forward.1} parent=11 // pred_check_branch
          %302 = sbr.rel (%p300) target = $region20
        $region19: #{endgame_forward.1} parent=11 // pred_region
          _
        $region20: #{endgame_forward.1} parent=11 // pred_fallthru
          _
        // Predicated region
        $region21: #{endgame_forward.1} parent=11 // pred_check
          %p303 = pneg %p109
        $region22: #{endgame_forward.1} parent=11 // pred_check_branch
          %305 = sbr.rel (%p303) target = $region24
        $region23: #{endgame_forward.1} parent=11 // pred_region
          _
        $region24: #{endgame_forward.1} parent=11 // pred_fallthru
          _
        // Predicated region
        $region25: #{endgame_forward.1} parent=11 // pred_check
          %p306 = pneg %p130
        $region26: #{endgame_forward.1} parent=11 // pred_check_branch
          %308 = sbr.rel (%p306) target = $region28
        $region27: #{endgame_forward.1} parent=11 // pred_region
          _
        $region28: #{endgame_forward.1} parent=11 // pred_fallthru
          _
        // Predicated region
        $region29: #{endgame_forward.1} parent=11 // pred_check
          %p309 = pneg %p151
        $region30: #{endgame_forward.1} parent=11 // pred_check_branch
          %311 = sbr.rel (%p309) target = $region32
        $region31: #{endgame_forward.1} parent=11 // pred_region
          _
        $region32: #{endgame_forward.1} parent=11 // pred_fallthru
          _
        // Predicated region
        $region33: #{endgame_forward.1} parent=11 // pred_check
          %p312 = pneg %p172
        $region34: #{endgame_forward.1} parent=11 // pred_check_branch
          %314 = sbr.rel (%p312) target = $region36
        $region35: #{endgame_forward.1} parent=11 // pred_region
          _
        $region36: #{endgame_forward.1} parent=11 // pred_fallthru
          _
        // Predicated region
        $region37: #{endgame_forward.1} parent=11 // pred_check
          %p315 = pneg %p193
        $region38: #{endgame_forward.1} parent=11 // pred_check_branch
          %317 = sbr.rel (%p315) target = $region40
        $region39: #{endgame_forward.1} parent=11 // pred_region
          _
        $region40: #{endgame_forward.1} parent=11 // pred_fallthru
          _
        // Predicated region
        $region41: #{endgame_forward.1} parent=11 // pred_check
          %p318 = pneg %p214
        $region42: #{endgame_forward.1} parent=11 // pred_check_branch
          %320 = sbr.rel (%p318) target = $region44
        $region43: #{endgame_forward.1} parent=11 // pred_region
          _
        $region44: #{endgame_forward.1} parent=11 // pred_fallthru
          _
        // Predicated region
        $region45: #{endgame_forward.1} parent=11 // pred_check
          %p321 = pneg %p235
        $region46: #{endgame_forward.1} parent=11 // pred_check_branch
          %323 = sbr.rel (%p321) target = $region48
        $region47: #{endgame_forward.1} parent=11 // pred_region
          _
        $region48: #{endgame_forward.1} parent=11 // pred_fallthru
          _
        // Predicated region
        $region49: #{endgame_forward.1} parent=11 // pred_check
          %p324 = pneg %p256
        $region50: #{endgame_forward.1} parent=11 // pred_check_branch
          %326 = sbr.rel (%p324) target = $region52
        $region51: #{endgame_forward.1} parent=11 // pred_region
          _
        $region52: #{endgame_forward.1} parent=11 // pred_fallthru
          _
      $region12: #{endgame_forward.1} parent=5 // pred_fallthru
        _
      %p327 = scmp.lt.s32.totalorder %s20, 2
      // Predicated region
      $region53: #{endgame_forward.1} parent=5 // pred_check
        %p328 = pneg %p327
      $region54: #{endgame_forward.1} parent=5 // pred_check_branch
        %330 = sbr.rel (%p328) target = $region56
      $region55: #{endgame_forward.1} parent=5 // pred_region
        // Predicated region
        $region57: #{endgame_forward.1} parent=55 // pred_check
          %p331 = pneg %p40
        $region58: #{endgame_forward.1} parent=55 // pred_check_branch
          %333 = sbr.rel (%p331) target = $region60
        $region59: #{endgame_forward.1} parent=55 // pred_region
          %s334 = smul.u32 8, %s20
          %p335 = scmp.lt.s32.totalorder %s334, 15
          %s336 = scalar_select %p335, %s334, 15
          %s337 = smul.addr %s336, 4
          %s338 = scalar_lea.vmem %s0, %s337
          %s339 = smul.u32 8, %s20
        $region60: #{endgame_forward.1} parent=55 // pred_fallthru
          _
      $region56: #{endgame_forward.1} parent=5 // pred_fallthru
        _
      %p340 = scmp.le.s32.totalorder 1, %s20
      %p341 = scmp.lt.s32.totalorder %s20, 3
      %p342 = pnand %p340, %p341
      %p343 = pneg %p342
      // Predicated region
      $region61: #{endgame_forward.1} parent=5 // pred_check
        _
      $region62: #{endgame_forward.1} parent=5 // pred_check_branch
        %345 = sbr.rel (%p342) target = $region64
      $region63: #{endgame_forward.1} parent=5 // pred_region
        %s346 = ssub.s32 %s20, 1
        %s347 = smul.u32 8, %s25
        %p348 = scmp.lt.s32.totalorder %s347, 15
        %s349 = scalar_select %p348, %s347, 15
        %s350 = smul.addr %s349, 4
        %s351 = scalar_lea.vmem %s0, %s350
        %p352 = pneg %p46
        %p353 = pneg %p43
        %p354 = pneg %p67
        %p355 = pneg %p64
        %p356 = pneg %p88
        %p357 = pneg %p85
        %p358 = pneg %p109
        %p359 = pneg %p106
        %p360 = pneg %p130
        %p361 = pneg %p127
        %p362 = pneg %p151
        %p363 = pneg %p148
        %p364 = pneg %p172
        %p365 = pneg %p169
        %p366 = pneg %p193
        %p367 = pneg %p190
        %p368 = pneg %p214
        %p369 = pneg %p211
        %p370 = pneg %p235
        %p371 = pneg %p232
        %p372 = pneg %p256
        %p373 = pneg %p253
        %p374 = pneg %p282
        %p375 = pneg %p279
        %s376 = sand.u32 %s269, 1
        %s377 = scalar_lea.sflag [#allocation5], %s376
        %s378 = sand.u32 %s269, 1
        %s379 = scalar_lea.vmem [#allocation4], %s378
        %s380 = smul.u32 8, %s25
        %p381 = scmp.lt.s32.totalorder %s380, 15
        %s382 = scalar_select %p381, %s380, 15
        %s383 = smul.addr %s382, 4
        %s384 = scalar_lea.vmem %s0, %s383
        %s385 = smul.u32 8, %s25
        %v387 = vld [vmem:[%s384] sm:$0xf]
        %v388 = vld [vmem:[%s384 + $0x4] sm:$0xf]
        %v389 = vld [vmem:[%s384 + $0x8] sm:$0xf]
        %v390 = vld [vmem:[%s384 + $0xc] sm:$0xf]
        %v391 = vld [vmem:[%s384 + $0x10] sm:$0xf]
        %v392 = vld [vmem:[%s384 + $0x14] sm:$0xf]
        %v393 = vld [vmem:[%s384 + $0x18] sm:$0xf]
        %v394 = vld [vmem:[%s384 + $0x1c] sm:$0xf]
        %v395 = vld [vmem:[%s1] sm:$0xf]
        %v396 = vld [vmem:[%s1 + $0x4] sm:$0xf]
        %v397 = vld [vmem:[%s1 + $0x8] sm:$0xf]
        %v398 = vld [vmem:[%s1 + $0xc] sm:$0xf]
        %v399 = vld [vmem:[%s1 + $0x10] sm:$0xf]
        %v400 = vld [vmem:[%s1 + $0x14] sm:$0xf]
        %v401 = vld [vmem:[%s1 + $0x18] sm:$0xf]
        %v402 = vld [vmem:[%s1 + $0x1c] sm:$0xf]
        %v403 = vld [vmem:[%s1 + $0x20] sm:$0xf]
        %v404 = vld [vmem:[%s1 + $0x24] sm:$0xf]
        %v405 = vld [vmem:[%s1 + $0x28] sm:$0xf]
        %v406 = vld [vmem:[%s1 + $0x2c] sm:$0xf]
        %v407 = vld [vmem:[%s1 + $0x30] sm:$0xf]
        %v408 = vld [vmem:[%s1 + $0x34] sm:$0xf]
        %v409 = vld [vmem:[%s1 + $0x38] sm:$0xf]
        %v410 = vld [vmem:[%s1 + $0x3c] sm:$0xf]
        %v411 = vld [vmem:[%s2] sm:$0x1]
        %v413 = vperm.slane %v411, 0
        %v423 = vunpack.c.l.b16 %v387
        %v424 = vunpack.c.l.b16 %v388
        %v425 = vunpack.c.l.b16 %v389
        %v426 = vunpack.c.l.b16 %v390
        %v427 = vunpack.c.l.b16 %v391
        %v428 = vunpack.c.l.b16 %v392
        %v429 = vunpack.c.l.b16 %v393
        %v430 = vunpack.c.l.b16 %v394
        %v431 = vpack.c.b16 %v424, %v423
        %v432 = vpack.c.b16 %v426, %v425
        %v433 = vpack.c.b16 %v428, %v427
        %v434 = vpack.c.b16 %v430, %v429
        %v455 = vunpack.c.l.b16 %v395
        %v456 = vunpack.c.l.b16 %v396
        %v457 = vunpack.c.l.b16 %v397
        %v458 = vunpack.c.l.b16 %v398
        %v459 = vunpack.c.l.b16 %v399
        %v460 = vunpack.c.l.b16 %v400
        %v461 = vunpack.c.l.b16 %v401
        %v462 = vunpack.c.l.b16 %v402
        %v463 = vunpack.c.l.b16 %v403
        %v464 = vunpack.c.l.b16 %v404
        %v465 = vunpack.c.l.b16 %v405
        %v466 = vunpack.c.l.b16 %v406
        %v467 = vunpack.c.l.b16 %v407
        %v468 = vunpack.c.l.b16 %v408
        %v469 = vunpack.c.l.b16 %v409
        %v470 = vunpack.c.l.b16 %v410
        %v471 = vpack.c.b16 %v456, %v455
        %v472 = vpack.c.b16 %v458, %v457
        %v473 = vpack.c.b16 %v460, %v459
        %v474 = vpack.c.b16 %v462, %v461
        %v475 = vpack.c.b16 %v464, %v463
        %v476 = vpack.c.b16 %v466, %v465
        %v477 = vpack.c.b16 %v468, %v467
        %v478 = vpack.c.b16 %v470, %v469
        %487 = vmatpush.bf16.msra.mxu0 %v478
        %488 = vmatpush.bf16.msra.mxu0 %v477
        %489 = vmatpush.bf16.msra.mxu0 %v476
        %490 = vmatpush.bf16.msra.mxu0 %v475
        %491 = vmatpush.bf16.msra.mxu0 %v474
        %492 = vmatpush.bf16.msra.mxu0 %v473
        %493 = vmatpush.bf16.msra.mxu0 %v472
        %494 = vmatpush.bf16.msra.mxu0 %v471
        %495 = vmatmul.bf16.gmra.mxu0 %v431
        %v496 = vpop.f32.mrf.mxu0
        %v497 = vadd.f32 %v413, %v496
        %v498 = vpop.f32.mrf.mxu0
        %v499 = vadd.f32 %v413, %v498
        %500 = vmatmul.bf16.gmra.mxu0 %v432
        %v501 = vpop.f32.mrf.mxu0
        %v502 = vadd.f32 %v413, %v501
        %v503 = vpop.f32.mrf.mxu0
        %v504 = vadd.f32 %v413, %v503
        %505 = vmatmul.bf16.gmra.mxu0 %v433
        %v506 = vpop.f32.mrf.mxu0
        %v507 = vadd.f32 %v413, %v506
        %v508 = vpop.f32.mrf.mxu0
        %v509 = vadd.f32 %v413, %v508
        %510 = vmatmul.bf16.gmra.mxu0 %v434
        %v511 = vpop.f32.mrf.mxu0
        %v512 = vadd.f32 %v413, %v511
        %v513 = vpop.f32.mrf.mxu0
        %v514 = vadd.f32 %v413, %v513
        %515 = vdwg.mxu0
        %v516 = vmax.f32 %v497, 0.0
        %v517 = vmax.f32 %v499, 0.0
        %v518 = vmax.f32 %v502, 0.0
        %v519 = vmax.f32 %v504, 0.0
        %v520 = vmax.f32 %v507, 0.0
        %v521 = vmax.f32 %v509, 0.0
        %v522 = vmax.f32 %v512, 0.0
        %v523 = vmax.f32 %v514, 0.0
        %v524 = vmax.f32 %v516, %v518
        %v525 = vmax.f32 %v517, %v519
        %v526 = vmax.f32 %v520, %v522
        %v527 = vmax.f32 %v521, %v523
        %v528 = vmax.f32 %v524, %v526
        %v529 = vmax.f32 %v525, %v527
        %v531 = vrot.slane %v528, 1
        %v533 = vrot.slane %v528, 7
        %v536 = vrot.slane %v529, 5
        %v538 = vrot.slane %v529, 3
        %vm540 = vcmask 1046528
        %v541 = vsel %vm540, 0.0, %v531
        %vm542 = vcmask 1042432
        %v543 = vsel %vm542, %v531, 0.0
        %vm544 = vcmask 1044480
        %v545 = vsel %vm544, %v543, %v533
        %vm546 = vcmask 1040384
        %v547 = vsel %vm546, %v533, 0.0
        %v548 = vsel %vm542, %v547, %v536
        %v549 = vsel %vm540, %v548, 0.0
        %v550 = vsel %vm546, 0.0, %v538
        %v551 = vsel %vm544, %v550, 0.0
        %vm552 = vcmask 523264
        %553 = vst.msk [vmem:[#allocation2] sm:$0xff] %vm552, %v541
        %554 = vst.msk [vmem:[#allocation2 + $0x8] sm:$0xff] %vm552, %v545
        %555 = vst.msk [vmem:[#allocation2 + $0x10] sm:$0xff] %vm552, %v549
        %556 = vst.msk [vmem:[#allocation2 + $0x18] sm:$0xff] %vm552, %v551
        %vm557 = vcmask 519168
        %558 = vst.msk [vmem:[#allocation2 + $0x20] sm:$0xf] %vm557, 0.0
        %v559 = vld [vmem:[#allocation2] sm:$0xff]
        %v560 = vld [vmem:[#allocation2 + $0x8] sm:$0xff]
        %v561 = vld [vmem:[#allocation2 + $0x10] sm:$0x3f]
        %v562 = vpack.c.bf16 %v560, %v559
        %v563 = vpack.c.bf16 %v561, %v561
        %v564 = vld [vmem:[%s3] sm:$0xf]
        %v565 = vld [vmem:[%s3 + $0x4] sm:$0xf]
        %v566 = vld [vmem:[%s3 + $0x8] sm:$0xf]
        %v567 = vld [vmem:[%s3 + $0xc] sm:$0xf]
        %v568 = vld [vmem:[%s3 + $0x10] sm:$0xf]
        %v569 = vld [vmem:[%s3 + $0x14] sm:$0xf]
        %v570 = vld [vmem:[%s3 + $0x18] sm:$0xf]
        %v571 = vld [vmem:[%s3 + $0x1c] sm:$0xf]
        %v572 = vld [vmem:[#allocation2 + $0x1] sm:$0xff]
        %v573 = vld [vmem:[#allocation2 + $0x9] sm:$0xff]
        %v574 = vld [vmem:[#allocation2 + $0x11] sm:$0x3f]
        %v575 = vpack.c.bf16 %v573, %v572
        %v576 = vpack.c.bf16 %v574, %v574
        %s577 = scalar_lea.vmem %s3, 32
        %v578 = vld [vmem:[%s577] sm:$0xf]
        %v579 = vld [vmem:[%s577 + $0x4] sm:$0xf]
        %v580 = vld [vmem:[%s577 + $0x8] sm:$0xf]
        %v581 = vld [vmem:[%s577 + $0xc] sm:$0xf]
        %v582 = vld [vmem:[%s577 + $0x10] sm:$0xf]
        %v583 = vld [vmem:[%s577 + $0x14] sm:$0xf]
        %v584 = vld [vmem:[%s577 + $0x18] sm:$0xf]
        %v585 = vld [vmem:[%s577 + $0x1c] sm:$0xf]
        %v594 = vunpack.c.l.b16 %v578
        %v595 = vunpack.c.l.b16 %v579
        %v596 = vunpack.c.l.b16 %v580
        %v597 = vunpack.c.l.b16 %v581
        %v598 = vunpack.c.l.b16 %v582
        %v599 = vunpack.c.l.b16 %v583
        %v600 = vunpack.c.l.b16 %v584
        %v601 = vunpack.c.l.b16 %v585
        %v602 = vpack.c.b16 %v595, %v594
        %v603 = vpack.c.b16 %v597, %v596
        %v604 = vpack.c.b16 %v599, %v598
        %v605 = vpack.c.b16 %v601, %v600
        %v611 = vsel %vm552, %v575, 0
        %v614 = vsel %vm552, %v576, 0
        %616 = vmatpush.bf16.msra.mxu0 0
        %617 = vmatpush.bf16.msra.mxu0 0
        %618 = vmatpush.bf16.msra.mxu0 0
        %619 = vmatpush.bf16.msra.mxu0 0
        %620 = vmatpush.bf16.msra.mxu0 %v605
        %621 = vmatpush.bf16.msra.mxu0 %v604
        %622 = vmatpush.bf16.msra.mxu0 %v603
        %623 = vmatpush.bf16.msra.mxu0 %v602
        %624 = vmatmul.bf16.gmra.mxu0 %v611
        %v625 = vpop.f32.mrf.mxu0
        %v626 = vadd.f32 0.0, %v625
        %v627 = vpop.f32.mrf.mxu0
        %v628 = vadd.f32 0.0, %v627
        %629 = vmatmul.bf16.gmra.mxu0 %v614
        %v630 = vpop.f32.mrf.mxu0
        %v631 = vadd.f32 0.0, %v630
        %v632 = vpop.f32.mrf.mxu0
        %633 = vdwg.mxu0
        %v642 = vunpack.c.l.b16 %v564
        %v643 = vunpack.c.l.b16 %v565
        %v644 = vunpack.c.l.b16 %v566
        %v645 = vunpack.c.l.b16 %v567
        %v646 = vunpack.c.l.b16 %v568
        %v647 = vunpack.c.l.b16 %v569
        %v648 = vunpack.c.l.b16 %v570
        %v649 = vunpack.c.l.b16 %v571
        %v650 = vpack.c.b16 %v643, %v642
        %v651 = vpack.c.b16 %v645, %v644
        %v652 = vpack.c.b16 %v647, %v646
        %v653 = vpack.c.b16 %v649, %v648
        %v659 = vsel %vm552, %v562, 0
        %v662 = vsel %vm552, %v563, 0
        %664 = vmatpush.bf16.msra.mxu0 0
        %665 = vmatpush.bf16.msra.mxu0 0
        %666 = vmatpush.bf16.msra.mxu0 0
        %667 = vmatpush.bf16.msra.mxu0 0
        %668 = vmatpush.bf16.msra.mxu0 %v653
        %669 = vmatpush.bf16.msra.mxu0 %v652
        %670 = vmatpush.bf16.msra.mxu0 %v651
        %671 = vmatpush.bf16.msra.mxu0 %v650
        %672 = vmatmul.bf16.gmra.mxu0 %v659
        %v673 = vpop.f32.mrf.mxu0
        %v674 = vadd.f32 %v626, %v673
        %v675 = vpop.f32.mrf.mxu0
        %v676 = vadd.f32 %v628, %v675
        %677 = vmatmul.bf16.gmra.mxu0 %v662
        %v678 = vpop.f32.mrf.mxu0
        %v679 = vadd.f32 %v631, %v678
        %v680 = vpop.f32.mrf.mxu0
        %681 = vdwg.mxu0
        %v682 = vld [vmem:[#allocation2 + $0x2] sm:$0xff]
        %v683 = vld [vmem:[#allocation2 + $0xa] sm:$0xff]
        %v684 = vld [vmem:[#allocation2 + $0x12] sm:$0x3f]
        %v685 = vpack.c.bf16 %v683, %v682
        %v686 = vpack.c.bf16 %v684, %v684
        %s687 = scalar_lea.vmem %s3, 64
        %v688 = vld [vmem:[%s687] sm:$0xf]
        %v689 = vld [vmem:[%s687 + $0x4] sm:$0xf]
        %v690 = vld [vmem:[%s687 + $0x8] sm:$0xf]
        %v691 = vld [vmem:[%s687 + $0xc] sm:$0xf]
        %v692 = vld [vmem:[%s687 + $0x10] sm:$0xf]
        %v693 = vld [vmem:[%s687 + $0x14] sm:$0xf]
        %v694 = vld [vmem:[%s687 + $0x18] sm:$0xf]
        %v695 = vld [vmem:[%s687 + $0x1c] sm:$0xf]
        %v704 = vunpack.c.l.b16 %v688
        %v705 = vunpack.c.l.b16 %v689
        %v706 = vunpack.c.l.b16 %v690
        %v707 = vunpack.c.l.b16 %v691
        %v708 = vunpack.c.l.b16 %v692
        %v709 = vunpack.c.l.b16 %v693
        %v710 = vunpack.c.l.b16 %v694
        %v711 = vunpack.c.l.b16 %v695
        %v712 = vpack.c.b16 %v705, %v704
        %v713 = vpack.c.b16 %v707, %v706
        %v714 = vpack.c.b16 %v709, %v708
        %v715 = vpack.c.b16 %v711, %v710
        %v721 = vsel %vm552, %v685, 0
        %v724 = vsel %vm552, %v686, 0
        %726 = vmatpush.bf16.msra.mxu0 0
        %727 = vmatpush.bf16.msra.mxu0 0
        %728 = vmatpush.bf16.msra.mxu0 0
        %729 = vmatpush.bf16.msra.mxu0 0
        %730 = vmatpush.bf16.msra.mxu0 %v715
        %731 = vmatpush.bf16.msra.mxu0 %v714
        %732 = vmatpush.bf16.msra.mxu0 %v713
        %733 = vmatpush.bf16.msra.mxu0 %v712
        %734 = vmatmul.bf16.gmra.mxu0 %v721
        %v735 = vpop.f32.mrf.mxu0
        %v736 = vadd.f32 0.0, %v735
        %v737 = vpop.f32.mrf.mxu0
        %v738 = vadd.f32 0.0, %v737
        %739 = vmatmul.bf16.gmra.mxu0 %v724
        %v740 = vpop.f32.mrf.mxu0
        %v741 = vadd.f32 0.0, %v740
        %v742 = vpop.f32.mrf.mxu0
        %743 = vdwg.mxu0
        %v744 = vadd.f32 %v674, %v736
        %v745 = vadd.f32 %v676, %v738
        %v746 = vadd.f32 %v679, %v741
        %v747 = vld [vmem:[#allocation2 + $0x6] sm:$0xff]
        %v748 = vld [vmem:[#allocation2 + $0xe] sm:$0xff]
        %v749 = vld [vmem:[#allocation2 + $0x16] sm:$0x3f]
        %v750 = vpack.c.bf16 %v748, %v747
        %v751 = vpack.c.bf16 %v749, %v749
        %s752 = scalar_lea.vmem %s3, 96
        %v753 = vld [vmem:[%s752] sm:$0xf]
        %v754 = vld [vmem:[%s752 + $0x4] sm:$0xf]
        %v755 = vld [vmem:[%s752 + $0x8] sm:$0xf]
        %v756 = vld [vmem:[%s752 + $0xc] sm:$0xf]
        %v757 = vld [vmem:[%s752 + $0x10] sm:$0xf]
        %v758 = vld [vmem:[%s752 + $0x14] sm:$0xf]
        %v759 = vld [vmem:[%s752 + $0x18] sm:$0xf]
        %v760 = vld [vmem:[%s752 + $0x1c] sm:$0xf]
        %v769 = vunpack.c.l.b16 %v753
        %v770 = vunpack.c.l.b16 %v754
        %v771 = vunpack.c.l.b16 %v755
        %v772 = vunpack.c.l.b16 %v756
        %v773 = vunpack.c.l.b16 %v757
        %v774 = vunpack.c.l.b16 %v758
        %v775 = vunpack.c.l.b16 %v759
        %v776 = vunpack.c.l.b16 %v760
        %v777 = vpack.c.b16 %v770, %v769
        %v778 = vpack.c.b16 %v772, %v771
        %v779 = vpack.c.b16 %v774, %v773
        %v780 = vpack.c.b16 %v776, %v775
        %v786 = vsel %vm552, %v750, 0
        %v789 = vsel %vm552, %v751, 0
        %791 = vmatpush.bf16.msra.mxu0 0
        %792 = vmatpush.bf16.msra.mxu0 0
        %793 = vmatpush.bf16.msra.mxu0 0
        %794 = vmatpush.bf16.msra.mxu0 0
        %795 = vmatpush.bf16.msra.mxu0 %v780
        %796 = vmatpush.bf16.msra.mxu0 %v779
        %797 = vmatpush.bf16.msra.mxu0 %v778
        %798 = vmatpush.bf16.msra.mxu0 %v777
        %799 = vmatmul.bf16.gmra.mxu0 %v786
        %v800 = vpop.f32.mrf.mxu0
        %v801 = vadd.f32 0.0, %v800
        %v802 = vpop.f32.mrf.mxu0
        %v803 = vadd.f32 0.0, %v802
        %804 = vmatmul.bf16.gmra.mxu0 %v789
        %v805 = vpop.f32.mrf.mxu0
        %v806 = vadd.f32 0.0, %v805
        %v807 = vpop.f32.mrf.mxu0
        %808 = vdwg.mxu0
        %v809 = vadd.f32 %v744, %v801
        %v810 = vadd.f32 %v745, %v803
        %v811 = vadd.f32 %v746, %v806
        %v812 = vld [vmem:[#allocation2 + $0x7] sm:$0xff]
        %v813 = vld [vmem:[#allocation2 + $0xf] sm:$0xff]
        %v814 = vld [vmem:[#allocation2 + $0x17] sm:$0x3f]
        %v815 = vpack.c.bf16 %v813, %v812
        %v816 = vpack.c.bf16 %v814, %v814
        %s817 = scalar_lea.vmem %s3, 128
        %v818 = vld [vmem:[%s817] sm:$0xf]
        %v819 = vld [vmem:[%s817 + $0x4] sm:$0xf]
        %v820 = vld [vmem:[%s817 + $0x8] sm:$0xf]
        %v821 = vld [vmem:[%s817 + $0xc] sm:$0xf]
        %v822 = vld [vmem:[%s817 + $0x10] sm:$0xf]
        %v823 = vld [vmem:[%s817 + $0x14] sm:$0xf]
        %v824 = vld [vmem:[%s817 + $0x18] sm:$0xf]
        %v825 = vld [vmem:[%s817 + $0x1c] sm:$0xf]
        %v834 = vunpack.c.l.b16 %v818
        %v835 = vunpack.c.l.b16 %v819
        %v836 = vunpack.c.l.b16 %v820
        %v837 = vunpack.c.l.b16 %v821
        %v838 = vunpack.c.l.b16 %v822
        %v839 = vunpack.c.l.b16 %v823
        %v840 = vunpack.c.l.b16 %v824
        %v841 = vunpack.c.l.b16 %v825
        %v842 = vpack.c.b16 %v835, %v834
        %v843 = vpack.c.b16 %v837, %v836
        %v844 = vpack.c.b16 %v839, %v838
        %v845 = vpack.c.b16 %v841, %v840
        %v851 = vsel %vm552, %v815, 0
        %v854 = vsel %vm552, %v816, 0
        %856 = vmatpush.bf16.msra.mxu0 0
        %857 = vmatpush.bf16.msra.mxu0 0
        %858 = vmatpush.bf16.msra.mxu0 0
        %859 = vmatpush.bf16.msra.mxu0 0
        %860 = vmatpush.bf16.msra.mxu0 %v845
        %861 = vmatpush.bf16.msra.mxu0 %v844
        %862 = vmatpush.bf16.msra.mxu0 %v843
        %863 = vmatpush.bf16.msra.mxu0 %v842
        %864 = vmatmul.bf16.gmra.mxu0 %v851
        %v865 = vpop.f32.mrf.mxu0
        %v866 = vadd.f32 0.0, %v865
        %v867 = vpop.f32.mrf.mxu0
        %v868 = vadd.f32 0.0, %v867
        %869 = vmatmul.bf16.gmra.mxu0 %v854
        %v870 = vpop.f32.mrf.mxu0
        %v871 = vadd.f32 0.0, %v870
        %v872 = vpop.f32.mrf.mxu0
        %873 = vdwg.mxu0
        %v874 = vadd.f32 %v809, %v866
        %v875 = vadd.f32 %v810, %v868
        %v876 = vadd.f32 %v811, %v871
        %v877 = vld [vmem:[#allocation2 + $0x8] sm:$0xff]
        %v878 = vld [vmem:[#allocation2 + $0x10] sm:$0xff]
        %v879 = vld [vmem:[#allocation2 + $0x18] sm:$0x3f]
        %v880 = vpack.c.bf16 %v878, %v877
        %v881 = vpack.c.bf16 %v879, %v879
        %s882 = scalar_lea.vmem %s3, 160
        %v883 = vld [vmem:[%s882] sm:$0xf]
        %v884 = vld [vmem:[%s882 + $0x4] sm:$0xf]
        %v885 = vld [vmem:[%s882 + $0x8] sm:$0xf]
        %v886 = vld [vmem:[%s882 + $0xc] sm:$0xf]
        %v887 = vld [vmem:[%s882 + $0x10] sm:$0xf]
        %v888 = vld [vmem:[%s882 + $0x14] sm:$0xf]
        %v889 = vld [vmem:[%s882 + $0x18] sm:$0xf]
        %v890 = vld [vmem:[%s882 + $0x1c] sm:$0xf]
        %v899 = vunpack.c.l.b16 %v883
        %v900 = vunpack.c.l.b16 %v884
        %v901 = vunpack.c.l.b16 %v885
        %v902 = vunpack.c.l.b16 %v886
        %v903 = vunpack.c.l.b16 %v887
        %v904 = vunpack.c.l.b16 %v888
        %v905 = vunpack.c.l.b16 %v889
        %v906 = vunpack.c.l.b16 %v890
        %v907 = vpack.c.b16 %v900, %v899
        %v908 = vpack.c.b16 %v902, %v901
        %v909 = vpack.c.b16 %v904, %v903
        %v910 = vpack.c.b16 %v906, %v905
        %v916 = vsel %vm552, %v880, 0
        %v919 = vsel %vm552, %v881, 0
        %921 = vmatpush.bf16.msra.mxu0 0
        %922 = vmatpush.bf16.msra.mxu0 0
        %923 = vmatpush.bf16.msra.mxu0 0
        %924 = vmatpush.bf16.msra.mxu0 0
        %925 = vmatpush.bf16.msra.mxu0 %v910
        %926 = vmatpush.bf16.msra.mxu0 %v909
        %927 = vmatpush.bf16.msra.mxu0 %v908
        %928 = vmatpush.bf16.msra.mxu0 %v907
        %929 = vmatmul.bf16.gmra.mxu0 %v916
        %v930 = vpop.f32.mrf.mxu0
        %v931 = vadd.f32 0.0, %v930
        %v932 = vpop.f32.mrf.mxu0
        %v933 = vadd.f32 0.0, %v932
        %934 = vmatmul.bf16.gmra.mxu0 %v919
        %v935 = vpop.f32.mrf.mxu0
        %v936 = vadd.f32 0.0, %v935
        %v937 = vpop.f32.mrf.mxu0
        %938 = vdwg.mxu0
        %v939 = vadd.f32 %v874, %v931
        %v940 = vadd.f32 %v875, %v933
        %v941 = vadd.f32 %v876, %v936
        %v942 = vld [vmem:[#allocation2 + $0xc] sm:$0xff]
        %v943 = vld [vmem:[#allocation2 + $0x14] sm:$0xff]
        %v944 = vld [vmem:[#allocation2 + $0x1c] sm:$0x3f]
        %v945 = vpack.c.bf16 %v943, %v942
        %v946 = vpack.c.bf16 %v944, %v944
        %s947 = scalar_lea.vmem %s3, 192
        %v948 = vld [vmem:[%s947] sm:$0xf]
        %v949 = vld [vmem:[%s947 + $0x4] sm:$0xf]
        %v950 = vld [vmem:[%s947 + $0x8] sm:$0xf]
        %v951 = vld [vmem:[%s947 + $0xc] sm:$0xf]
        %v952 = vld [vmem:[%s947 + $0x10] sm:$0xf]
        %v953 = vld [vmem:[%s947 + $0x14] sm:$0xf]
        %v954 = vld [vmem:[%s947 + $0x18] sm:$0xf]
        %v955 = vld [vmem:[%s947 + $0x1c] sm:$0xf]
        %v964 = vunpack.c.l.b16 %v948
        %v965 = vunpack.c.l.b16 %v949
        %v966 = vunpack.c.l.b16 %v950
        %v967 = vunpack.c.l.b16 %v951
        %v968 = vunpack.c.l.b16 %v952
        %v969 = vunpack.c.l.b16 %v953
        %v970 = vunpack.c.l.b16 %v954
        %v971 = vunpack.c.l.b16 %v955
        %v972 = vpack.c.b16 %v965, %v964
        %v973 = vpack.c.b16 %v967, %v966
        %v974 = vpack.c.b16 %v969, %v968
        %v975 = vpack.c.b16 %v971, %v970
        %v981 = vsel %vm552, %v945, 0
        %v984 = vsel %vm552, %v946, 0
        %986 = vmatpush.bf16.msra.mxu0 0
        %987 = vmatpush.bf16.msra.mxu0 0
        %988 = vmatpush.bf16.msra.mxu0 0
        %989 = vmatpush.bf16.msra.mxu0 0
        %990 = vmatpush.bf16.msra.mxu0 %v975
        %991 = vmatpush.bf16.msra.mxu0 %v974
        %992 = vmatpush.bf16.msra.mxu0 %v973
        %993 = vmatpush.bf16.msra.mxu0 %v972
        %994 = vmatmul.bf16.gmra.mxu0 %v981
        %v995 = vpop.f32.mrf.mxu0
        %v996 = vadd.f32 0.0, %v995
        %v997 = vpop.f32.mrf.mxu0
        %v998 = vadd.f32 0.0, %v997
        %999 = vmatmul.bf16.gmra.mxu0 %v984
        %v1000 = vpop.f32.mrf.mxu0
        %v1001 = vadd.f32 0.0, %v1000
        %v1002 = vpop.f32.mrf.mxu0
        %1003 = vdwg.mxu0
        %v1004 = vadd.f32 %v939, %v996
        %v1005 = vadd.f32 %v940, %v998
        %v1006 = vadd.f32 %v941, %v1001
        %v1007 = vld [vmem:[#allocation2 + $0xd] sm:$0xff]
        %v1008 = vld [vmem:[#allocation2 + $0x15] sm:$0xff]
        %v1009 = vld [vmem:[#allocation2 + $0x1d] sm:$0x3f]
        %v1010 = vpack.c.bf16 %v1008, %v1007
        %v1011 = vpack.c.bf16 %v1009, %v1009
        %s1012 = scalar_lea.vmem %s3, 224
        %v1013 = vld [vmem:[%s1012] sm:$0xf]
        %v1014 = vld [vmem:[%s1012 + $0x4] sm:$0xf]
        %v1015 = vld [vmem:[%s1012 + $0x8] sm:$0xf]
        %v1016 = vld [vmem:[%s1012 + $0xc] sm:$0xf]
        %v1017 = vld [vmem:[%s1012 + $0x10] sm:$0xf]
        %v1018 = vld [vmem:[%s1012 + $0x14] sm:$0xf]
        %v1019 = vld [vmem:[%s1012 + $0x18] sm:$0xf]
        %v1020 = vld [vmem:[%s1012 + $0x1c] sm:$0xf]
        %v1029 = vunpack.c.l.b16 %v1013
        %v1030 = vunpack.c.l.b16 %v1014
        %v1031 = vunpack.c.l.b16 %v1015
        %v1032 = vunpack.c.l.b16 %v1016
        %v1033 = vunpack.c.l.b16 %v1017
        %v1034 = vunpack.c.l.b16 %v1018
        %v1035 = vunpack.c.l.b16 %v1019
        %v1036 = vunpack.c.l.b16 %v1020
        %v1037 = vpack.c.b16 %v1030, %v1029
        %v1038 = vpack.c.b16 %v1032, %v1031
        %v1039 = vpack.c.b16 %v1034, %v1033
        %v1040 = vpack.c.b16 %v1036, %v1035
        %v1046 = vsel %vm552, %v1010, 0
        %v1049 = vsel %vm552, %v1011, 0
        %1051 = vmatpush.bf16.msra.mxu0 0
        %1052 = vmatpush.bf16.msra.mxu0 0
        %1053 = vmatpush.bf16.msra.mxu0 0
        %1054 = vmatpush.bf16.msra.mxu0 0
        %1055 = vmatpush.bf16.msra.mxu0 %v1040
        %1056 = vmatpush.bf16.msra.mxu0 %v1039
        %1057 = vmatpush.bf16.msra.mxu0 %v1038
        %1058 = vmatpush.bf16.msra.mxu0 %v1037
        %1059 = vmatmul.bf16.gmra.mxu0 %v1046
        %v1060 = vpop.f32.mrf.mxu0
        %v1061 = vadd.f32 0.0, %v1060
        %v1062 = vpop.f32.mrf.mxu0
        %v1063 = vadd.f32 0.0, %v1062
        %1064 = vmatmul.bf16.gmra.mxu0 %v1049
        %v1065 = vpop.f32.mrf.mxu0
        %v1066 = vadd.f32 0.0, %v1065
        %v1067 = vpop.f32.mrf.mxu0
        %1068 = vdwg.mxu0
        %v1069 = vadd.f32 %v1004, %v1061
        %v1070 = vadd.f32 %v1005, %v1063
        %v1071 = vadd.f32 %v1006, %v1066
        %v1072 = vld [vmem:[#allocation2 + $0xe] sm:$0xff]
        %v1073 = vld [vmem:[#allocation2 + $0x16] sm:$0xff]
        %v1074 = vld [vmem:[#allocation2 + $0x1e] sm:$0x3f]
        %v1075 = vpack.c.bf16 %v1073, %v1072
        %v1076 = vpack.c.bf16 %v1074, %v1074
        %s1077 = scalar_lea.vmem %s3, 256
        %v1078 = vld [vmem:[%s1077] sm:$0xf]
        %v1079 = vld [vmem:[%s1077 + $0x4] sm:$0xf]
        %v1080 = vld [vmem:[%s1077 + $0x8] sm:$0xf]
        %v1081 = vld [vmem:[%s1077 + $0xc] sm:$0xf]
        %v1082 = vld [vmem:[%s1077 + $0x10] sm:$0xf]
        %v1083 = vld [vmem:[%s1077 + $0x14] sm:$0xf]
        %v1084 = vld [vmem:[%s1077 + $0x18] sm:$0xf]
        %v1085 = vld [vmem:[%s1077 + $0x1c] sm:$0xf]
        %v1094 = vunpack.c.l.b16 %v1078
        %v1095 = vunpack.c.l.b16 %v1079
        %v1096 = vunpack.c.l.b16 %v1080
        %v1097 = vunpack.c.l.b16 %v1081
        %v1098 = vunpack.c.l.b16 %v1082
        %v1099 = vunpack.c.l.b16 %v1083
        %v1100 = vunpack.c.l.b16 %v1084
        %v1101 = vunpack.c.l.b16 %v1085
        %v1102 = vpack.c.b16 %v1095, %v1094
        %v1103 = vpack.c.b16 %v1097, %v1096
        %v1104 = vpack.c.b16 %v1099, %v1098
        %v1105 = vpack.c.b16 %v1101, %v1100
        %v1111 = vsel %vm552, %v1075, 0
        %v1114 = vsel %vm552, %v1076, 0
        %1116 = vmatpush.bf16.msra.mxu0 0
        %1117 = vmatpush.bf16.msra.mxu0 0
        %1118 = vmatpush.bf16.msra.mxu0 0
        %1119 = vmatpush.bf16.msra.mxu0 0
        %1120 = vmatpush.bf16.msra.mxu0 %v1105
        %1121 = vmatpush.bf16.msra.mxu0 %v1104
        %1122 = vmatpush.bf16.msra.mxu0 %v1103
        %1123 = vmatpush.bf16.msra.mxu0 %v1102
        %1124 = vmatmul.bf16.gmra.mxu0 %v1111
        %v1125 = vpop.f32.mrf.mxu0
        %v1126 = vadd.f32 0.0, %v1125
        %v1127 = vpop.f32.mrf.mxu0
        %v1128 = vadd.f32 0.0, %v1127
        %1129 = vmatmul.bf16.gmra.mxu0 %v1114
        %v1130 = vpop.f32.mrf.mxu0
        %v1131 = vadd.f32 0.0, %v1130
        %v1132 = vpop.f32.mrf.mxu0
        %1133 = vdwg.mxu0
        %v1134 = vadd.f32 %v1069, %v1126
        %v1135 = vadd.f32 %v1070, %v1128
        %v1136 = vadd.f32 %v1071, %v1131
        %v1137 = vld [vmem:[%s4] sm:$0x1]
        %v1139 = vperm.slane %v1137, 0
        %v1141 = vadd.f32 %v1134, %v1139
        %v1142 = vadd.f32 %v1135, %v1139
        %v1143 = vadd.f32 %v1136, %v1139
        %v1144 = vmax.f32 %v1141, 0.0
        %v1145 = vmax.f32 %v1142, 0.0
        %v1146 = vmax.f32 %v1143, 0.0
        %vm1149 = vcmask 1041408
        %v1150 = vrot.slane %v1144, 6
        %v1151 = vrot.slane %v1145, 6
        %v1152 = vsel %vm1149, %v1150, %v1151
        %v1154 = vmax.f32 %v1144, %v1152
        %v1156 = vrot.slane %v1146, 6
        %v1158 = vmax.f32 %v1145, %v1156
        %v1160 = vrot.slane %v1154, 1
        %v1162 = vmax.f32 %v1154, %v1160
        %v1164 = vrot.slane %v1158, 1
        %v1166 = vmax.f32 %v1158, %v1164
        %v1168 = vrot.slane %v1162, 3
        %v1170 = vrot.slane %v1162, 4
        %v1173 = vrot.slane %v1166, 3
        %v1175 = vrot.slane %v1166, 4
        %v1177 = vsel %vm544, 0.0, %v1168
        %vm1178 = vcmask 1045504
        %v1179 = vsel %vm1178, %v1177, %v1170
        %v1180 = vsel %vm540, %v1179, 0.0
        %v1181 = vsel %vm546, 0.0, %v1173
        %v1182 = vsel %vm1149, %v1181, %v1175
        %v1183 = vsel %vm542, %v1182, 0.0
        %1184 = vst [vmem:[#allocation3] sm:$0xff] %v1180
        %1185 = vst [vmem:[#allocation3 + $0x8] sm:$0xff] %v1183
        %v1186 = vld [vmem:[#allocation3] sm:$0x3f]
        %v1187 = vpack.c.bf16 %v1186, %v1186
        %v1188 = vld [vmem:[%s5] sm:$0xff]
        %v1189 = vld [vmem:[%s5 + $0x8] sm:$0xff]
        %v1190 = vld [vmem:[%s5 + $0x10] sm:$0xff]
        %v1191 = vld [vmem:[%s5 + $0x18] sm:$0xff]
        %v1192 = vld [vmem:[%s5 + $0x20] sm:$0xff]
        %v1193 = vld [vmem:[%s5 + $0x28] sm:$0xff]
        %v1194 = vld [vmem:[%s5 + $0x30] sm:$0xff]
        %v1195 = vld [vmem:[%s5 + $0x38] sm:$0xff]
        %v1196 = vld [vmem:[%s5 + $0x40] sm:$0xff]
        %v1197 = vld [vmem:[%s5 + $0x48] sm:$0xff]
        %v1198 = vld [vmem:[%s5 + $0x50] sm:$0xff]
        %v1199 = vld [vmem:[%s5 + $0x58] sm:$0xff]
        %v1200 = vld [vmem:[%s5 + $0x60] sm:$0xff]
        %v1201 = vld [vmem:[%s5 + $0x68] sm:$0xff]
        %v1202 = vld [vmem:[%s5 + $0x70] sm:$0xff]
        %v1203 = vld [vmem:[%s5 + $0x78] sm:$0xff]
        %v1204 = vld [vmem:[#allocation3 + $0x1] sm:$0x3f]
        %v1205 = vpack.c.bf16 %v1204, %v1204
        %s1206 = scalar_lea.vmem %s5, 128
        %v1207 = vld [vmem:[%s1206] sm:$0xff]
        %v1208 = vld [vmem:[%s1206 + $0x8] sm:$0xff]
        %v1209 = vld [vmem:[%s1206 + $0x10] sm:$0xff]
        %v1210 = vld [vmem:[%s1206 + $0x18] sm:$0xff]
        %v1211 = vld [vmem:[%s1206 + $0x20] sm:$0xff]
        %v1212 = vld [vmem:[%s1206 + $0x28] sm:$0xff]
        %v1213 = vld [vmem:[%s1206 + $0x30] sm:$0xff]
        %v1214 = vld [vmem:[%s1206 + $0x38] sm:$0xff]
        %v1215 = vld [vmem:[%s1206 + $0x40] sm:$0xff]
        %v1216 = vld [vmem:[%s1206 + $0x48] sm:$0xff]
        %v1217 = vld [vmem:[%s1206 + $0x50] sm:$0xff]
        %v1218 = vld [vmem:[%s1206 + $0x58] sm:$0xff]
        %v1219 = vld [vmem:[%s1206 + $0x60] sm:$0xff]
        %v1220 = vld [vmem:[%s1206 + $0x68] sm:$0xff]
        %v1221 = vld [vmem:[%s1206 + $0x70] sm:$0xff]
        %v1222 = vld [vmem:[%s1206 + $0x78] sm:$0xff]
        %v1239 = vunpack.c.l.b16 %v1207
        %v1240 = vunpack.c.h.b16 %v1207
        %v1241 = vunpack.c.l.b16 %v1208
        %v1242 = vunpack.c.h.b16 %v1208
        %v1243 = vunpack.c.l.b16 %v1209
        %v1244 = vunpack.c.h.b16 %v1209
        %v1245 = vunpack.c.l.b16 %v1210
        %v1246 = vunpack.c.h.b16 %v1210
        %v1247 = vunpack.c.l.b16 %v1211
        %v1248 = vunpack.c.h.b16 %v1211
        %v1249 = vunpack.c.l.b16 %v1212
        %v1250 = vunpack.c.h.b16 %v1212
        %v1251 = vunpack.c.l.b16 %v1213
        %v1252 = vunpack.c.h.b16 %v1213
        %v1253 = vunpack.c.l.b16 %v1214
        %v1254 = vunpack.c.h.b16 %v1214
        %v1255 = vunpack.c.l.b16 %v1215
        %v1256 = vunpack.c.h.b16 %v1215
        %v1257 = vunpack.c.l.b16 %v1216
        %v1258 = vunpack.c.h.b16 %v1216
        %v1259 = vunpack.c.l.b16 %v1217
        %v1260 = vunpack.c.h.b16 %v1217
        %v1261 = vunpack.c.l.b16 %v1218
        %v1262 = vunpack.c.h.b16 %v1218
        %v1263 = vunpack.c.l.b16 %v1219
        %v1264 = vunpack.c.h.b16 %v1219
        %v1265 = vunpack.c.l.b16 %v1220
        %v1266 = vunpack.c.h.b16 %v1220
        %v1267 = vunpack.c.l.b16 %v1221
        %v1268 = vunpack.c.h.b16 %v1221
        %v1269 = vunpack.c.l.b16 %v1222
        %v1270 = vunpack.c.h.b16 %v1222
        %v1271 = vpack.c.b16 %v1241, %v1239
        %v1272 = vpack.c.b16 %v1242, %v1240
        %v1273 = vpack.c.b16 %v1245, %v1243
        %v1274 = vpack.c.b16 %v1246, %v1244
        %v1275 = vpack.c.b16 %v1249, %v1247
        %v1276 = vpack.c.b16 %v1250, %v1248
        %v1277 = vpack.c.b16 %v1253, %v1251
        %v1278 = vpack.c.b16 %v1254, %v1252
        %v1279 = vpack.c.b16 %v1257, %v1255
        %v1280 = vpack.c.b16 %v1258, %v1256
        %v1281 = vpack.c.b16 %v1261, %v1259
        %v1282 = vpack.c.b16 %v1262, %v1260
        %v1283 = vpack.c.b16 %v1265, %v1263
        %v1284 = vpack.c.b16 %v1266, %v1264
        %v1285 = vpack.c.b16 %v1269, %v1267
        %v1286 = vpack.c.b16 %v1270, %v1268
        %1303 = vmatpush.bf16.msra.mxu0 %v1285
        %1304 = vmatpush.bf16.msra.mxu0 %v1283
        %1305 = vmatpush.bf16.msra.mxu0 %v1281
        %1306 = vmatpush.bf16.msra.mxu0 %v1279
        %1307 = vmatpush.bf16.msra.mxu0 %v1277
        %1308 = vmatpush.bf16.msra.mxu0 %v1275
        %1309 = vmatpush.bf16.msra.mxu0 %v1273
        %1310 = vmatpush.bf16.msra.mxu0 %v1271
        %1311 = vmatmul.bf16.gmra.mxu0 %v1205
        %v1312 = vpop.f32.mrf.mxu0
        %v1313 = vadd.f32 0.0, %v1312
        %v1314 = vpop.f32.mrf.mxu0
        %1315 = vdwg.mxu0
        %1316 = vmatpush.bf16.msra.mxu0 %v1286
        %1317 = vmatpush.bf16.msra.mxu0 %v1284
        %1318 = vmatpush.bf16.msra.mxu0 %v1282
        %1319 = vmatpush.bf16.msra.mxu0 %v1280
        %1320 = vmatpush.bf16.msra.mxu0 %v1278
        %1321 = vmatpush.bf16.msra.mxu0 %v1276
        %1322 = vmatpush.bf16.msra.mxu0 %v1274
        %1323 = vmatpush.bf16.msra.mxu0 %v1272
        %1324 = vmatmul.bf16.gmra.mxu0 %v1205
        %v1325 = vpop.f32.mrf.mxu0
        %v1326 = vadd.f32 0.0, %v1325
        %v1327 = vpop.f32.mrf.mxu0
        %1328 = vdwg.mxu0
        %v1345 = vunpack.c.l.b16 %v1188
        %v1346 = vunpack.c.h.b16 %v1188
        %v1347 = vunpack.c.l.b16 %v1189
        %v1348 = vunpack.c.h.b16 %v1189
        %v1349 = vunpack.c.l.b16 %v1190
        %v1350 = vunpack.c.h.b16 %v1190
        %v1351 = vunpack.c.l.b16 %v1191
        %v1352 = vunpack.c.h.b16 %v1191
        %v1353 = vunpack.c.l.b16 %v1192
        %v1354 = vunpack.c.h.b16 %v1192
        %v1355 = vunpack.c.l.b16 %v1193
        %v1356 = vunpack.c.h.b16 %v1193
        %v1357 = vunpack.c.l.b16 %v1194
        %v1358 = vunpack.c.h.b16 %v1194
        %v1359 = vunpack.c.l.b16 %v1195
        %v1360 = vunpack.c.h.b16 %v1195
        %v1361 = vunpack.c.l.b16 %v1196
        %v1362 = vunpack.c.h.b16 %v1196
        %v1363 = vunpack.c.l.b16 %v1197
        %v1364 = vunpack.c.h.b16 %v1197
        %v1365 = vunpack.c.l.b16 %v1198
        %v1366 = vunpack.c.h.b16 %v1198
        %v1367 = vunpack.c.l.b16 %v1199
        %v1368 = vunpack.c.h.b16 %v1199
        %v1369 = vunpack.c.l.b16 %v1200
        %v1370 = vunpack.c.h.b16 %v1200
        %v1371 = vunpack.c.l.b16 %v1201
        %v1372 = vunpack.c.h.b16 %v1201
        %v1373 = vunpack.c.l.b16 %v1202
        %v1374 = vunpack.c.h.b16 %v1202
        %v1375 = vunpack.c.l.b16 %v1203
        %v1376 = vunpack.c.h.b16 %v1203
        %v1377 = vpack.c.b16 %v1347, %v1345
        %v1378 = vpack.c.b16 %v1348, %v1346
        %v1379 = vpack.c.b16 %v1351, %v1349
        %v1380 = vpack.c.b16 %v1352, %v1350
        %v1381 = vpack.c.b16 %v1355, %v1353
        %v1382 = vpack.c.b16 %v1356, %v1354
        %v1383 = vpack.c.b16 %v1359, %v1357
        %v1384 = vpack.c.b16 %v1360, %v1358
        %v1385 = vpack.c.b16 %v1363, %v1361
        %v1386 = vpack.c.b16 %v1364, %v1362
        %v1387 = vpack.c.b16 %v1367, %v1365
        %v1388 = vpack.c.b16 %v1368, %v1366
        %v1389 = vpack.c.b16 %v1371, %v1369
        %v1390 = vpack.c.b16 %v1372, %v1370
        %v1391 = vpack.c.b16 %v1375, %v1373
        %v1392 = vpack.c.b16 %v1376, %v1374
        %1409 = vmatpush.bf16.msra.mxu0 %v1391
        %1410 = vmatpush.bf16.msra.mxu0 %v1389
        %1411 = vmatpush.bf16.msra.mxu0 %v1387
        %1412 = vmatpush.bf16.msra.mxu0 %v1385
        %1413 = vmatpush.bf16.msra.mxu0 %v1383
        %1414 = vmatpush.bf16.msra.mxu0 %v1381
        %1415 = vmatpush.bf16.msra.mxu0 %v1379
        %1416 = vmatpush.bf16.msra.mxu0 %v1377
        %1417 = vmatmul.bf16.gmra.mxu0 %v1187
        %v1418 = vpop.f32.mrf.mxu0
        %v1419 = vadd.f32 %v1313, %v1418
        %v1420 = vpop.f32.mrf.mxu0
        %1421 = vdwg.mxu0
        %1422 = vmatpush.bf16.msra.mxu0 %v1392
        %1423 = vmatpush.bf16.msra.mxu0 %v1390
        %1424 = vmatpush.bf16.msra.mxu0 %v1388
        %1425 = vmatpush.bf16.msra.mxu0 %v1386
        %1426 = vmatpush.bf16.msra.mxu0 %v1384
        %1427 = vmatpush.bf16.msra.mxu0 %v1382
        %1428 = vmatpush.bf16.msra.mxu0 %v1380
        %1429 = vmatpush.bf16.msra.mxu0 %v1378
        %1430 = vmatmul.bf16.gmra.mxu0 %v1187
        %v1431 = vpop.f32.mrf.mxu0
        %v1432 = vadd.f32 %v1326, %v1431
        %v1433 = vpop.f32.mrf.mxu0
        %1434 = vdwg.mxu0
        %v1435 = vld [vmem:[#allocation3 + $0x2] sm:$0x3f]
        %v1436 = vpack.c.bf16 %v1435, %v1435
        %s1437 = scalar_lea.vmem %s5, 256
        %v1438 = vld [vmem:[%s1437] sm:$0xff]
        %v1439 = vld [vmem:[%s1437 + $0x8] sm:$0xff]
        %v1440 = vld [vmem:[%s1437 + $0x10] sm:$0xff]
        %v1441 = vld [vmem:[%s1437 + $0x18] sm:$0xff]
        %v1442 = vld [vmem:[%s1437 + $0x20] sm:$0xff]
        %v1443 = vld [vmem:[%s1437 + $0x28] sm:$0xff]
        %v1444 = vld [vmem:[%s1437 + $0x30] sm:$0xff]
        %v1445 = vld [vmem:[%s1437 + $0x38] sm:$0xff]
        %v1446 = vld [vmem:[%s1437 + $0x40] sm:$0xff]
        %v1447 = vld [vmem:[%s1437 + $0x48] sm:$0xff]
        %v1448 = vld [vmem:[%s1437 + $0x50] sm:$0xff]
        %v1449 = vld [vmem:[%s1437 + $0x58] sm:$0xff]
        %v1450 = vld [vmem:[%s1437 + $0x60] sm:$0xff]
        %v1451 = vld [vmem:[%s1437 + $0x68] sm:$0xff]
        %v1452 = vld [vmem:[%s1437 + $0x70] sm:$0xff]
        %v1453 = vld [vmem:[%s1437 + $0x78] sm:$0xff]
        %v1470 = vunpack.c.l.b16 %v1438
        %v1471 = vunpack.c.h.b16 %v1438
        %v1472 = vunpack.c.l.b16 %v1439
        %v1473 = vunpack.c.h.b16 %v1439
        %v1474 = vunpack.c.l.b16 %v1440
        %v1475 = vunpack.c.h.b16 %v1440
        %v1476 = vunpack.c.l.b16 %v1441
        %v1477 = vunpack.c.h.b16 %v1441
        %v1478 = vunpack.c.l.b16 %v1442
        %v1479 = vunpack.c.h.b16 %v1442
        %v1480 = vunpack.c.l.b16 %v1443
        %v1481 = vunpack.c.h.b16 %v1443
        %v1482 = vunpack.c.l.b16 %v1444
        %v1483 = vunpack.c.h.b16 %v1444
        %v1484 = vunpack.c.l.b16 %v1445
        %v1485 = vunpack.c.h.b16 %v1445
        %v1486 = vunpack.c.l.b16 %v1446
        %v1487 = vunpack.c.h.b16 %v1446
        %v1488 = vunpack.c.l.b16 %v1447
        %v1489 = vunpack.c.h.b16 %v1447
        %v1490 = vunpack.c.l.b16 %v1448
        %v1491 = vunpack.c.h.b16 %v1448
        %v1492 = vunpack.c.l.b16 %v1449
        %v1493 = vunpack.c.h.b16 %v1449
        %v1494 = vunpack.c.l.b16 %v1450
        %v1495 = vunpack.c.h.b16 %v1450
        %v1496 = vunpack.c.l.b16 %v1451
        %v1497 = vunpack.c.h.b16 %v1451
        %v1498 = vunpack.c.l.b16 %v1452
        %v1499 = vunpack.c.h.b16 %v1452
        %v1500 = vunpack.c.l.b16 %v1453
        %v1501 = vunpack.c.h.b16 %v1453
        %v1502 = vpack.c.b16 %v1472, %v1470
        %v1503 = vpack.c.b16 %v1473, %v1471
        %v1504 = vpack.c.b16 %v1476, %v1474
        %v1505 = vpack.c.b16 %v1477, %v1475
        %v1506 = vpack.c.b16 %v1480, %v1478
        %v1507 = vpack.c.b16 %v1481, %v1479
        %v1508 = vpack.c.b16 %v1484, %v1482
        %v1509 = vpack.c.b16 %v1485, %v1483
        %v1510 = vpack.c.b16 %v1488, %v1486
        %v1511 = vpack.c.b16 %v1489, %v1487
        %v1512 = vpack.c.b16 %v1492, %v1490
        %v1513 = vpack.c.b16 %v1493, %v1491
        %v1514 = vpack.c.b16 %v1496, %v1494
        %v1515 = vpack.c.b16 %v1497, %v1495
        %v1516 = vpack.c.b16 %v1500, %v1498
        %v1517 = vpack.c.b16 %v1501, %v1499
        %1534 = vmatpush.bf16.msra.mxu0 %v1516
        %1535 = vmatpush.bf16.msra.mxu0 %v1514
        %1536 = vmatpush.bf16.msra.mxu0 %v1512
        %1537 = vmatpush.bf16.msra.mxu0 %v1510
        %1538 = vmatpush.bf16.msra.mxu0 %v1508
        %1539 = vmatpush.bf16.msra.mxu0 %v1506
        %1540 = vmatpush.bf16.msra.mxu0 %v1504
        %1541 = vmatpush.bf16.msra.mxu0 %v1502
        %1542 = vmatmul.bf16.gmra.mxu0 %v1436
        %v1543 = vpop.f32.mrf.mxu0
        %v1544 = vadd.f32 0.0, %v1543
        %v1545 = vpop.f32.mrf.mxu0
        %1546 = vdwg.mxu0
        %1547 = vmatpush.bf16.msra.mxu0 %v1517
        %1548 = vmatpush.bf16.msra.mxu0 %v1515
        %1549 = vmatpush.bf16.msra.mxu0 %v1513
        %1550 = vmatpush.bf16.msra.mxu0 %v1511
        %1551 = vmatpush.bf16.msra.mxu0 %v1509
        %1552 = vmatpush.bf16.msra.mxu0 %v1507
        %1553 = vmatpush.bf16.msra.mxu0 %v1505
        %1554 = vmatpush.bf16.msra.mxu0 %v1503
        %1555 = vmatmul.bf16.gmra.mxu0 %v1436
        %v1556 = vpop.f32.mrf.mxu0
        %v1557 = vadd.f32 0.0, %v1556
        %v1558 = vpop.f32.mrf.mxu0
        %1559 = vdwg.mxu0
        %v1560 = vadd.f32 %v1419, %v1544
        %v1561 = vadd.f32 %v1432, %v1557
        %v1562 = vld [vmem:[#allocation3 + $0x4] sm:$0x3f]
        %v1563 = vpack.c.bf16 %v1562, %v1562
        %s1564 = scalar_lea.vmem %s5, 384
        %v1565 = vld [vmem:[%s1564] sm:$0xff]
        %v1566 = vld [vmem:[%s1564 + $0x8] sm:$0xff]
        %v1567 = vld [vmem:[%s1564 + $0x10] sm:$0xff]
        %v1568 = vld [vmem:[%s1564 + $0x18] sm:$0xff]
        %v1569 = vld [vmem:[%s1564 + $0x20] sm:$0xff]
        %v1570 = vld [vmem:[%s1564 + $0x28] sm:$0xff]
        %v1571 = vld [vmem:[%s1564 + $0x30] sm:$0xff]
        %v1572 = vld [vmem:[%s1564 + $0x38] sm:$0xff]
        %v1573 = vld [vmem:[%s1564 + $0x40] sm:$0xff]
        %v1574 = vld [vmem:[%s1564 + $0x48] sm:$0xff]
        %v1575 = vld [vmem:[%s1564 + $0x50] sm:$0xff]
        %v1576 = vld [vmem:[%s1564 + $0x58] sm:$0xff]
        %v1577 = vld [vmem:[%s1564 + $0x60] sm:$0xff]
        %v1578 = vld [vmem:[%s1564 + $0x68] sm:$0xff]
        %v1579 = vld [vmem:[%s1564 + $0x70] sm:$0xff]
        %v1580 = vld [vmem:[%s1564 + $0x78] sm:$0xff]
        %v1597 = vunpack.c.l.b16 %v1565
        %v1598 = vunpack.c.h.b16 %v1565
        %v1599 = vunpack.c.l.b16 %v1566
        %v1600 = vunpack.c.h.b16 %v1566
        %v1601 = vunpack.c.l.b16 %v1567
        %v1602 = vunpack.c.h.b16 %v1567
        %v1603 = vunpack.c.l.b16 %v1568
        %v1604 = vunpack.c.h.b16 %v1568
        %v1605 = vunpack.c.l.b16 %v1569
        %v1606 = vunpack.c.h.b16 %v1569
        %v1607 = vunpack.c.l.b16 %v1570
        %v1608 = vunpack.c.h.b16 %v1570
        %v1609 = vunpack.c.l.b16 %v1571
        %v1610 = vunpack.c.h.b16 %v1571
        %v1611 = vunpack.c.l.b16 %v1572
        %v1612 = vunpack.c.h.b16 %v1572
        %v1613 = vunpack.c.l.b16 %v1573
        %v1614 = vunpack.c.h.b16 %v1573
        %v1615 = vunpack.c.l.b16 %v1574
        %v1616 = vunpack.c.h.b16 %v1574
        %v1617 = vunpack.c.l.b16 %v1575
        %v1618 = vunpack.c.h.b16 %v1575
        %v1619 = vunpack.c.l.b16 %v1576
        %v1620 = vunpack.c.h.b16 %v1576
        %v1621 = vunpack.c.l.b16 %v1577
        %v1622 = vunpack.c.h.b16 %v1577
        %v1623 = vunpack.c.l.b16 %v1578
        %v1624 = vunpack.c.h.b16 %v1578
        %v1625 = vunpack.c.l.b16 %v1579
        %v1626 = vunpack.c.h.b16 %v1579
        %v1627 = vunpack.c.l.b16 %v1580
        %v1628 = vunpack.c.h.b16 %v1580
        %v1629 = vpack.c.b16 %v1599, %v1597
        %v1630 = vpack.c.b16 %v1600, %v1598
        %v1631 = vpack.c.b16 %v1603, %v1601
        %v1632 = vpack.c.b16 %v1604, %v1602
        %v1633 = vpack.c.b16 %v1607, %v1605
        %v1634 = vpack.c.b16 %v1608, %v1606
        %v1635 = vpack.c.b16 %v1611, %v1609
        %v1636 = vpack.c.b16 %v1612, %v1610
        %v1637 = vpack.c.b16 %v1615, %v1613
        %v1638 = vpack.c.b16 %v1616, %v1614
        %v1639 = vpack.c.b16 %v1619, %v1617
        %v1640 = vpack.c.b16 %v1620, %v1618
        %v1641 = vpack.c.b16 %v1623, %v1621
        %v1642 = vpack.c.b16 %v1624, %v1622
        %v1643 = vpack.c.b16 %v1627, %v1625
        %v1644 = vpack.c.b16 %v1628, %v1626
        %1661 = vmatpush.bf16.msra.mxu0 %v1643
        %1662 = vmatpush.bf16.msra.mxu0 %v1641
        %1663 = vmatpush.bf16.msra.mxu0 %v1639
        %1664 = vmatpush.bf16.msra.mxu0 %v1637
        %1665 = vmatpush.bf16.msra.mxu0 %v1635
        %1666 = vmatpush.bf16.msra.mxu0 %v1633
        %1667 = vmatpush.bf16.msra.mxu0 %v1631
        %1668 = vmatpush.bf16.msra.mxu0 %v1629
        %1669 = vmatmul.bf16.gmra.mxu0 %v1563
        %v1670 = vpop.f32.mrf.mxu0
        %v1671 = vadd.f32 0.0, %v1670
        %v1672 = vpop.f32.mrf.mxu0
        %1673 = vdwg.mxu0
        %1674 = vmatpush.bf16.msra.mxu0 %v1644
        %1675 = vmatpush.bf16.msra.mxu0 %v1642
        %1676 = vmatpush.bf16.msra.mxu0 %v1640
        %1677 = vmatpush.bf16.msra.mxu0 %v1638
        %1678 = vmatpush.bf16.msra.mxu0 %v1636
        %1679 = vmatpush.bf16.msra.mxu0 %v1634
        %1680 = vmatpush.bf16.msra.mxu0 %v1632
        %1681 = vmatpush.bf16.msra.mxu0 %v1630
        %1682 = vmatmul.bf16.gmra.mxu0 %v1563
        %v1683 = vpop.f32.mrf.mxu0
        %v1684 = vadd.f32 0.0, %v1683
        %v1685 = vpop.f32.mrf.mxu0
        %1686 = vdwg.mxu0
        %v1687 = vadd.f32 %v1560, %v1671
        %v1688 = vadd.f32 %v1561, %v1684
        %v1689 = vld [vmem:[#allocation3 + $0x5] sm:$0x3f]
        %v1690 = vpack.c.bf16 %v1689, %v1689
        %s1691 = scalar_lea.vmem %s5, 512
        %v1692 = vld [vmem:[%s1691] sm:$0xff]
        %v1693 = vld [vmem:[%s1691 + $0x8] sm:$0xff]
        %v1694 = vld [vmem:[%s1691 + $0x10] sm:$0xff]
        %v1695 = vld [vmem:[%s1691 + $0x18] sm:$0xff]
        %v1696 = vld [vmem:[%s1691 + $0x20] sm:$0xff]
        %v1697 = vld [vmem:[%s1691 + $0x28] sm:$0xff]
        %v1698 = vld [vmem:[%s1691 + $0x30] sm:$0xff]
        %v1699 = vld [vmem:[%s1691 + $0x38] sm:$0xff]
        %v1700 = vld [vmem:[%s1691 + $0x40] sm:$0xff]
        %v1701 = vld [vmem:[%s1691 + $0x48] sm:$0xff]
        %v1702 = vld [vmem:[%s1691 + $0x50] sm:$0xff]
        %v1703 = vld [vmem:[%s1691 + $0x58] sm:$0xff]
        %v1704 = vld [vmem:[%s1691 + $0x60] sm:$0xff]
        %v1705 = vld [vmem:[%s1691 + $0x68] sm:$0xff]
        %v1706 = vld [vmem:[%s1691 + $0x70] sm:$0xff]
        %v1707 = vld [vmem:[%s1691 + $0x78] sm:$0xff]
        %v1724 = vunpack.c.l.b16 %v1692
        %v1725 = vunpack.c.h.b16 %v1692
        %v1726 = vunpack.c.l.b16 %v1693
        %v1727 = vunpack.c.h.b16 %v1693
        %v1728 = vunpack.c.l.b16 %v1694
        %v1729 = vunpack.c.h.b16 %v1694
        %v1730 = vunpack.c.l.b16 %v1695
        %v1731 = vunpack.c.h.b16 %v1695
        %v1732 = vunpack.c.l.b16 %v1696
        %v1733 = vunpack.c.h.b16 %v1696
        %v1734 = vunpack.c.l.b16 %v1697
        %v1735 = vunpack.c.h.b16 %v1697
        %v1736 = vunpack.c.l.b16 %v1698
        %v1737 = vunpack.c.h.b16 %v1698
        %v1738 = vunpack.c.l.b16 %v1699
        %v1739 = vunpack.c.h.b16 %v1699
        %v1740 = vunpack.c.l.b16 %v1700
        %v1741 = vunpack.c.h.b16 %v1700
        %v1742 = vunpack.c.l.b16 %v1701
        %v1743 = vunpack.c.h.b16 %v1701
        %v1744 = vunpack.c.l.b16 %v1702
        %v1745 = vunpack.c.h.b16 %v1702
        %v1746 = vunpack.c.l.b16 %v1703
        %v1747 = vunpack.c.h.b16 %v1703
        %v1748 = vunpack.c.l.b16 %v1704
        %v1749 = vunpack.c.h.b16 %v1704
        %v1750 = vunpack.c.l.b16 %v1705
        %v1751 = vunpack.c.h.b16 %v1705
        %v1752 = vunpack.c.l.b16 %v1706
        %v1753 = vunpack.c.h.b16 %v1706
        %v1754 = vunpack.c.l.b16 %v1707
        %v1755 = vunpack.c.h.b16 %v1707
        %v1756 = vpack.c.b16 %v1726, %v1724
        %v1757 = vpack.c.b16 %v1727, %v1725
        %v1758 = vpack.c.b16 %v1730, %v1728
        %v1759 = vpack.c.b16 %v1731, %v1729
        %v1760 = vpack.c.b16 %v1734, %v1732
        %v1761 = vpack.c.b16 %v1735, %v1733
        %v1762 = vpack.c.b16 %v1738, %v1736
        %v1763 = vpack.c.b16 %v1739, %v1737
        %v1764 = vpack.c.b16 %v1742, %v1740
        %v1765 = vpack.c.b16 %v1743, %v1741
        %v1766 = vpack.c.b16 %v1746, %v1744
        %v1767 = vpack.c.b16 %v1747, %v1745
        %v1768 = vpack.c.b16 %v1750, %v1748
        %v1769 = vpack.c.b16 %v1751, %v1749
        %v1770 = vpack.c.b16 %v1754, %v1752
        %v1771 = vpack.c.b16 %v1755, %v1753
        %1788 = vmatpush.bf16.msra.mxu0 %v1770
        %1789 = vmatpush.bf16.msra.mxu0 %v1768
        %1790 = vmatpush.bf16.msra.mxu0 %v1766
        %1791 = vmatpush.bf16.msra.mxu0 %v1764
        %1792 = vmatpush.bf16.msra.mxu0 %v1762
        %1793 = vmatpush.bf16.msra.mxu0 %v1760
        %1794 = vmatpush.bf16.msra.mxu0 %v1758
        %1795 = vmatpush.bf16.msra.mxu0 %v1756
        %1796 = vmatmul.bf16.gmra.mxu0 %v1690
        %v1797 = vpop.f32.mrf.mxu0
        %v1798 = vadd.f32 0.0, %v1797
        %v1799 = vpop.f32.mrf.mxu0
        %1800 = vdwg.mxu0
        %1801 = vmatpush.bf16.msra.mxu0 %v1771
        %1802 = vmatpush.bf16.msra.mxu0 %v1769
        %1803 = vmatpush.bf16.msra.mxu0 %v1767
        %1804 = vmatpush.bf16.msra.mxu0 %v1765
        %1805 = vmatpush.bf16.msra.mxu0 %v1763
        %1806 = vmatpush.bf16.msra.mxu0 %v1761
        %1807 = vmatpush.bf16.msra.mxu0 %v1759
        %1808 = vmatpush.bf16.msra.mxu0 %v1757
        %1809 = vmatmul.bf16.gmra.mxu0 %v1690
        %v1810 = vpop.f32.mrf.mxu0
        %v1811 = vadd.f32 0.0, %v1810
        %v1812 = vpop.f32.mrf.mxu0
        %1813 = vdwg.mxu0
        %v1814 = vadd.f32 %v1687, %v1798
        %v1815 = vadd.f32 %v1688, %v1811
        %v1816 = vld [vmem:[#allocation3 + $0x6] sm:$0x3f]
        %v1817 = vpack.c.bf16 %v1816, %v1816
        %s1818 = scalar_lea.vmem %s5, 640
        %v1819 = vld [vmem:[%s1818] sm:$0xff]
        %v1820 = vld [vmem:[%s1818 + $0x8] sm:$0xff]
        %v1821 = vld [vmem:[%s1818 + $0x10] sm:$0xff]
        %v1822 = vld [vmem:[%s1818 + $0x18] sm:$0xff]
        %v1823 = vld [vmem:[%s1818 + $0x20] sm:$0xff]
        %v1824 = vld [vmem:[%s1818 + $0x28] sm:$0xff]
        %v1825 = vld [vmem:[%s1818 + $0x30] sm:$0xff]
        %v1826 = vld [vmem:[%s1818 + $0x38] sm:$0xff]
        %v1827 = vld [vmem:[%s1818 + $0x40] sm:$0xff]
        %v1828 = vld [vmem:[%s1818 + $0x48] sm:$0xff]
        %v1829 = vld [vmem:[%s1818 + $0x50] sm:$0xff]
        %v1830 = vld [vmem:[%s1818 + $0x58] sm:$0xff]
        %v1831 = vld [vmem:[%s1818 + $0x60] sm:$0xff]
        %v1832 = vld [vmem:[%s1818 + $0x68] sm:$0xff]
        %v1833 = vld [vmem:[%s1818 + $0x70] sm:$0xff]
        %v1834 = vld [vmem:[%s1818 + $0x78] sm:$0xff]
        %v1851 = vunpack.c.l.b16 %v1819
        %v1852 = vunpack.c.h.b16 %v1819
        %v1853 = vunpack.c.l.b16 %v1820
        %v1854 = vunpack.c.h.b16 %v1820
        %v1855 = vunpack.c.l.b16 %v1821
        %v1856 = vunpack.c.h.b16 %v1821
        %v1857 = vunpack.c.l.b16 %v1822
        %v1858 = vunpack.c.h.b16 %v1822
        %v1859 = vunpack.c.l.b16 %v1823
        %v1860 = vunpack.c.h.b16 %v1823
        %v1861 = vunpack.c.l.b16 %v1824
        %v1862 = vunpack.c.h.b16 %v1824
        %v1863 = vunpack.c.l.b16 %v1825
        %v1864 = vunpack.c.h.b16 %v1825
        %v1865 = vunpack.c.l.b16 %v1826
        %v1866 = vunpack.c.h.b16 %v1826
        %v1867 = vunpack.c.l.b16 %v1827
        %v1868 = vunpack.c.h.b16 %v1827
        %v1869 = vunpack.c.l.b16 %v1828
        %v1870 = vunpack.c.h.b16 %v1828
        %v1871 = vunpack.c.l.b16 %v1829
        %v1872 = vunpack.c.h.b16 %v1829
        %v1873 = vunpack.c.l.b16 %v1830
        %v1874 = vunpack.c.h.b16 %v1830
        %v1875 = vunpack.c.l.b16 %v1831
        %v1876 = vunpack.c.h.b16 %v1831
        %v1877 = vunpack.c.l.b16 %v1832
        %v1878 = vunpack.c.h.b16 %v1832
        %v1879 = vunpack.c.l.b16 %v1833
        %v1880 = vunpack.c.h.b16 %v1833
        %v1881 = vunpack.c.l.b16 %v1834
        %v1882 = vunpack.c.h.b16 %v1834
        %v1883 = vpack.c.b16 %v1853, %v1851
        %v1884 = vpack.c.b16 %v1854, %v1852
        %v1885 = vpack.c.b16 %v1857, %v1855
        %v1886 = vpack.c.b16 %v1858, %v1856
        %v1887 = vpack.c.b16 %v1861, %v1859
        %v1888 = vpack.c.b16 %v1862, %v1860
        %v1889 = vpack.c.b16 %v1865, %v1863
        %v1890 = vpack.c.b16 %v1866, %v1864
        %v1891 = vpack.c.b16 %v1869, %v1867
        %v1892 = vpack.c.b16 %v1870, %v1868
        %v1893 = vpack.c.b16 %v1873, %v1871
        %v1894 = vpack.c.b16 %v1874, %v1872
        %v1895 = vpack.c.b16 %v1877, %v1875
        %v1896 = vpack.c.b16 %v1878, %v1876
        %v1897 = vpack.c.b16 %v1881, %v1879
        %v1898 = vpack.c.b16 %v1882, %v1880
        %1915 = vmatpush.bf16.msra.mxu0 %v1897
        %1916 = vmatpush.bf16.msra.mxu0 %v1895
        %1917 = vmatpush.bf16.msra.mxu0 %v1893
        %1918 = vmatpush.bf16.msra.mxu0 %v1891
        %1919 = vmatpush.bf16.msra.mxu0 %v1889
        %1920 = vmatpush.bf16.msra.mxu0 %v1887
        %1921 = vmatpush.bf16.msra.mxu0 %v1885
        %1922 = vmatpush.bf16.msra.mxu0 %v1883
        %1923 = vmatmul.bf16.gmra.mxu0 %v1817
        %v1924 = vpop.f32.mrf.mxu0
        %v1925 = vadd.f32 0.0, %v1924
        %v1926 = vpop.f32.mrf.mxu0
        %1927 = vdwg.mxu0
        %1928 = vmatpush.bf16.msra.mxu0 %v1898
        %1929 = vmatpush.bf16.msra.mxu0 %v1896
        %1930 = vmatpush.bf16.msra.mxu0 %v1894
        %1931 = vmatpush.bf16.msra.mxu0 %v1892
        %1932 = vmatpush.bf16.msra.mxu0 %v1890
        %1933 = vmatpush.bf16.msra.mxu0 %v1888
        %1934 = vmatpush.bf16.msra.mxu0 %v1886
        %1935 = vmatpush.bf16.msra.mxu0 %v1884
        %1936 = vmatmul.bf16.gmra.mxu0 %v1817
        %v1937 = vpop.f32.mrf.mxu0
        %v1938 = vadd.f32 0.0, %v1937
        %v1939 = vpop.f32.mrf.mxu0
        %1940 = vdwg.mxu0
        %v1941 = vadd.f32 %v1814, %v1925
        %v1942 = vadd.f32 %v1815, %v1938
        %v1943 = vld [vmem:[#allocation3 + $0x8] sm:$0x3f]
        %v1944 = vpack.c.bf16 %v1943, %v1943
        %s1945 = scalar_lea.vmem %s5, 768
        %v1946 = vld [vmem:[%s1945] sm:$0xff]
        %v1947 = vld [vmem:[%s1945 + $0x8] sm:$0xff]
        %v1948 = vld [vmem:[%s1945 + $0x10] sm:$0xff]
        %v1949 = vld [vmem:[%s1945 + $0x18] sm:$0xff]
        %v1950 = vld [vmem:[%s1945 + $0x20] sm:$0xff]
        %v1951 = vld [vmem:[%s1945 + $0x28] sm:$0xff]
        %v1952 = vld [vmem:[%s1945 + $0x30] sm:$0xff]
        %v1953 = vld [vmem:[%s1945 + $0x38] sm:$0xff]
        %v1954 = vld [vmem:[%s1945 + $0x40] sm:$0xff]
        %v1955 = vld [vmem:[%s1945 + $0x48] sm:$0xff]
        %v1956 = vld [vmem:[%s1945 + $0x50] sm:$0xff]
        %v1957 = vld [vmem:[%s1945 + $0x58] sm:$0xff]
        %v1958 = vld [vmem:[%s1945 + $0x60] sm:$0xff]
        %v1959 = vld [vmem:[%s1945 + $0x68] sm:$0xff]
        %v1960 = vld [vmem:[%s1945 + $0x70] sm:$0xff]
        %v1961 = vld [vmem:[%s1945 + $0x78] sm:$0xff]
        %v1978 = vunpack.c.l.b16 %v1946
        %v1979 = vunpack.c.h.b16 %v1946
        %v1980 = vunpack.c.l.b16 %v1947
        %v1981 = vunpack.c.h.b16 %v1947
        %v1982 = vunpack.c.l.b16 %v1948
        %v1983 = vunpack.c.h.b16 %v1948
        %v1984 = vunpack.c.l.b16 %v1949
        %v1985 = vunpack.c.h.b16 %v1949
        %v1986 = vunpack.c.l.b16 %v1950
        %v1987 = vunpack.c.h.b16 %v1950
        %v1988 = vunpack.c.l.b16 %v1951
        %v1989 = vunpack.c.h.b16 %v1951
        %v1990 = vunpack.c.l.b16 %v1952
        %v1991 = vunpack.c.h.b16 %v1952
        %v1992 = vunpack.c.l.b16 %v1953
        %v1993 = vunpack.c.h.b16 %v1953
        %v1994 = vunpack.c.l.b16 %v1954
        %v1995 = vunpack.c.h.b16 %v1954
        %v1996 = vunpack.c.l.b16 %v1955
        %v1997 = vunpack.c.h.b16 %v1955
        %v1998 = vunpack.c.l.b16 %v1956
        %v1999 = vunpack.c.h.b16 %v1956
        %v2000 = vunpack.c.l.b16 %v1957
        %v2001 = vunpack.c.h.b16 %v1957
        %v2002 = vunpack.c.l.b16 %v1958
        %v2003 = vunpack.c.h.b16 %v1958
        %v2004 = vunpack.c.l.b16 %v1959
        %v2005 = vunpack.c.h.b16 %v1959
        %v2006 = vunpack.c.l.b16 %v1960
        %v2007 = vunpack.c.h.b16 %v1960
        %v2008 = vunpack.c.l.b16 %v1961
        %v2009 = vunpack.c.h.b16 %v1961
        %v2010 = vpack.c.b16 %v1980, %v1978
        %v2011 = vpack.c.b16 %v1981, %v1979
        %v2012 = vpack.c.b16 %v1984, %v1982
        %v2013 = vpack.c.b16 %v1985, %v1983
        %v2014 = vpack.c.b16 %v1988, %v1986
        %v2015 = vpack.c.b16 %v1989, %v1987
        %v2016 = vpack.c.b16 %v1992, %v1990
        %v2017 = vpack.c.b16 %v1993, %v1991
        %v2018 = vpack.c.b16 %v1996, %v1994
        %v2019 = vpack.c.b16 %v1997, %v1995
        %v2020 = vpack.c.b16 %v2000, %v1998
        %v2021 = vpack.c.b16 %v2001, %v1999
        %v2022 = vpack.c.b16 %v2004, %v2002
        %v2023 = vpack.c.b16 %v2005, %v2003
        %v2024 = vpack.c.b16 %v2008, %v2006
        %v2025 = vpack.c.b16 %v2009, %v2007
        %2042 = vmatpush.bf16.msra.mxu0 %v2024
        %2043 = vmatpush.bf16.msra.mxu0 %v2022
        %2044 = vmatpush.bf16.msra.mxu0 %v2020
        %2045 = vmatpush.bf16.msra.mxu0 %v2018
        %2046 = vmatpush.bf16.msra.mxu0 %v2016
        %2047 = vmatpush.bf16.msra.mxu0 %v2014
        %2048 = vmatpush.bf16.msra.mxu0 %v2012
        %2049 = vmatpush.bf16.msra.mxu0 %v2010
        %2050 = vmatmul.bf16.gmra.mxu0 %v1944
        %v2051 = vpop.f32.mrf.mxu0
        %v2052 = vadd.f32 0.0, %v2051
        %v2053 = vpop.f32.mrf.mxu0
        %2054 = vdwg.mxu0
        %2055 = vmatpush.bf16.msra.mxu0 %v2025
        %2056 = vmatpush.bf16.msra.mxu0 %v2023
        %2057 = vmatpush.bf16.msra.mxu0 %v2021
        %2058 = vmatpush.bf16.msra.mxu0 %v2019
        %2059 = vmatpush.bf16.msra.mxu0 %v2017
        %2060 = vmatpush.bf16.msra.mxu0 %v2015
        %2061 = vmatpush.bf16.msra.mxu0 %v2013
        %2062 = vmatpush.bf16.msra.mxu0 %v2011
        %2063 = vmatmul.bf16.gmra.mxu0 %v1944
        %v2064 = vpop.f32.mrf.mxu0
        %v2065 = vadd.f32 0.0, %v2064
        %v2066 = vpop.f32.mrf.mxu0
        %2067 = vdwg.mxu0
        %v2068 = vadd.f32 %v1941, %v2052
        %v2069 = vadd.f32 %v1942, %v2065
        %v2070 = vld [vmem:[#allocation3 + $0x9] sm:$0x3f]
        %v2071 = vpack.c.bf16 %v2070, %v2070
        %s2072 = scalar_lea.vmem %s5, 896
        %v2073 = vld [vmem:[%s2072] sm:$0xff]
        %v2074 = vld [vmem:[%s2072 + $0x8] sm:$0xff]
        %v2075 = vld [vmem:[%s2072 + $0x10] sm:$0xff]
        %v2076 = vld [vmem:[%s2072 + $0x18] sm:$0xff]
        %v2077 = vld [vmem:[%s2072 + $0x20] sm:$0xff]
        %v2078 = vld [vmem:[%s2072 + $0x28] sm:$0xff]
        %v2079 = vld [vmem:[%s2072 + $0x30] sm:$0xff]
        %v2080 = vld [vmem:[%s2072 + $0x38] sm:$0xff]
        %v2081 = vld [vmem:[%s2072 + $0x40] sm:$0xff]
        %v2082 = vld [vmem:[%s2072 + $0x48] sm:$0xff]
        %v2083 = vld [vmem:[%s2072 + $0x50] sm:$0xff]
        %v2084 = vld [vmem:[%s2072 + $0x58] sm:$0xff]
        %v2085 = vld [vmem:[%s2072 + $0x60] sm:$0xff]
        %v2086 = vld [vmem:[%s2072 + $0x68] sm:$0xff]
        %v2087 = vld [vmem:[%s2072 + $0x70] sm:$0xff]
        %v2088 = vld [vmem:[%s2072 + $0x78] sm:$0xff]
        %v2105 = vunpack.c.l.b16 %v2073
        %v2106 = vunpack.c.h.b16 %v2073
        %v2107 = vunpack.c.l.b16 %v2074
        %v2108 = vunpack.c.h.b16 %v2074
        %v2109 = vunpack.c.l.b16 %v2075
        %v2110 = vunpack.c.h.b16 %v2075
        %v2111 = vunpack.c.l.b16 %v2076
        %v2112 = vunpack.c.h.b16 %v2076
        %v2113 = vunpack.c.l.b16 %v2077
        %v2114 = vunpack.c.h.b16 %v2077
        %v2115 = vunpack.c.l.b16 %v2078
        %v2116 = vunpack.c.h.b16 %v2078
        %v2117 = vunpack.c.l.b16 %v2079
        %v2118 = vunpack.c.h.b16 %v2079
        %v2119 = vunpack.c.l.b16 %v2080
        %v2120 = vunpack.c.h.b16 %v2080
        %v2121 = vunpack.c.l.b16 %v2081
        %v2122 = vunpack.c.h.b16 %v2081
        %v2123 = vunpack.c.l.b16 %v2082
        %v2124 = vunpack.c.h.b16 %v2082
        %v2125 = vunpack.c.l.b16 %v2083
        %v2126 = vunpack.c.h.b16 %v2083
        %v2127 = vunpack.c.l.b16 %v2084
        %v2128 = vunpack.c.h.b16 %v2084
        %v2129 = vunpack.c.l.b16 %v2085
        %v2130 = vunpack.c.h.b16 %v2085
        %v2131 = vunpack.c.l.b16 %v2086
        %v2132 = vunpack.c.h.b16 %v2086
        %v2133 = vunpack.c.l.b16 %v2087
        %v2134 = vunpack.c.h.b16 %v2087
        %v2135 = vunpack.c.l.b16 %v2088
        %v2136 = vunpack.c.h.b16 %v2088
        %v2137 = vpack.c.b16 %v2107, %v2105
        %v2138 = vpack.c.b16 %v2108, %v2106
        %v2139 = vpack.c.b16 %v2111, %v2109
        %v2140 = vpack.c.b16 %v2112, %v2110
        %v2141 = vpack.c.b16 %v2115, %v2113
        %v2142 = vpack.c.b16 %v2116, %v2114
        %v2143 = vpack.c.b16 %v2119, %v2117
        %v2144 = vpack.c.b16 %v2120, %v2118
        %v2145 = vpack.c.b16 %v2123, %v2121
        %v2146 = vpack.c.b16 %v2124, %v2122
        %v2147 = vpack.c.b16 %v2127, %v2125
        %v2148 = vpack.c.b16 %v2128, %v2126
        %v2149 = vpack.c.b16 %v2131, %v2129
        %v2150 = vpack.c.b16 %v2132, %v2130
        %v2151 = vpack.c.b16 %v2135, %v2133
        %v2152 = vpack.c.b16 %v2136, %v2134
        %2169 = vmatpush.bf16.msra.mxu0 %v2151
        %2170 = vmatpush.bf16.msra.mxu0 %v2149
        %2171 = vmatpush.bf16.msra.mxu0 %v2147
        %2172 = vmatpush.bf16.msra.mxu0 %v2145
        %2173 = vmatpush.bf16.msra.mxu0 %v2143
        %2174 = vmatpush.bf16.msra.mxu0 %v2141
        %2175 = vmatpush.bf16.msra.mxu0 %v2139
        %2176 = vmatpush.bf16.msra.mxu0 %v2137
        %2177 = vmatmul.bf16.gmra.mxu0 %v2071
        %v2178 = vpop.f32.mrf.mxu0
        %v2179 = vadd.f32 0.0, %v2178
        %v2180 = vpop.f32.mrf.mxu0
        %2181 = vdwg.mxu0
        %2182 = vmatpush.bf16.msra.mxu0 %v2152
        %2183 = vmatpush.bf16.msra.mxu0 %v2150
        %2184 = vmatpush.bf16.msra.mxu0 %v2148
        %2185 = vmatpush.bf16.msra.mxu0 %v2146
        %2186 = vmatpush.bf16.msra.mxu0 %v2144
        %2187 = vmatpush.bf16.msra.mxu0 %v2142
        %2188 = vmatpush.bf16.msra.mxu0 %v2140
        %2189 = vmatpush.bf16.msra.mxu0 %v2138
        %2190 = vmatmul.bf16.gmra.mxu0 %v2071
        %v2191 = vpop.f32.mrf.mxu0
        %v2192 = vadd.f32 0.0, %v2191
        %v2193 = vpop.f32.mrf.mxu0
        %2194 = vdwg.mxu0
        %v2195 = vadd.f32 %v2068, %v2179
        %v2196 = vadd.f32 %v2069, %v2192
        %v2197 = vld [vmem:[#allocation3 + $0xa] sm:$0x3f]
        %v2198 = vpack.c.bf16 %v2197, %v2197
        %s2199 = scalar_lea.vmem %s5, 1024
        %v2200 = vld [vmem:[%s2199] sm:$0xff]
        %v2201 = vld [vmem:[%s2199 + $0x8] sm:$0xff]
        %v2202 = vld [vmem:[%s2199 + $0x10] sm:$0xff]
        %v2203 = vld [vmem:[%s2199 + $0x18] sm:$0xff]
        %v2204 = vld [vmem:[%s2199 + $0x20] sm:$0xff]
        %v2205 = vld [vmem:[%s2199 + $0x28] sm:$0xff]
        %v2206 = vld [vmem:[%s2199 + $0x30] sm:$0xff]
        %v2207 = vld [vmem:[%s2199 + $0x38] sm:$0xff]
        %v2208 = vld [vmem:[%s2199 + $0x40] sm:$0xff]
        %v2209 = vld [vmem:[%s2199 + $0x48] sm:$0xff]
        %v2210 = vld [vmem:[%s2199 + $0x50] sm:$0xff]
        %v2211 = vld [vmem:[%s2199 + $0x58] sm:$0xff]
        %v2212 = vld [vmem:[%s2199 + $0x60] sm:$0xff]
        %v2213 = vld [vmem:[%s2199 + $0x68] sm:$0xff]
        %v2214 = vld [vmem:[%s2199 + $0x70] sm:$0xff]
        %v2215 = vld [vmem:[%s2199 + $0x78] sm:$0xff]
        %v2232 = vunpack.c.l.b16 %v2200
        %v2233 = vunpack.c.h.b16 %v2200
        %v2234 = vunpack.c.l.b16 %v2201
        %v2235 = vunpack.c.h.b16 %v2201
        %v2236 = vunpack.c.l.b16 %v2202
        %v2237 = vunpack.c.h.b16 %v2202
        %v2238 = vunpack.c.l.b16 %v2203
        %v2239 = vunpack.c.h.b16 %v2203
        %v2240 = vunpack.c.l.b16 %v2204
        %v2241 = vunpack.c.h.b16 %v2204
        %v2242 = vunpack.c.l.b16 %v2205
        %v2243 = vunpack.c.h.b16 %v2205
        %v2244 = vunpack.c.l.b16 %v2206
        %v2245 = vunpack.c.h.b16 %v2206
        %v2246 = vunpack.c.l.b16 %v2207
        %v2247 = vunpack.c.h.b16 %v2207
        %v2248 = vunpack.c.l.b16 %v2208
        %v2249 = vunpack.c.h.b16 %v2208
        %v2250 = vunpack.c.l.b16 %v2209
        %v2251 = vunpack.c.h.b16 %v2209
        %v2252 = vunpack.c.l.b16 %v2210
        %v2253 = vunpack.c.h.b16 %v2210
        %v2254 = vunpack.c.l.b16 %v2211
        %v2255 = vunpack.c.h.b16 %v2211
        %v2256 = vunpack.c.l.b16 %v2212
        %v2257 = vunpack.c.h.b16 %v2212
        %v2258 = vunpack.c.l.b16 %v2213
        %v2259 = vunpack.c.h.b16 %v2213
        %v2260 = vunpack.c.l.b16 %v2214
        %v2261 = vunpack.c.h.b16 %v2214
        %v2262 = vunpack.c.l.b16 %v2215
        %v2263 = vunpack.c.h.b16 %v2215
        %v2264 = vpack.c.b16 %v2234, %v2232
        %v2265 = vpack.c.b16 %v2235, %v2233
        %v2266 = vpack.c.b16 %v2238, %v2236
        %v2267 = vpack.c.b16 %v2239, %v2237
        %v2268 = vpack.c.b16 %v2242, %v2240
        %v2269 = vpack.c.b16 %v2243, %v2241
        %v2270 = vpack.c.b16 %v2246, %v2244
        %v2271 = vpack.c.b16 %v2247, %v2245
        %v2272 = vpack.c.b16 %v2250, %v2248
        %v2273 = vpack.c.b16 %v2251, %v2249
        %v2274 = vpack.c.b16 %v2254, %v2252
        %v2275 = vpack.c.b16 %v2255, %v2253
        %v2276 = vpack.c.b16 %v2258, %v2256
        %v2277 = vpack.c.b16 %v2259, %v2257
        %v2278 = vpack.c.b16 %v2262, %v2260
        %v2279 = vpack.c.b16 %v2263, %v2261
        %2296 = vmatpush.bf16.msra.mxu0 %v2278
        %2297 = vmatpush.bf16.msra.mxu0 %v2276
        %2298 = vmatpush.bf16.msra.mxu0 %v2274
        %2299 = vmatpush.bf16.msra.mxu0 %v2272
        %2300 = vmatpush.bf16.msra.mxu0 %v2270
        %2301 = vmatpush.bf16.msra.mxu0 %v2268
        %2302 = vmatpush.bf16.msra.mxu0 %v2266
        %2303 = vmatpush.bf16.msra.mxu0 %v2264
        %2304 = vmatmul.bf16.gmra.mxu0 %v2198
        %v2305 = vpop.f32.mrf.mxu0
        %v2306 = vadd.f32 0.0, %v2305
        %v2307 = vpop.f32.mrf.mxu0
        %2308 = vdwg.mxu0
        %2309 = vmatpush.bf16.msra.mxu0 %v2279
        %2310 = vmatpush.bf16.msra.mxu0 %v2277
        %2311 = vmatpush.bf16.msra.mxu0 %v2275
        %2312 = vmatpush.bf16.msra.mxu0 %v2273
        %2313 = vmatpush.bf16.msra.mxu0 %v2271
        %2314 = vmatpush.bf16.msra.mxu0 %v2269
        %2315 = vmatpush.bf16.msra.mxu0 %v2267
        %2316 = vmatpush.bf16.msra.mxu0 %v2265
        %2317 = vmatmul.bf16.gmra.mxu0 %v2198
        %v2318 = vpop.f32.mrf.mxu0
        %v2319 = vadd.f32 0.0, %v2318
        %v2320 = vpop.f32.mrf.mxu0
        %2321 = vdwg.mxu0
        %v2322 = vadd.f32 %v2195, %v2306
        %v2323 = vadd.f32 %v2196, %v2319
        %v2324 = vld [vmem:[%s6] sm:$0x3]
        %v2326 = vperm.slane %v2324, 0
        %v2327 = vperm.slane %v2324, 1
        %v2330 = vadd.f32 %v2322, %v2326
        %v2331 = vadd.f32 %v2323, %v2327
        %v2332 = vmax.f32 %v2330, 0.0
        %v2333 = vmax.f32 %v2331, 0.0
        %v2336 = vrot.slane %v2332, 1
        %v2337 = vrot.slane %v2333, 1
        %v2340 = vmax.f32 %v2332, %v2336
        %v2341 = vmax.f32 %v2333, %v2337
        %v2344 = vrot.slane %v2340, 4
        %v2345 = vrot.slane %v2341, 4
        %v2348 = vmax.f32 %v2340, %v2344
        %v2349 = vmax.f32 %v2341, %v2345
        %v2350 = vpack.c.bf16 %v2348, %v2348
        %v2351 = vpack.c.bf16 %v2349, %v2349
        %v2352 = vld [vmem:[%s7] sm:$0xff]
        %v2353 = vld [vmem:[%s7 + $0x8] sm:$0xff]
        %v2354 = vld [vmem:[%s7 + $0x10] sm:$0xff]
        %v2355 = vld [vmem:[%s7 + $0x18] sm:$0xff]
        %v2356 = vld [vmem:[%s7 + $0x20] sm:$0xff]
        %v2357 = vld [vmem:[%s7 + $0x28] sm:$0xff]
        %v2358 = vld [vmem:[%s7 + $0x30] sm:$0xff]
        %v2359 = vld [vmem:[%s7 + $0x38] sm:$0xff]
        %v2360 = vld [vmem:[%s7 + $0x40] sm:$0xff]
        %v2361 = vld [vmem:[%s7 + $0x48] sm:$0xff]
        %v2362 = vld [vmem:[%s7 + $0x50] sm:$0xff]
        %v2363 = vld [vmem:[%s7 + $0x58] sm:$0xff]
        %v2364 = vld [vmem:[%s7 + $0x60] sm:$0xff]
        %v2365 = vld [vmem:[%s7 + $0x68] sm:$0xff]
        %v2366 = vld [vmem:[%s7 + $0x70] sm:$0xff]
        %v2367 = vld [vmem:[%s7 + $0x78] sm:$0xff]
        %v2368 = vld [vmem:[%s7 + $0x80] sm:$0xff]
        %v2369 = vld [vmem:[%s7 + $0x88] sm:$0xff]
        %v2370 = vld [vmem:[%s7 + $0x90] sm:$0xff]
        %v2371 = vld [vmem:[%s7 + $0x98] sm:$0xff]
        %v2372 = vld [vmem:[%s7 + $0xa0] sm:$0xff]
        %v2373 = vld [vmem:[%s7 + $0xa8] sm:$0xff]
        %v2374 = vld [vmem:[%s7 + $0xb0] sm:$0xff]
        %v2375 = vld [vmem:[%s7 + $0xb8] sm:$0xff]
        %v2376 = vld [vmem:[%s7 + $0xc0] sm:$0xff]
        %v2377 = vld [vmem:[%s7 + $0xc8] sm:$0xff]
        %v2378 = vld [vmem:[%s7 + $0xd0] sm:$0xff]
        %v2379 = vld [vmem:[%s7 + $0xd8] sm:$0xff]
        %v2380 = vld [vmem:[%s7 + $0xe0] sm:$0xff]
        %v2381 = vld [vmem:[%s7 + $0xe8] sm:$0xff]
        %v2382 = vld [vmem:[%s7 + $0xf0] sm:$0xff]
        %v2383 = vld [vmem:[%s7 + $0xf8] sm:$0xff]
        %v2384 = vld [vmem:[%s7 + $0x100] sm:$0xff]
        %v2385 = vld [vmem:[%s7 + $0x108] sm:$0xff]
        %v2386 = vld [vmem:[%s7 + $0x110] sm:$0xff]
        %v2387 = vld [vmem:[%s7 + $0x118] sm:$0xff]
        %v2388 = vld [vmem:[%s7 + $0x120] sm:$0xff]
        %v2389 = vld [vmem:[%s7 + $0x128] sm:$0xff]
        %v2390 = vld [vmem:[%s7 + $0x130] sm:$0xff]
        %v2391 = vld [vmem:[%s7 + $0x138] sm:$0xff]
        %v2392 = vld [vmem:[%s7 + $0x140] sm:$0xff]
        %v2393 = vld [vmem:[%s7 + $0x148] sm:$0xff]
        %v2394 = vld [vmem:[%s7 + $0x150] sm:$0xff]
        %v2395 = vld [vmem:[%s7 + $0x158] sm:$0xff]
        %v2396 = vld [vmem:[%s7 + $0x160] sm:$0xff]
        %v2397 = vld [vmem:[%s7 + $0x168] sm:$0xff]
        %v2398 = vld [vmem:[%s7 + $0x170] sm:$0xff]
        %v2399 = vld [vmem:[%s7 + $0x178] sm:$0xff]
        %v2400 = vld [vmem:[%s7 + $0x180] sm:$0xff]
        %v2401 = vld [vmem:[%s7 + $0x188] sm:$0xff]
        %v2402 = vld [vmem:[%s7 + $0x190] sm:$0xff]
        %v2403 = vld [vmem:[%s7 + $0x198] sm:$0xff]
        %v2404 = vld [vmem:[%s7 + $0x1a0] sm:$0xff]
        %v2405 = vld [vmem:[%s7 + $0x1a8] sm:$0xff]
        %v2406 = vld [vmem:[%s7 + $0x1b0] sm:$0xff]
        %v2407 = vld [vmem:[%s7 + $0x1b8] sm:$0xff]
        %v2408 = vld [vmem:[%s7 + $0x1c0] sm:$0xff]
        %v2409 = vld [vmem:[%s7 + $0x1c8] sm:$0xff]
        %v2410 = vld [vmem:[%s7 + $0x1d0] sm:$0xff]
        %v2411 = vld [vmem:[%s7 + $0x1d8] sm:$0xff]
        %v2412 = vld [vmem:[%s7 + $0x1e0] sm:$0xff]
        %v2413 = vld [vmem:[%s7 + $0x1e8] sm:$0xff]
        %v2414 = vld [vmem:[%s7 + $0x1f0] sm:$0xff]
        %v2415 = vld [vmem:[%s7 + $0x1f8] sm:$0xff]
        %v2416 = vld [vmem:[%s8] sm:$0xf]
        %v2481 = vunpack.c.l.b16 %v2352
        %v2482 = vunpack.c.h.b16 %v2352
        %v2483 = vunpack.c.l.b16 %v2353
        %v2484 = vunpack.c.h.b16 %v2353
        %v2485 = vunpack.c.l.b16 %v2354
        %v2486 = vunpack.c.h.b16 %v2354
        %v2487 = vunpack.c.l.b16 %v2355
        %v2488 = vunpack.c.h.b16 %v2355
        %v2489 = vunpack.c.l.b16 %v2356
        %v2490 = vunpack.c.h.b16 %v2356
        %v2491 = vunpack.c.l.b16 %v2357
        %v2492 = vunpack.c.h.b16 %v2357
        %v2493 = vunpack.c.l.b16 %v2358
        %v2494 = vunpack.c.h.b16 %v2358
        %v2495 = vunpack.c.l.b16 %v2359
        %v2496 = vunpack.c.h.b16 %v2359
        %v2497 = vunpack.c.l.b16 %v2360
        %v2498 = vunpack.c.h.b16 %v2360
        %v2499 = vunpack.c.l.b16 %v2361
        %v2500 = vunpack.c.h.b16 %v2361
        %v2501 = vunpack.c.l.b16 %v2362
        %v2502 = vunpack.c.h.b16 %v2362
        %v2503 = vunpack.c.l.b16 %v2363
        %v2504 = vunpack.c.h.b16 %v2363
        %v2505 = vunpack.c.l.b16 %v2364
        %v2506 = vunpack.c.h.b16 %v2364
        %v2507 = vunpack.c.l.b16 %v2365
        %v2508 = vunpack.c.h.b16 %v2365
        %v2509 = vunpack.c.l.b16 %v2366
        %v2510 = vunpack.c.h.b16 %v2366
        %v2511 = vunpack.c.l.b16 %v2367
        %v2512 = vunpack.c.h.b16 %v2367
        %v2513 = vunpack.c.l.b16 %v2368
        %v2514 = vunpack.c.h.b16 %v2368
        %v2515 = vunpack.c.l.b16 %v2369
        %v2516 = vunpack.c.h.b16 %v2369
        %v2517 = vunpack.c.l.b16 %v2370
        %v2518 = vunpack.c.h.b16 %v2370
        %v2519 = vunpack.c.l.b16 %v2371
        %v2520 = vunpack.c.h.b16 %v2371
        %v2521 = vunpack.c.l.b16 %v2372
        %v2522 = vunpack.c.h.b16 %v2372
        %v2523 = vunpack.c.l.b16 %v2373
        %v2524 = vunpack.c.h.b16 %v2373
        %v2525 = vunpack.c.l.b16 %v2374
        %v2526 = vunpack.c.h.b16 %v2374
        %v2527 = vunpack.c.l.b16 %v2375
        %v2528 = vunpack.c.h.b16 %v2375
        %v2529 = vunpack.c.l.b16 %v2376
        %v2530 = vunpack.c.h.b16 %v2376
        %v2531 = vunpack.c.l.b16 %v2377
        %v2532 = vunpack.c.h.b16 %v2377
        %v2533 = vunpack.c.l.b16 %v2378
        %v2534 = vunpack.c.h.b16 %v2378
        %v2535 = vunpack.c.l.b16 %v2379
        %v2536 = vunpack.c.h.b16 %v2379
        %v2537 = vunpack.c.l.b16 %v2380
        %v2538 = vunpack.c.h.b16 %v2380
        %v2539 = vunpack.c.l.b16 %v2381
        %v2540 = vunpack.c.h.b16 %v2381
        %v2541 = vunpack.c.l.b16 %v2382
        %v2542 = vunpack.c.h.b16 %v2382
        %v2543 = vunpack.c.l.b16 %v2383
        %v2544 = vunpack.c.h.b16 %v2383
        %v2545 = vunpack.c.l.b16 %v2384
        %v2546 = vunpack.c.h.b16 %v2384
        %v2547 = vunpack.c.l.b16 %v2385
        %v2548 = vunpack.c.h.b16 %v2385
        %v2549 = vunpack.c.l.b16 %v2386
        %v2550 = vunpack.c.h.b16 %v2386
        %v2551 = vunpack.c.l.b16 %v2387
        %v2552 = vunpack.c.h.b16 %v2387
        %v2553 = vunpack.c.l.b16 %v2388
        %v2554 = vunpack.c.h.b16 %v2388
        %v2555 = vunpack.c.l.b16 %v2389
        %v2556 = vunpack.c.h.b16 %v2389
        %v2557 = vunpack.c.l.b16 %v2390
        %v2558 = vunpack.c.h.b16 %v2390
        %v2559 = vunpack.c.l.b16 %v2391
        %v2560 = vunpack.c.h.b16 %v2391
        %v2561 = vunpack.c.l.b16 %v2392
        %v2562 = vunpack.c.h.b16 %v2392
        %v2563 = vunpack.c.l.b16 %v2393
        %v2564 = vunpack.c.h.b16 %v2393
        %v2565 = vunpack.c.l.b16 %v2394
        %v2566 = vunpack.c.h.b16 %v2394
        %v2567 = vunpack.c.l.b16 %v2395
        %v2568 = vunpack.c.h.b16 %v2395
        %v2569 = vunpack.c.l.b16 %v2396
        %v2570 = vunpack.c.h.b16 %v2396
        %v2571 = vunpack.c.l.b16 %v2397
        %v2572 = vunpack.c.h.b16 %v2397
        %v2573 = vunpack.c.l.b16 %v2398
        %v2574 = vunpack.c.h.b16 %v2398
        %v2575 = vunpack.c.l.b16 %v2399
        %v2576 = vunpack.c.h.b16 %v2399
        %v2577 = vunpack.c.l.b16 %v2400
        %v2578 = vunpack.c.h.b16 %v2400
        %v2579 = vunpack.c.l.b16 %v2401
        %v2580 = vunpack.c.h.b16 %v2401
        %v2581 = vunpack.c.l.b16 %v2402
        %v2582 = vunpack.c.h.b16 %v2402
        %v2583 = vunpack.c.l.b16 %v2403
        %v2584 = vunpack.c.h.b16 %v2403
        %v2585 = vunpack.c.l.b16 %v2404
        %v2586 = vunpack.c.h.b16 %v2404
        %v2587 = vunpack.c.l.b16 %v2405
        %v2588 = vunpack.c.h.b16 %v2405
        %v2589 = vunpack.c.l.b16 %v2406
        %v2590 = vunpack.c.h.b16 %v2406
        %v2591 = vunpack.c.l.b16 %v2407
        %v2592 = vunpack.c.h.b16 %v2407
        %v2593 = vunpack.c.l.b16 %v2408
        %v2594 = vunpack.c.h.b16 %v2408
        %v2595 = vunpack.c.l.b16 %v2409
        %v2596 = vunpack.c.h.b16 %v2409
        %v2597 = vunpack.c.l.b16 %v2410
        %v2598 = vunpack.c.h.b16 %v2410
        %v2599 = vunpack.c.l.b16 %v2411
        %v2600 = vunpack.c.h.b16 %v2411
        %v2601 = vunpack.c.l.b16 %v2412
        %v2602 = vunpack.c.h.b16 %v2412
        %v2603 = vunpack.c.l.b16 %v2413
        %v2604 = vunpack.c.h.b16 %v2413
        %v2605 = vunpack.c.l.b16 %v2414
        %v2606 = vunpack.c.h.b16 %v2414
        %v2607 = vunpack.c.l.b16 %v2415
        %v2608 = vunpack.c.h.b16 %v2415
        %v2609 = vpack.c.b16 %v2485, %v2481
        %v2610 = vpack.c.b16 %v2486, %v2482
        %v2611 = vpack.c.b16 %v2487, %v2483
        %v2612 = vpack.c.b16 %v2488, %v2484
        %v2613 = vpack.c.b16 %v2493, %v2489
        %v2614 = vpack.c.b16 %v2494, %v2490
        %v2615 = vpack.c.b16 %v2495, %v2491
        %v2616 = vpack.c.b16 %v2496, %v2492
        %v2617 = vpack.c.b16 %v2501, %v2497
        %v2618 = vpack.c.b16 %v2502, %v2498
        %v2619 = vpack.c.b16 %v2503, %v2499
        %v2620 = vpack.c.b16 %v2504, %v2500
        %v2621 = vpack.c.b16 %v2509, %v2505
        %v2622 = vpack.c.b16 %v2510, %v2506
        %v2623 = vpack.c.b16 %v2511, %v2507
        %v2624 = vpack.c.b16 %v2512, %v2508
        %v2625 = vpack.c.b16 %v2517, %v2513
        %v2626 = vpack.c.b16 %v2518, %v2514
        %v2627 = vpack.c.b16 %v2519, %v2515
        %v2628 = vpack.c.b16 %v2520, %v2516
        %v2629 = vpack.c.b16 %v2525, %v2521
        %v2630 = vpack.c.b16 %v2526, %v2522
        %v2631 = vpack.c.b16 %v2527, %v2523
        %v2632 = vpack.c.b16 %v2528, %v2524
        %v2633 = vpack.c.b16 %v2533, %v2529
        %v2634 = vpack.c.b16 %v2534, %v2530
        %v2635 = vpack.c.b16 %v2535, %v2531
        %v2636 = vpack.c.b16 %v2536, %v2532
        %v2637 = vpack.c.b16 %v2541, %v2537
        %v2638 = vpack.c.b16 %v2542, %v2538
        %v2639 = vpack.c.b16 %v2543, %v2539
        %v2640 = vpack.c.b16 %v2544, %v2540
        %v2641 = vpack.c.b16 %v2549, %v2545
        %v2642 = vpack.c.b16 %v2550, %v2546
        %v2643 = vpack.c.b16 %v2551, %v2547
        %v2644 = vpack.c.b16 %v2552, %v2548
        %v2645 = vpack.c.b16 %v2557, %v2553
        %v2646 = vpack.c.b16 %v2558, %v2554
        %v2647 = vpack.c.b16 %v2559, %v2555
        %v2648 = vpack.c.b16 %v2560, %v2556
        %v2649 = vpack.c.b16 %v2565, %v2561
        %v2650 = vpack.c.b16 %v2566, %v2562
        %v2651 = vpack.c.b16 %v2567, %v2563
        %v2652 = vpack.c.b16 %v2568, %v2564
        %v2653 = vpack.c.b16 %v2573, %v2569
        %v2654 = vpack.c.b16 %v2574, %v2570
        %v2655 = vpack.c.b16 %v2575, %v2571
        %v2656 = vpack.c.b16 %v2576, %v2572
        %v2657 = vpack.c.b16 %v2581, %v2577
        %v2658 = vpack.c.b16 %v2582, %v2578
        %v2659 = vpack.c.b16 %v2583, %v2579
        %v2660 = vpack.c.b16 %v2584, %v2580
        %v2661 = vpack.c.b16 %v2589, %v2585
        %v2662 = vpack.c.b16 %v2590, %v2586
        %v2663 = vpack.c.b16 %v2591, %v2587
        %v2664 = vpack.c.b16 %v2592, %v2588
        %v2665 = vpack.c.b16 %v2597, %v2593
        %v2666 = vpack.c.b16 %v2598, %v2594
        %v2667 = vpack.c.b16 %v2599, %v2595
        %v2668 = vpack.c.b16 %v2600, %v2596
        %v2669 = vpack.c.b16 %v2605, %v2601
        %v2670 = vpack.c.b16 %v2606, %v2602
        %v2671 = vpack.c.b16 %v2607, %v2603
        %v2672 = vpack.c.b16 %v2608, %v2604
        %v2738 = vperm.slane %v2416, 0
        %v2739 = vperm.slane %v2416, 1
        %v2740 = vperm.slane %v2416, 2
        %v2741 = vperm.slane %v2416, 3
        %2746 = vmatpush.bf16.msra.mxu0 %v2637
        %2747 = vmatpush.bf16.msra.mxu0 %v2633
        %2748 = vmatpush.bf16.msra.mxu0 %v2629
        %2749 = vmatpush.bf16.msra.mxu0 %v2625
        %2750 = vmatpush.bf16.msra.mxu0 %v2621
        %2751 = vmatpush.bf16.msra.mxu0 %v2617
        %2752 = vmatpush.bf16.msra.mxu0 %v2613
        %2753 = vmatpush.bf16.msra.mxu0 %v2609
        %2754 = vmatmul.bf16.gmra.mxu0 %v2350
        %v2755 = vpop.f32.mrf.mxu0
        %v2756 = vadd.f32 %v2738, %v2755
        %v2757 = vpop.f32.mrf.mxu0
        %2758 = vdwg.mxu0
        %2759 = vmatpush.bf16.msra.mxu0 %v2669
        %2760 = vmatpush.bf16.msra.mxu0 %v2665
        %2761 = vmatpush.bf16.msra.mxu0 %v2661
        %2762 = vmatpush.bf16.msra.mxu0 %v2657
        %2763 = vmatpush.bf16.msra.mxu0 %v2653
        %2764 = vmatpush.bf16.msra.mxu0 %v2649
        %2765 = vmatpush.bf16.msra.mxu0 %v2645
        %2766 = vmatpush.bf16.msra.mxu0 %v2641
        %2767 = vmatmul.bf16.gmra.mxu0 %v2351
        %v2768 = vpop.f32.mrf.mxu0
        %v2769 = vadd.f32 %v2756, %v2768
        %v2770 = vpop.f32.mrf.mxu0
        %2771 = vdwg.mxu0
        %2772 = vmatpush.bf16.msra.mxu0 %v2638
        %2773 = vmatpush.bf16.msra.mxu0 %v2634
        %2774 = vmatpush.bf16.msra.mxu0 %v2630
        %2775 = vmatpush.bf16.msra.mxu0 %v2626
        %2776 = vmatpush.bf16.msra.mxu0 %v2622
        %2777 = vmatpush.bf16.msra.mxu0 %v2618
        %2778 = vmatpush.bf16.msra.mxu0 %v2614
        %2779 = vmatpush.bf16.msra.mxu0 %v2610
        %2780 = vmatmul.bf16.gmra.mxu0 %v2350
        %v2781 = vpop.f32.mrf.mxu0
        %v2782 = vadd.f32 %v2739, %v2781
        %v2783 = vpop.f32.mrf.mxu0
        %2784 = vdwg.mxu0
        %2785 = vmatpush.bf16.msra.mxu0 %v2670
        %2786 = vmatpush.bf16.msra.mxu0 %v2666
        %2787 = vmatpush.bf16.msra.mxu0 %v2662
        %2788 = vmatpush.bf16.msra.mxu0 %v2658
        %2789 = vmatpush.bf16.msra.mxu0 %v2654
        %2790 = vmatpush.bf16.msra.mxu0 %v2650
        %2791 = vmatpush.bf16.msra.mxu0 %v2646
        %2792 = vmatpush.bf16.msra.mxu0 %v2642
        %2793 = vmatmul.bf16.gmra.mxu0 %v2351
        %v2794 = vpop.f32.mrf.mxu0
        %v2795 = vadd.f32 %v2782, %v2794
        %v2796 = vpop.f32.mrf.mxu0
        %2797 = vdwg.mxu0
        %2798 = vmatpush.bf16.msra.mxu0 %v2639
        %2799 = vmatpush.bf16.msra.mxu0 %v2635
        %2800 = vmatpush.bf16.msra.mxu0 %v2631
        %2801 = vmatpush.bf16.msra.mxu0 %v2627
        %2802 = vmatpush.bf16.msra.mxu0 %v2623
        %2803 = vmatpush.bf16.msra.mxu0 %v2619
        %2804 = vmatpush.bf16.msra.mxu0 %v2615
        %2805 = vmatpush.bf16.msra.mxu0 %v2611
        %2806 = vmatmul.bf16.gmra.mxu0 %v2350
        %v2807 = vpop.f32.mrf.mxu0
        %v2808 = vadd.f32 %v2740, %v2807
        %v2809 = vpop.f32.mrf.mxu0
        %2810 = vdwg.mxu0
        %2811 = vmatpush.bf16.msra.mxu0 %v2671
        %2812 = vmatpush.bf16.msra.mxu0 %v2667
        %2813 = vmatpush.bf16.msra.mxu0 %v2663
        %2814 = vmatpush.bf16.msra.mxu0 %v2659
        %2815 = vmatpush.bf16.msra.mxu0 %v2655
        %2816 = vmatpush.bf16.msra.mxu0 %v2651
        %2817 = vmatpush.bf16.msra.mxu0 %v2647
        %2818 = vmatpush.bf16.msra.mxu0 %v2643
        %2819 = vmatmul.bf16.gmra.mxu0 %v2351
        %v2820 = vpop.f32.mrf.mxu0
        %v2821 = vadd.f32 %v2808, %v2820
        %v2822 = vpop.f32.mrf.mxu0
        %2823 = vdwg.mxu0
        %2824 = vmatpush.bf16.msra.mxu0 %v2640
        %2825 = vmatpush.bf16.msra.mxu0 %v2636
        %2826 = vmatpush.bf16.msra.mxu0 %v2632
        %2827 = vmatpush.bf16.msra.mxu0 %v2628
        %2828 = vmatpush.bf16.msra.mxu0 %v2624
        %2829 = vmatpush.bf16.msra.mxu0 %v2620
        %2830 = vmatpush.bf16.msra.mxu0 %v2616
        %2831 = vmatpush.bf16.msra.mxu0 %v2612
        %2832 = vmatmul.bf16.gmra.mxu0 %v2350
        %v2833 = vpop.f32.mrf.mxu0
        %v2834 = vadd.f32 %v2741, %v2833
        %v2835 = vpop.f32.mrf.mxu0
        %2836 = vdwg.mxu0
        %2837 = vmatpush.bf16.msra.mxu0 %v2672
        %2838 = vmatpush.bf16.msra.mxu0 %v2668
        %2839 = vmatpush.bf16.msra.mxu0 %v2664
        %2840 = vmatpush.bf16.msra.mxu0 %v2660
        %2841 = vmatpush.bf16.msra.mxu0 %v2656
        %2842 = vmatpush.bf16.msra.mxu0 %v2652
        %2843 = vmatpush.bf16.msra.mxu0 %v2648
        %2844 = vmatpush.bf16.msra.mxu0 %v2644
        %2845 = vmatmul.bf16.gmra.mxu0 %v2351
        %v2846 = vpop.f32.mrf.mxu0
        %v2847 = vadd.f32 %v2834, %v2846
        %v2848 = vpop.f32.mrf.mxu0
        %2849 = vdwg.mxu0
        %v2850 = vmax.f32 %v2769, 0.0
        %v2851 = vmax.f32 %v2795, 0.0
        %v2852 = vmax.f32 %v2821, 0.0
        %v2853 = vmax.f32 %v2847, 0.0
        %v2854 = vpack.c.bf16 %v2850, %v2850
        %v2855 = vpack.c.bf16 %v2851, %v2851
        %v2856 = vpack.c.bf16 %v2852, %v2852
        %v2857 = vpack.c.bf16 %v2853, %v2853
        %v2858 = vld [vmem:[%s9] sm:$0xf]
        %v2859 = vld [vmem:[%s9 + $0x4] sm:$0xf]
        %v2860 = vld [vmem:[%s9 + $0x8] sm:$0xf]
        %v2861 = vld [vmem:[%s9 + $0xc] sm:$0xf]
        %v2862 = vld [vmem:[%s9 + $0x10] sm:$0xf]
        %v2863 = vld [vmem:[%s9 + $0x14] sm:$0xf]
        %v2864 = vld [vmem:[%s9 + $0x18] sm:$0xf]
        %v2865 = vld [vmem:[%s9 + $0x1c] sm:$0xf]
        %v2866 = vld [vmem:[%s9 + $0x20] sm:$0xf]
        %v2867 = vld [vmem:[%s9 + $0x24] sm:$0xf]
        %v2868 = vld [vmem:[%s9 + $0x28] sm:$0xf]
        %v2869 = vld [vmem:[%s9 + $0x2c] sm:$0xf]
        %v2870 = vld [vmem:[%s9 + $0x30] sm:$0xf]
        %v2871 = vld [vmem:[%s9 + $0x34] sm:$0xf]
        %v2872 = vld [vmem:[%s9 + $0x38] sm:$0xf]
        %v2873 = vld [vmem:[%s9 + $0x3c] sm:$0xf]
        %v2874 = vld [vmem:[%s9 + $0x40] sm:$0xf]
        %v2875 = vld [vmem:[%s9 + $0x44] sm:$0xf]
        %v2876 = vld [vmem:[%s9 + $0x48] sm:$0xf]
        %v2877 = vld [vmem:[%s9 + $0x4c] sm:$0xf]
        %v2878 = vld [vmem:[%s9 + $0x50] sm:$0xf]
        %v2879 = vld [vmem:[%s9 + $0x54] sm:$0xf]
        %v2880 = vld [vmem:[%s9 + $0x58] sm:$0xf]
        %v2881 = vld [vmem:[%s9 + $0x5c] sm:$0xf]
        %v2882 = vld [vmem:[%s9 + $0x60] sm:$0xf]
        %v2883 = vld [vmem:[%s9 + $0x64] sm:$0xf]
        %v2884 = vld [vmem:[%s9 + $0x68] sm:$0xf]
        %v2885 = vld [vmem:[%s9 + $0x6c] sm:$0xf]
        %v2886 = vld [vmem:[%s9 + $0x70] sm:$0xf]
        %v2887 = vld [vmem:[%s9 + $0x74] sm:$0xf]
        %v2888 = vld [vmem:[%s9 + $0x78] sm:$0xf]
        %v2889 = vld [vmem:[%s9 + $0x7c] sm:$0xf]
        %v2890 = vld [vmem:[%s9 + $0x80] sm:$0xf]
        %v2891 = vld [vmem:[%s9 + $0x84] sm:$0xf]
        %v2892 = vld [vmem:[%s9 + $0x88] sm:$0xf]
        %v2893 = vld [vmem:[%s9 + $0x8c] sm:$0xf]
        %v2894 = vld [vmem:[%s9 + $0x90] sm:$0xf]
        %v2895 = vld [vmem:[%s9 + $0x94] sm:$0xf]
        %v2896 = vld [vmem:[%s9 + $0x98] sm:$0xf]
        %v2897 = vld [vmem:[%s9 + $0x9c] sm:$0xf]
        %v2898 = vld [vmem:[%s9 + $0xa0] sm:$0xf]
        %v2899 = vld [vmem:[%s9 + $0xa4] sm:$0xf]
        %v2900 = vld [vmem:[%s9 + $0xa8] sm:$0xf]
        %v2901 = vld [vmem:[%s9 + $0xac] sm:$0xf]
        %v2902 = vld [vmem:[%s9 + $0xb0] sm:$0xf]
        %v2903 = vld [vmem:[%s9 + $0xb4] sm:$0xf]
        %v2904 = vld [vmem:[%s9 + $0xb8] sm:$0xf]
        %v2905 = vld [vmem:[%s9 + $0xbc] sm:$0xf]
        %v2906 = vld [vmem:[%s9 + $0xc0] sm:$0xf]
        %v2907 = vld [vmem:[%s9 + $0xc4] sm:$0xf]
        %v2908 = vld [vmem:[%s9 + $0xc8] sm:$0xf]
        %v2909 = vld [vmem:[%s9 + $0xcc] sm:$0xf]
        %v2910 = vld [vmem:[%s9 + $0xd0] sm:$0xf]
        %v2911 = vld [vmem:[%s9 + $0xd4] sm:$0xf]
        %v2912 = vld [vmem:[%s9 + $0xd8] sm:$0xf]
        %v2913 = vld [vmem:[%s9 + $0xdc] sm:$0xf]
        %v2914 = vld [vmem:[%s9 + $0xe0] sm:$0xf]
        %v2915 = vld [vmem:[%s9 + $0xe4] sm:$0xf]
        %v2916 = vld [vmem:[%s9 + $0xe8] sm:$0xf]
        %v2917 = vld [vmem:[%s9 + $0xec] sm:$0xf]
        %v2918 = vld [vmem:[%s9 + $0xf0] sm:$0xf]
        %v2919 = vld [vmem:[%s9 + $0xf4] sm:$0xf]
        %v2920 = vld [vmem:[%s9 + $0xf8] sm:$0xf]
        %v2921 = vld [vmem:[%s9 + $0xfc] sm:$0xf]
        %v2922 = vld [vmem:[%s10] sm:$0x1]
        %v2987 = vunpack.c.l.b16 %v2858
        %v2988 = vunpack.c.l.b16 %v2859
        %v2989 = vunpack.c.l.b16 %v2860
        %v2990 = vunpack.c.l.b16 %v2861
        %v2991 = vunpack.c.l.b16 %v2862
        %v2992 = vunpack.c.l.b16 %v2863
        %v2993 = vunpack.c.l.b16 %v2864
        %v2994 = vunpack.c.l.b16 %v2865
        %v2995 = vunpack.c.l.b16 %v2866
        %v2996 = vunpack.c.l.b16 %v2867
        %v2997 = vunpack.c.l.b16 %v2868
        %v2998 = vunpack.c.l.b16 %v2869
        %v2999 = vunpack.c.l.b16 %v2870
        %v3000 = vunpack.c.l.b16 %v2871
        %v3001 = vunpack.c.l.b16 %v2872
        %v3002 = vunpack.c.l.b16 %v2873
        %v3003 = vunpack.c.l.b16 %v2874
        %v3004 = vunpack.c.l.b16 %v2875
        %v3005 = vunpack.c.l.b16 %v2876
        %v3006 = vunpack.c.l.b16 %v2877
        %v3007 = vunpack.c.l.b16 %v2878
        %v3008 = vunpack.c.l.b16 %v2879
        %v3009 = vunpack.c.l.b16 %v2880
        %v3010 = vunpack.c.l.b16 %v2881
        %v3011 = vunpack.c.l.b16 %v2882
        %v3012 = vunpack.c.l.b16 %v2883
        %v3013 = vunpack.c.l.b16 %v2884
        %v3014 = vunpack.c.l.b16 %v2885
        %v3015 = vunpack.c.l.b16 %v2886
        %v3016 = vunpack.c.l.b16 %v2887
        %v3017 = vunpack.c.l.b16 %v2888
        %v3018 = vunpack.c.l.b16 %v2889
        %v3019 = vunpack.c.l.b16 %v2890
        %v3020 = vunpack.c.l.b16 %v2891
        %v3021 = vunpack.c.l.b16 %v2892
        %v3022 = vunpack.c.l.b16 %v2893
        %v3023 = vunpack.c.l.b16 %v2894
        %v3024 = vunpack.c.l.b16 %v2895
        %v3025 = vunpack.c.l.b16 %v2896
        %v3026 = vunpack.c.l.b16 %v2897
        %v3027 = vunpack.c.l.b16 %v2898
        %v3028 = vunpack.c.l.b16 %v2899
        %v3029 = vunpack.c.l.b16 %v2900
        %v3030 = vunpack.c.l.b16 %v2901
        %v3031 = vunpack.c.l.b16 %v2902
        %v3032 = vunpack.c.l.b16 %v2903
        %v3033 = vunpack.c.l.b16 %v2904
        %v3034 = vunpack.c.l.b16 %v2905
        %v3035 = vunpack.c.l.b16 %v2906
        %v3036 = vunpack.c.l.b16 %v2907
        %v3037 = vunpack.c.l.b16 %v2908
        %v3038 = vunpack.c.l.b16 %v2909
        %v3039 = vunpack.c.l.b16 %v2910
        %v3040 = vunpack.c.l.b16 %v2911
        %v3041 = vunpack.c.l.b16 %v2912
        %v3042 = vunpack.c.l.b16 %v2913
        %v3043 = vunpack.c.l.b16 %v2914
        %v3044 = vunpack.c.l.b16 %v2915
        %v3045 = vunpack.c.l.b16 %v2916
        %v3046 = vunpack.c.l.b16 %v2917
        %v3047 = vunpack.c.l.b16 %v2918
        %v3048 = vunpack.c.l.b16 %v2919
        %v3049 = vunpack.c.l.b16 %v2920
        %v3050 = vunpack.c.l.b16 %v2921
        %v3051 = vpack.c.b16 %v2988, %v2987
        %v3052 = vpack.c.b16 %v2990, %v2989
        %v3053 = vpack.c.b16 %v2992, %v2991
        %v3054 = vpack.c.b16 %v2994, %v2993
        %v3055 = vpack.c.b16 %v2996, %v2995
        %v3056 = vpack.c.b16 %v2998, %v2997
        %v3057 = vpack.c.b16 %v3000, %v2999
        %v3058 = vpack.c.b16 %v3002, %v3001
        %v3059 = vpack.c.b16 %v3004, %v3003
        %v3060 = vpack.c.b16 %v3006, %v3005
        %v3061 = vpack.c.b16 %v3008, %v3007
        %v3062 = vpack.c.b16 %v3010, %v3009
        %v3063 = vpack.c.b16 %v3012, %v3011
        %v3064 = vpack.c.b16 %v3014, %v3013
        %v3065 = vpack.c.b16 %v3016, %v3015
        %v3066 = vpack.c.b16 %v3018, %v3017
        %v3067 = vpack.c.b16 %v3020, %v3019
        %v3068 = vpack.c.b16 %v3022, %v3021
        %v3069 = vpack.c.b16 %v3024, %v3023
        %v3070 = vpack.c.b16 %v3026, %v3025
        %v3071 = vpack.c.b16 %v3028, %v3027
        %v3072 = vpack.c.b16 %v3030, %v3029
        %v3073 = vpack.c.b16 %v3032, %v3031
        %v3074 = vpack.c.b16 %v3034, %v3033
        %v3075 = vpack.c.b16 %v3036, %v3035
        %v3076 = vpack.c.b16 %v3038, %v3037
        %v3077 = vpack.c.b16 %v3040, %v3039
        %v3078 = vpack.c.b16 %v3042, %v3041
        %v3079 = vpack.c.b16 %v3044, %v3043
        %v3080 = vpack.c.b16 %v3046, %v3045
        %v3081 = vpack.c.b16 %v3048, %v3047
        %v3082 = vpack.c.b16 %v3050, %v3049
        %3115 = vmatpush.bf16.msra.mxu0 %v3058
        %3116 = vmatpush.bf16.msra.mxu0 %v3057
        %3117 = vmatpush.bf16.msra.mxu0 %v3056
        %3118 = vmatpush.bf16.msra.mxu0 %v3055
        %3119 = vmatpush.bf16.msra.mxu0 %v3054
        %3120 = vmatpush.bf16.msra.mxu0 %v3053
        %3121 = vmatpush.bf16.msra.mxu0 %v3052
        %3122 = vmatpush.bf16.msra.mxu0 %v3051
        %3123 = vmatmul.bf16.gmra.mxu0 %v2854
        %v3124 = vpop.f32.mrf.mxu0
        %v3125 = vadd.f32 %v2922, %v3124
        %v3126 = vpop.f32.mrf.mxu0
        %3127 = vdwg.mxu0
        %3128 = vmatpush.bf16.msra.mxu0 %v3066
        %3129 = vmatpush.bf16.msra.mxu0 %v3065
        %3130 = vmatpush.bf16.msra.mxu0 %v3064
        %3131 = vmatpush.bf16.msra.mxu0 %v3063
        %3132 = vmatpush.bf16.msra.mxu0 %v3062
        %3133 = vmatpush.bf16.msra.mxu0 %v3061
        %3134 = vmatpush.bf16.msra.mxu0 %v3060
        %3135 = vmatpush.bf16.msra.mxu0 %v3059
        %3136 = vmatmul.bf16.gmra.mxu0 %v2855
        %v3137 = vpop.f32.mrf.mxu0
        %v3138 = vadd.f32 %v3125, %v3137
        %v3139 = vpop.f32.mrf.mxu0
        %3140 = vdwg.mxu0
        %3141 = vmatpush.bf16.msra.mxu0 %v3074
        %3142 = vmatpush.bf16.msra.mxu0 %v3073
        %3143 = vmatpush.bf16.msra.mxu0 %v3072
        %3144 = vmatpush.bf16.msra.mxu0 %v3071
        %3145 = vmatpush.bf16.msra.mxu0 %v3070
        %3146 = vmatpush.bf16.msra.mxu0 %v3069
        %3147 = vmatpush.bf16.msra.mxu0 %v3068
        %3148 = vmatpush.bf16.msra.mxu0 %v3067
        %3149 = vmatmul.bf16.gmra.mxu0 %v2856
        %v3150 = vpop.f32.mrf.mxu0
        %v3151 = vadd.f32 %v3138, %v3150
        %v3152 = vpop.f32.mrf.mxu0
        %3153 = vdwg.mxu0
        %3154 = vmatpush.bf16.msra.mxu0 %v3082
        %3155 = vmatpush.bf16.msra.mxu0 %v3081
        %3156 = vmatpush.bf16.msra.mxu0 %v3080
        %3157 = vmatpush.bf16.msra.mxu0 %v3079
        %3158 = vmatpush.bf16.msra.mxu0 %v3078
        %3159 = vmatpush.bf16.msra.mxu0 %v3077
        %3160 = vmatpush.bf16.msra.mxu0 %v3076
        %3161 = vmatpush.bf16.msra.mxu0 %v3075
        %3162 = vmatmul.bf16.gmra.mxu0 %v2857
        %v3163 = vpop.f32.mrf.mxu0
        %v3164 = vadd.f32 %v3151, %v3163
        %v3165 = vpop.f32.mrf.mxu0
        %3166 = vdwg.mxu0
        %3167 = vst [vmem:[%s379] sm:$0x1] %v3164
        %s3168 = sand.u32 %s269, 1
        %s3169 = scalar_lea.sflag [#allocation5], %s3168
        %s3170 = sand.u32 %s269, 1
        %s3171 = scalar_lea.vmem [#allocation4], %s3170
        // Predicated region
        $region65: #{endgame_forward.1} parent=63 // pred_check
          %p3172 = pneg %p279
        $region66: #{endgame_forward.1} parent=63 // pred_check_branch
          %3174 = sbr.rel (%p3172) target = $region68
        $region67: #{endgame_forward.1} parent=63 // pred_region
          %3176 = vsyncadd %s3169, 0
          %s3177 = scalar_lea.hbm %s11, %s25
          %s3179 = sshll.u32 %s3171, 4
          %s3180 = int_to_ptr.vmem [resolvable:$true] %s3179
          %s3181 = sshll.u32 %s3177, 4
          %s3182 = int_to_ptr.hbm [resolvable:$true] %s3181
          %3184 = dma.vmem_to_hbm [thread:$0]  %s3180, 16, %s3182, %s3169
        $region68: #{endgame_forward.1} parent=63 // pred_fallthru
          _
      $region64: #{endgame_forward.1} parent=5 // pred_fallthru
        _
      %p3185 = scmp.le.s32.totalorder 2, %s20
      // Predicated region
      $region69: #{endgame_forward.1} parent=5 // pred_check
        %p3186 = pneg %p3185
      $region70: #{endgame_forward.1} parent=5 // pred_check_branch
        %3188 = sbr.rel (%p3186) target = $region72
      $region71: #{endgame_forward.1} parent=5 // pred_region
        %s3189 = ssub.s32 %s20, 2
        // Predicated region
        $region73: #{endgame_forward.1} parent=71 // pred_check
          %p3190 = pneg %p285
        $region74: #{endgame_forward.1} parent=71 // pred_check_branch
          %3192 = sbr.rel (%p3190) target = $region76
        $region75: #{endgame_forward.1} parent=71 // pred_region
          %s3193 = sand.u32 %s270, 1
          %s3194 = scalar_lea.sflag [#allocation5], %s3193
          %s3195 = sand.u32 %s270, 1
          %s3196 = scalar_lea.vmem [#allocation4], %s3195
          %3198 = dma.done %s3194, 16
        $region76: #{endgame_forward.1} parent=71 // pred_fallthru
          _
      $region72: #{endgame_forward.1} parent=5 // pred_fallthru
        _
    $region6: #{endgame_forward.1} parent=1 // loop_footer
      %s24 = sadd.s32 1, %s20
    $region7: #{endgame_forward.1} parent=1 // loop_footer_branch
      %19 = sbr.rel target = $region3
    $region8: #{endgame_forward.1} parent=1 // loop_exit
      _
    %3199 = vsyncpa [#allocation5], 1
    %s3200 = scalar_lea.sflag [#allocation5], 1
    %3201 = vsyncpa %s3200, 1

</llo_original>
